<compile_context>
chip_gen: v7x
topology: tpu7x:2x2x1
jax: 0.10.0
libtpu: 0.0.40
codegen_flags: <defaults>
</compile_context>

<pallas_src>
import functools

import numpy as np

import jax
import jax.numpy as jnp
from jax.experimental import pallas as pl
from jax.experimental.pallas import tpu as pltpu

# ----------------------- synthetic model config -----------------------------
VOCAB = 16            # config.model.embedding['num_embeddings'] (alphabet size)
VOCAB_PAD = 128       # lane-dense logits width (sliced back to VOCAB outside)
PAD_IDX = 0           # config.model.embedding['padding_idx']
MASK_IDX = 1          # token_dropout mask_tkn_idx
EMBED_DIM = 32        # transformer embed_dim
NUM_HEADS = 4
NUM_BLOCKS = 2
FFN_DIM = 64          # SwiGLU hidden width
MASK_RATIO = 0.15     # token_dropout mask_ratio
MASK_TKN_PROB = 0.8   # token_dropout mask_tkn_prob
LN_EPS = 1e-5         # torch nn.LayerNorm default eps


# --------------------------- in-kernel helpers --------------------------------
def _mm(a, w_bf16):
    """Activation(bf16-cast) x pre-cast bf16 weight, f32 MXU accumulation."""
    return jnp.dot(a.astype(jnp.bfloat16), w_bf16,
                   preferred_element_type=jnp.float32)


def _layernorm(x, g, b, eps):
    mean = jnp.mean(x, axis=-1, keepdims=True)
    var = jnp.mean(jnp.square(x - mean), axis=-1, keepdims=True)
    return (x - mean) * jax.lax.rsqrt(var + eps) * g + b


# ------------------------- static constant builders ---------------------------
def _rotate_half_matrix(d, num_heads):
    """Signed permutation R (d, d): x @ R == per-head rotate_half(x)."""
    dh = d // num_heads
    half = dh // 2
    r = np.zeros((d, d), np.float32)
    for h in range(num_heads):
        o = h * dh
        for j in range(half):
            r[o + half + j, o + j] = -1.0   # first half  <- -x2
            r[o + j, o + half + j] = 1.0    # second half <-  x1
    return r


def _head_masks(d, num_heads):
    """(H, 1, D) one-hot column masks selecting each head's feature slice."""
    dh = d // num_heads
    m = np.zeros((num_heads, 1, d), np.float32)
    for h in range(num_heads):
        m[h, 0, h * dh:(h + 1) * dh] = 1.0
    return m


def rope_cos_sin(seq, dh):
    inv = 1.0 / (10000.0 ** (np.arange(0, dh, 2, dtype=np.float32) / dh))
    t = np.arange(seq, dtype=np.float32)
    freqs = np.outer(t, inv)                        # (S, dh/2)
    emb = np.concatenate([freqs, freqs], axis=-1)   # (S, dh)
    return np.cos(emb), np.sin(emb)


# ----------------------------- the fused kernel -------------------------------
def _rinalmo_kernel(x0_ref, bias_ref, cos_ref, sin_ref, rmat_ref, hm_ref,
                    ln1g_ref, ln1b_ref, wqkv_ref, bqkv_ref, wo_ref, bo_ref,
                    ln2g_ref, ln2b_ref, wgu_ref, bgu_ref, wd_ref, bd_ref,
                    fg_ref, fb_ref, w1_ref, b1_ref, lng_ref, lnb_ref,
                    w2_ref, b2_ref,
                    rep_ref, logits_ref, x_sc,
                    *, num_heads, ffn_dim, eps, inv_sqrt_dh):
    """Grid axis 0 = transformer layer; activations resident in x_sc."""
    l = pl.program_id(0)

    @pl.when(l == 0)
    def _():
        x_sc[...] = x0_ref[...]

    x = x_sc[...]                                   # (N, D) f32, N = B*S
    n_rows, d = x.shape

    # ---- pre-LN + fused QKV projection ----
    h = _layernorm(x, ln1g_ref[0], ln1b_ref[0], eps)
    qkv = _mm(h, wqkv_ref[0]) + bqkv_ref[0]         # (N, 3D)
    q = qkv[:, 0:d]
    k = qkv[:, d:2 * d]
    v = qkv[:, 2 * d:3 * d]

    # ---- RoPE: rotate-half as signed-permutation matmul (MXU, not XLU) ----
    cos = cos_ref[...]
    sin = sin_ref[...]

    def rope(t):
        rot = _mm(t, rmat_ref[...])                 # per-head rotate_half(t)
        return t * cos + rot * sin

    q = rope(q) * inv_sqrt_dh                       # fold 1/sqrt(Dh) into q
    k = rope(k)

    # ---- attention: all heads x all batch rows in two batched matmuls ----
    # Head separation via head-masked queries (zeroed columns contribute 0 to
    # the contraction); key padding and cross-batch isolation via the additive
    # bias (kept in f32 -- never cast the -1e30 to bf16).
    hm = hm_ref[...]                                # (H, 1, D)
    q3 = (q[None, :, :] * hm).astype(jnp.bfloat16)  # (H, N, D)
    k3 = jnp.broadcast_to(k.astype(jnp.bfloat16), (num_heads, n_rows, d))
    v3 = jnp.broadcast_to(v.astype(jnp.bfloat16), (num_heads, n_rows, d))

    s = jnp.einsum('hqd,hkd->hqk', q3, k3,
                   preferred_element_type=jnp.float32)     # (H, N, N)
    s = s + bias_ref[...]                                  # (1, N, N) broadcast
    s = s - jnp.max(s, axis=-1, keepdims=True)
    p = jnp.exp(s)
    p = p * pl.reciprocal(jnp.sum(p, axis=-1, keepdims=True), approx=True)

    o = jnp.einsum('hqk,hkd->hqd', p.astype(jnp.bfloat16), v3,
                   preferred_element_type=jnp.float32)     # (H, N, D)
    attn = jnp.sum(o * hm, axis=0)                         # (N, D) lane-dense

    # ---- output projection + residual (dropout = 0 at eval) ----
    x = x + _mm(attn, wo_ref[0]) + bo_ref[0]

    # ---- pre-LN SwiGLU FFN (fused gate|up) + residual ----
    h2 = _layernorm(x, ln2g_ref[0], ln2b_ref[0], eps)
    gu = _mm(h2, wgu_ref[0]) + bgu_ref[0]                  # (N, 2F), 128 lanes
    g = gu[:, :ffn_dim]
    u = gu[:, ffn_dim:]
    f = g * jax.nn.sigmoid(g) * u                          # SiLU(gate) * up
    x = x + _mm(f, wd_ref[0]) + bd_ref[0]
    x_sc[...] = x

    # ---- final LayerNorm + MLM head, only on the last layer step ----
    @pl.when(l == pl.num_programs(0) - 1)
    def _():
        rep = _layernorm(x, fg_ref[...], fb_ref[...], eps)
        rep_ref[...] = rep
        hh = _mm(rep, w1_ref[...]) + b1_ref[...]
        # TODO(synk): torch default nn.GELU is exact erf; tanh approximation
        # used in-kernel (EUP) since erf lowering is not guaranteed in Mosaic.
        hh = jax.nn.gelu(hh, approximate=True)
        hh = _layernorm(hh, lng_ref[...], lnb_ref[...], eps)
        logits_ref[...] = _mm(hh, w2_ref[...]) + b2_ref[...]   # (N, 128)


# ------------------------------ kernel wrapper --------------------------------
def _rinalmo_core(x_flat, bias, cos_nd, sin_nd, rmat, hmask, p):
    n_rows, d = x_flat.shape
    layers = p["wqkv"].shape[0]
    f = FFN_DIM
    heads = NUM_HEADS
    vp = p["lm_w2"].shape[1]

    kernel = functools.partial(
        _rinalmo_kernel, num_heads=heads, ffn_dim=f, eps=LN_EPS,
        inv_sqrt_dh=1.0 / float(np.sqrt(d // heads)))

    def const2(shape):
        return pl.BlockSpec(shape, lambda l: (0, 0))

    def const3(shape):
        return pl.BlockSpec(shape, lambda l: (0, 0, 0))

    def layer3(shape):
        return pl.BlockSpec((1,) + shape, lambda l: (l, 0, 0))

    args = (x_flat, bias, cos_nd, sin_nd, rmat, hmask,
            p["ln1_g"], p["ln1_b"], p["wqkv"], p["bqkv"], p["wo"], p["bo"],
            p["ln2_g"], p["ln2_b"], p["wgu"], p["bgu"], p["wd"], p["bd"],
            p["final_ln_g"], p["final_ln_b"], p["lm_w1"], p["lm_b1"],
            p["lm_ln_g"], p["lm_ln_b"], p["lm_w2"], p["lm_b2"])

    # rough cost hint so XLA schedules this custom call sensibly
    flops_layer = (2 * n_rows * d * (3 * d)            # qkv
                   + 2 * 2 * n_rows * d * d            # rope matmuls
                   + 2 * 2 * heads * n_rows * n_rows * d  # attn matmuls
                   + 2 * n_rows * d * d                # out proj
                   + 2 * n_rows * d * (2 * f)          # gate|up
                   + 2 * n_rows * f * d)               # down
    flops = layers * flops_layer + 2 * n_rows * d * d + 2 * n_rows * d * vp
    trans = layers * (heads * n_rows * n_rows + 2 * n_rows * f) + n_rows * d
    bytes_accessed = (sum(int(a.size) * a.dtype.itemsize for a in args)
                      + n_rows * d * 4 + n_rows * vp * 4)

    rep, logits = pl.pallas_call(
        kernel,
        out_shape=(jax.ShapeDtypeStruct((n_rows, d), jnp.float32),
                   jax.ShapeDtypeStruct((n_rows, vp), jnp.float32)),
        grid=(layers,),
        in_specs=[
            const2((n_rows, d)),                 # x0
            const3((1, n_rows, n_rows)),         # additive attention bias
            const2((n_rows, d)),                 # cos (tiled over heads/batch)
            const2((n_rows, d)),                 # sin
            const2((d, d)),                      # rotate-half matrix (bf16)
            const3((heads, 1, d)),               # head column masks
            layer3((1, d)), layer3((1, d)),          # ln1 g/b
            layer3((d, 3 * d)), layer3((1, 3 * d)),  # wqkv / bqkv
            layer3((d, d)), layer3((1, d)),          # wo / bo
            layer3((1, d)), layer3((1, d)),          # ln2 g/b
            layer3((d, 2 * f)), layer3((1, 2 * f)),  # fused wg|wu / bg|bu
            layer3((f, d)), layer3((1, d)),          # wd / bd
            const2((1, d)), const2((1, d)),          # final LN g/b
            const2((d, d)), const2((1, d)),          # lm_w1 / lm_b1
            const2((1, d)), const2((1, d)),          # lm LN g/b
            const2((d, vp)), const2((1, vp)),        # lm_w2 (padded) / lm_b2
        ],
        out_specs=(const2((n_rows, d)), const2((n_rows, vp))),
        scratch_shapes=[pltpu.VMEM((n_rows, d), jnp.float32)],
        compiler_params=pltpu.CompilerParams(
            dimension_semantics=("arbitrary",)),     # layer axis carries state
        cost_estimate=pl.CostEstimate(flops=int(flops),
                                      transcendentals=int(trans),
                                      bytes_accessed=int(bytes_accessed)),
    )(*args)
    return rep, logits


# ------------------------------ parameter prep --------------------------------
def init_params(key):
    """Torch-layout parameters (weights stored transposed: (in, out))."""
    def dense(k, shape, scale=0.02):
        return scale * jax.random.normal(k, shape, dtype=jnp.float32)

    keys = iter(jax.random.split(key, 4 + 5 * NUM_BLOCKS))
    params = {}
    emb = dense(next(keys), (VOCAB, EMBED_DIM))
    emb = emb.at[PAD_IDX].set(0.0)      # nn.Embedding zeroes padding_idx row
    params["embedding"] = emb

    blocks = []
    for _ in range(NUM_BLOCKS):
        blocks.append({
            "ln1_g": jnp.ones((EMBED_DIM,), jnp.float32),
            "ln1_b": jnp.zeros((EMBED_DIM,), jnp.float32),
            "wqkv": dense(next(keys), (EMBED_DIM, 3 * EMBED_DIM)),
            "bqkv": jnp.zeros((3 * EMBED_DIM,), jnp.float32),
            "wo": dense(next(keys), (EMBED_DIM, EMBED_DIM)),
            "bo": jnp.zeros((EMBED_DIM,), jnp.float32),
            "ln2_g": jnp.ones((EMBED_DIM,), jnp.float32),
            "ln2_b": jnp.zeros((EMBED_DIM,), jnp.float32),
            "wg": dense(next(keys), (EMBED_DIM, FFN_DIM)),
            "bg": jnp.zeros((FFN_DIM,), jnp.float32),
            "wu": dense(next(keys), (EMBED_DIM, FFN_DIM)),
            "bu": jnp.zeros((FFN_DIM,), jnp.float32),
            "wd": dense(next(keys), (FFN_DIM, EMBED_DIM)),
            "bd": jnp.zeros((EMBED_DIM,), jnp.float32),
        })
    params["blocks"] = blocks

    params["final_ln_g"] = jnp.ones((EMBED_DIM,), jnp.float32)
    params["final_ln_b"] = jnp.zeros((EMBED_DIM,), jnp.float32)
    # MaskedLanguageModelHead: Linear -> GELU -> LayerNorm -> Linear(vocab)
    params["lm_w1"] = dense(next(keys), (EMBED_DIM, EMBED_DIM))
    params["lm_b1"] = jnp.zeros((EMBED_DIM,), jnp.float32)
    params["lm_ln_g"] = jnp.ones((EMBED_DIM,), jnp.float32)
    params["lm_ln_b"] = jnp.zeros((EMBED_DIM,), jnp.float32)
    params["lm_w2"] = dense(next(keys), (EMBED_DIM, VOCAB))
    params["lm_b2"] = jnp.zeros((VOCAB,), jnp.float32)
    return params


def pack_params(params):
    """Stack per-layer weights on L, pre-cast matmul weights to bf16, fuse
    the SwiGLU gate/up weights, and pad the vocab projection to 128 lanes."""
    d, f, layers = EMBED_DIM, FFN_DIM, NUM_BLOCKS

    def stack(name):
        return jnp.stack([b[name] for b in params["blocks"]], axis=0)

    lm_w2 = jnp.zeros((d, VOCAB_PAD), jnp.float32).at[:, :VOCAB].set(params["lm_w2"])
    lm_b2 = jnp.zeros((1, VOCAB_PAD), jnp.float32).at[0, :VOCAB].set(params["lm_b2"])

    return {
        "embedding": params["embedding"],
        "ln1_g": stack("ln1_g").reshape(layers, 1, d),
        "ln1_b": stack("ln1_b").reshape(layers, 1, d),
        "wqkv": stack("wqkv").astype(jnp.bfloat16),
        "bqkv": stack("bqkv").reshape(layers, 1, 3 * d),
        "wo": stack("wo").astype(jnp.bfloat16),
        "bo": stack("bo").reshape(layers, 1, d),
        "ln2_g": stack("ln2_g").reshape(layers, 1, d),
        "ln2_b": stack("ln2_b").reshape(layers, 1, d),
        "wgu": jnp.concatenate([stack("wg"), stack("wu")],
                               axis=-1).astype(jnp.bfloat16),
        "bgu": jnp.concatenate([stack("bg"), stack("bu")],
                               axis=-1).reshape(layers, 1, 2 * f),
        "wd": stack("wd").astype(jnp.bfloat16),
        "bd": stack("bd").reshape(layers, 1, d),
        "final_ln_g": params["final_ln_g"].reshape(1, d),
        "final_ln_b": params["final_ln_b"].reshape(1, d),
        "lm_w1": params["lm_w1"].astype(jnp.bfloat16),
        "lm_b1": params["lm_b1"].reshape(1, d),
        "lm_ln_g": params["lm_ln_g"].reshape(1, d),
        "lm_ln_b": params["lm_ln_b"].reshape(1, d),
        "lm_w2": lm_w2.astype(jnp.bfloat16),
        "lm_b2": lm_b2,
    }


# -------------------------------- forward pass --------------------------------
def rinalmo_forward(packed, tokens):
    """Mirrors RiNALMo.forward(tokens) with need_attn_weights=False (inference)."""
    bsz, seq = tokens.shape
    d, heads = EMBED_DIM, NUM_HEADS
    dh = d // heads
    n_rows = bsz * seq

    pad_mask = tokens == PAD_IDX                        # (B, S) True at padding

    # embedding lookup (glue)
    x = jnp.take(packed["embedding"], tokens, axis=0)   # (B, S, D)

    # TokenDropout: ESM-style deterministic rescale (zero mask tokens, scale by
    # (1 - mask_ratio_train)/(1 - mask_ratio_observed)); RNG dropout inactive
    # at inference.  Guarded against fully-padded / fully-masked sequences.
    mask_tkn = tokens == MASK_IDX
    x = jnp.where(mask_tkn[..., None], 0.0, x)
    src_len = jnp.sum(jnp.logical_not(pad_mask), axis=-1).astype(jnp.float32)
    n_mask = jnp.sum(mask_tkn, axis=-1).astype(jnp.float32)
    mask_ratio_obs = jnp.where(src_len > 0.0,
                               n_mask / jnp.maximum(src_len, 1.0), 0.0)
    mask_ratio_train = MASK_RATIO * MASK_TKN_PROB
    denom = jnp.maximum(1.0 - mask_ratio_obs, 1e-6)
    x = x * ((1.0 - mask_ratio_train) / denom)[:, None, None]

    x_flat = x.reshape(n_rows, d)

    # additive attention bias over flattened rows: key-padding + cross-batch
    # block-diagonal mask (kept in f32 inside the kernel).
    # TODO(synk): quadratic in B*S; for production sequence lengths switch the
    # attention inner loop to a tiled flash-style scan over keys.
    pad_flat = pad_mask.reshape(n_rows)
    bids = jnp.arange(n_rows, dtype=jnp.int32) // seq
    allowed = (bids[:, None] == bids[None, :]) & jnp.logical_not(pad_flat)[None, :]
    bias = jnp.where(allowed, 0.0, -1e30).astype(jnp.float32)
    bias = bias.reshape(1, n_rows, n_rows)

    # rotary tables tiled across heads and batch -> lane-dense (B*S, D)
    cos, sin = rope_cos_sin(seq, dh)
    cos_nd = jnp.asarray(np.tile(np.tile(cos, (1, heads)), (bsz, 1)), jnp.float32)
    sin_nd = jnp.asarray(np.tile(np.tile(sin, (1, heads)), (bsz, 1)), jnp.float32)

    # static rotate-half permutation matrix and per-head column masks
    rmat = jnp.asarray(_rotate_half_matrix(d, heads), jnp.bfloat16)
    hmask = jnp.asarray(_head_masks(d, heads), jnp.float32)

    rep_flat, logits_flat = _rinalmo_core(x_flat, bias, cos_nd, sin_nd,
                                          rmat, hmask, packed)

    representation = rep_flat.reshape(bsz, seq, d)
    logits = logits_flat[:, :VOCAB].reshape(bsz, seq, VOCAB)

    # TODO(synk): need_attn_weights=True path (stacked per-layer attention
    # maps) not returned.
    return {"logits": logits, "representation": representation}


if __name__ == "__main__":
    root = jax.random.PRNGKey(0)
    pkey, tkey = jax.random.split(root)
    params = init_params(pkey)
    packed = pack_params(params)

    B, S = 2, 8
    tokens = jax.random.randint(tkey, (B, S), minval=2, maxval=VOCAB,
                                dtype=jnp.int32)
    tokens = tokens.at[1, 6:].set(PAD_IDX)   # some padding
    tokens = tokens.at[0, 3].set(MASK_IDX)   # masked token (exercises TokenDropout)

    out = jax.jit(rinalmo_forward)(packed, tokens)
    jax.block_until_ready(out["logits"])
    jax.block_until_ready(out["representation"])

    assert out["logits"].shape == (B, S, VOCAB)
    assert out["representation"].shape == (B, S, EMBED_DIM)
    assert bool(jnp.all(jnp.isfinite(out["logits"])))
    assert bool(jnp.all(jnp.isfinite(out["representation"])))
    print("KERNEL_OK")
</pallas_src>

<mosaic_0001>
module attributes {stable_mosaic.version = 11 : i64} {
  func.func @_rinalmo_kernel(%arg0: i32, %arg1: memref<16x32xf32, #tpu.memory_space<vmem>>, %arg2: memref<1x16x16xf32, #tpu.memory_space<vmem>>, %arg3: memref<16x32xf32, #tpu.memory_space<vmem>>, %arg4: memref<16x32xf32, #tpu.memory_space<vmem>>, %arg5: memref<32x32xbf16, #tpu.memory_space<vmem>>, %arg6: memref<4x1x32xf32, #tpu.memory_space<vmem>>, %arg7: memref<1x1x32xf32, #tpu.memory_space<vmem>>, %arg8: memref<1x1x32xf32, #tpu.memory_space<vmem>>, %arg9: memref<1x32x96xbf16, #tpu.memory_space<vmem>>, %arg10: memref<1x1x96xf32, #tpu.memory_space<vmem>>, %arg11: memref<1x32x32xbf16, #tpu.memory_space<vmem>>, %arg12: memref<1x1x32xf32, #tpu.memory_space<vmem>>, %arg13: memref<1x1x32xf32, #tpu.memory_space<vmem>>, %arg14: memref<1x1x32xf32, #tpu.memory_space<vmem>>, %arg15: memref<1x32x128xbf16, #tpu.memory_space<vmem>>, %arg16: memref<1x1x128xf32, #tpu.memory_space<vmem>>, %arg17: memref<1x64x32xbf16, #tpu.memory_space<vmem>>, %arg18: memref<1x1x32xf32, #tpu.memory_space<vmem>>, %arg19: memref<1x32xf32, #tpu.memory_space<vmem>>, %arg20: memref<1x32xf32, #tpu.memory_space<vmem>>, %arg21: memref<32x32xbf16, #tpu.memory_space<vmem>>, %arg22: memref<1x32xf32, #tpu.memory_space<vmem>>, %arg23: memref<1x32xf32, #tpu.memory_space<vmem>>, %arg24: memref<1x32xf32, #tpu.memory_space<vmem>>, %arg25: memref<32x128xbf16, #tpu.memory_space<vmem>>, %arg26: memref<1x128xf32, #tpu.memory_space<vmem>>, %arg27: memref<16x32xf32, #tpu.memory_space<vmem>>, %arg28: memref<16x128xf32, #tpu.memory_space<vmem>>, %arg29: memref<16x32xf32, #tpu.memory_space<vmem>>) attributes {dimension_semantics = [#tpu.dimension_semantics<arbitrary>], iteration_bounds = array<i64: 2>, scalar_prefetch = 0 : i64, scratch_operands = 1 : i64, tpu.core_type = #tpu.core_type<tc>, window_params = [{pipeline_mode = #tpu.pipeline_mode<synchronous>, transform_indices = @transform_0, window_bounds = array<i64: 16, 32>}, {pipeline_mode = #tpu.pipeline_mode<synchronous>, transform_indices = @transform_1, window_bounds = array<i64: 1, 16, 16>}, {pipeline_mode = #tpu.pipeline_mode<synchronous>, transform_indices = @transform_2, window_bounds = array<i64: 16, 32>}, {pipeline_mode = #tpu.pipeline_mode<synchronous>, transform_indices = @transform_3, window_bounds = array<i64: 16, 32>}, {pipeline_mode = #tpu.pipeline_mode<synchronous>, transform_indices = @transform_4, window_bounds = array<i64: 32, 32>}, {pipeline_mode = #tpu.pipeline_mode<synchronous>, transform_indices = @transform_5, window_bounds = array<i64: 4, 1, 32>}, {transform_indices = @transform_6, window_bounds = array<i64: 1, 1, 32>}, {transform_indices = @transform_7, window_bounds = array<i64: 1, 1, 32>}, {transform_indices = @transform_8, window_bounds = array<i64: 1, 32, 96>}, {transform_indices = @transform_9, window_bounds = array<i64: 1, 1, 96>}, {transform_indices = @transform_10, window_bounds = array<i64: 1, 32, 32>}, {transform_indices = @transform_11, window_bounds = array<i64: 1, 1, 32>}, {transform_indices = @transform_12, window_bounds = array<i64: 1, 1, 32>}, {transform_indices = @transform_13, window_bounds = array<i64: 1, 1, 32>}, {transform_indices = @transform_14, window_bounds = array<i64: 1, 32, 128>}, {transform_indices = @transform_15, window_bounds = array<i64: 1, 1, 128>}, {transform_indices = @transform_16, window_bounds = array<i64: 1, 64, 32>}, {transform_indices = @transform_17, window_bounds = array<i64: 1, 1, 32>}, {pipeline_mode = #tpu.pipeline_mode<synchronous>, transform_indices = @transform_18, window_bounds = array<i64: 1, 32>}, {pipeline_mode = #tpu.pipeline_mode<synchronous>, transform_indices = @transform_19, window_bounds = array<i64: 1, 32>}, {pipeline_mode = #tpu.pipeline_mode<synchronous>, transform_indices = @transform_20, window_bounds = array<i64: 32, 32>}, {pipeline_mode = #tpu.pipeline_mode<synchronous>, transform_indices = @transform_21, window_bounds = array<i64: 1, 32>}, {pipeline_mode = #tpu.pipeline_mode<synchronous>, transform_indices = @transform_22, window_bounds = array<i64: 1, 32>}, {pipeline_mode = #tpu.pipeline_mode<synchronous>, transform_indices = @transform_23, window_bounds = array<i64: 1, 32>}, {pipeline_mode = #tpu.pipeline_mode<synchronous>, transform_indices = @transform_24, window_bounds = array<i64: 32, 128>}, {pipeline_mode = #tpu.pipeline_mode<synchronous>, transform_indices = @transform_25, window_bounds = array<i64: 1, 128>}, {pipeline_mode = #tpu.pipeline_mode<synchronous>, transform_indices = @transform_26, window_bounds = array<i64: 16, 32>}, {pipeline_mode = #tpu.pipeline_mode<synchronous>, transform_indices = @transform_27, window_bounds = array<i64: 16, 128>}]} {
    %c0_i32 = arith.constant 0 : i32
    %0 = arith.cmpi eq, %arg0, %c0_i32 : i32
    %1 = arith.extui %0 : i1 to i32
    %c0_i32_0 = arith.constant 0 : i32
    %2 = arith.cmpi ne, %1, %c0_i32_0 : i32
    scf.if %2 {
      %c0_77 = arith.constant 0 : index
      %c0_78 = arith.constant 0 : index
      %153 = vector.load %arg1[%c0_77, %c0_78] : memref<16x32xf32, #tpu.memory_space<vmem>>, vector<16x32xf32>
      %c0_79 = arith.constant 0 : index
      %c0_80 = arith.constant 0 : index
      %154 = vector.load %arg29[%c0_79, %c0_80] : memref<16x32xf32, #tpu.memory_space<vmem>>, vector<16x32xf32>
      tpu.vector_store %arg29[%c0_79, %c0_80], %153 {strides = array<i32>} : memref<16x32xf32, #tpu.memory_space<vmem>>, vector<16x32xf32>,
    } else {
    }
    %c0 = arith.constant 0 : index
    %c0_1 = arith.constant 0 : index
    %3 = vector.load %arg29[%c0, %c0_1] : memref<16x32xf32, #tpu.memory_space<vmem>>, vector<16x32xf32>
    %c0_2 = arith.constant 0 : index
    %c0_3 = arith.constant 0 : index
    %c0_4 = arith.constant 0 : index
    %4 = vector.load %arg7[%c0_2, %c0_3, %c0_4] : memref<1x1x32xf32, #tpu.memory_space<vmem>>, vector<1x1x32xf32>
    %5 = vector.shape_cast %4 : vector<1x1x32xf32> to vector<1x32xf32>
    %c0_5 = arith.constant 0 : index
    %c0_6 = arith.constant 0 : index
    %c0_7 = arith.constant 0 : index
    %6 = vector.load %arg8[%c0_5, %c0_6, %c0_7] : memref<1x1x32xf32, #tpu.memory_space<vmem>>, vector<1x1x32xf32>
    %7 = vector.shape_cast %6 : vector<1x1x32xf32> to vector<1x32xf32>
    %cst = arith.constant dense<0.000000e+00> : vector<16xf32>
    %8 = vector.multi_reduction <add>, %3, %cst [1] : vector<16x32xf32> to vector<16xf32>
    %9 = vector.shape_cast %8 : vector<16xf32> to vector<16x1xf32>
    %cst_8 = arith.constant 3.200000e+01 : f32
    %10 = vector.broadcast %cst_8 : f32 to vector<16x1xf32>
    %11 = arith.divf %9, %10 : vector<16x1xf32>
    %12 = vector.broadcast %11 : vector<16x1xf32> to vector<16x32xf32>
    %13 = arith.subf %3, %12 : vector<16x32xf32>
    %14 = arith.mulf %13, %13 : vector<16x32xf32>
    %cst_9 = arith.constant dense<0.000000e+00> : vector<16xf32>
    %15 = vector.multi_reduction <add>, %14, %cst_9 [1] : vector<16x32xf32> to vector<16xf32>
    %16 = vector.shape_cast %15 : vector<16xf32> to vector<16x1xf32>
    %cst_10 = arith.constant 3.200000e+01 : f32
    %17 = vector.broadcast %cst_10 : f32 to vector<16x1xf32>
    %18 = arith.divf %16, %17 : vector<16x1xf32>
    %19 = vector.broadcast %11 : vector<16x1xf32> to vector<16x32xf32>
    %20 = arith.subf %3, %19 : vector<16x32xf32>
    %cst_11 = arith.constant 9.99999974E-6 : f32
    %21 = vector.broadcast %cst_11 : f32 to vector<16x1xf32>
    %22 = arith.addf %18, %21 : vector<16x1xf32>
    %23 = math.rsqrt %22 : vector<16x1xf32>
    %24 = vector.broadcast %23 : vector<16x1xf32> to vector<16x32xf32>
    %25 = arith.mulf %20, %24 : vector<16x32xf32>
    %26 = vector.broadcast %5 : vector<1x32xf32> to vector<16x32xf32>
    %27 = arith.mulf %25, %26 : vector<16x32xf32>
    %28 = vector.broadcast %7 : vector<1x32xf32> to vector<16x32xf32>
    %29 = arith.addf %27, %28 : vector<16x32xf32>
    %c0_12 = arith.constant 0 : index
    %c0_13 = arith.constant 0 : index
    %c0_14 = arith.constant 0 : index
    %30 = vector.load %arg9[%c0_12, %c0_13, %c0_14] : memref<1x32x96xbf16, #tpu.memory_space<vmem>>, vector<1x32x96xbf16>
    %31 = vector.shape_cast %30 : vector<1x32x96xbf16> to vector<32x96xbf16>
    %32 = arith.truncf %29 : vector<16x32xf32> to vector<16x32xbf16>
    %cst_15 = arith.constant dense<0.000000e+00> : vector<16x96xf32>
    %33 = tpu.matmul %32, %31, %cst_15 {dimension_numbers = #tpu.dot_dimension_numbers<[1], [0], [0], [1], [0, 0, 1, 1], [], []>} : vector<16x32xbf16>, vector<32x96xbf16>, vector<16x96xf32> -> vector<16x96xf32>
    %c0_16 = arith.constant 0 : index
    %c0_17 = arith.constant 0 : index
    %c0_18 = arith.constant 0 : index
    %34 = vector.load %arg10[%c0_16, %c0_17, %c0_18] : memref<1x1x96xf32, #tpu.memory_space<vmem>>, vector<1x1x96xf32>
    %35 = vector.shape_cast %34 : vector<1x1x96xf32> to vector<1x96xf32>
    %36 = vector.broadcast %35 : vector<1x96xf32> to vector<16x96xf32>
    %37 = arith.addf %33, %36 : vector<16x96xf32>
    %38 = vector.extract_strided_slice %37 {offsets = [0, 0], sizes = [16, 32], strides = [1, 1]} : vector<16x96xf32> to vector<16x32xf32>
    %39 = vector.extract_strided_slice %37 {offsets = [0, 32], sizes = [16, 32], strides = [1, 1]} : vector<16x96xf32> to vector<16x32xf32>
    %40 = vector.extract_strided_slice %37 {offsets = [0, 64], sizes = [16, 32], strides = [1, 1]} : vector<16x96xf32> to vector<16x32xf32>
    %c0_19 = arith.constant 0 : index
    %c0_20 = arith.constant 0 : index
    %41 = vector.load %arg3[%c0_19, %c0_20] : memref<16x32xf32, #tpu.memory_space<vmem>>, vector<16x32xf32>
    %c0_21 = arith.constant 0 : index
    %c0_22 = arith.constant 0 : index
    %42 = vector.load %arg4[%c0_21, %c0_22] : memref<16x32xf32, #tpu.memory_space<vmem>>, vector<16x32xf32>
    %c0_23 = arith.constant 0 : index
    %c0_24 = arith.constant 0 : index
    %43 = vector.load %arg5[%c0_23, %c0_24] : memref<32x32xbf16, #tpu.memory_space<vmem>>, vector<32x32xbf16>
    %44 = arith.truncf %38 : vector<16x32xf32> to vector<16x32xbf16>
    %cst_25 = arith.constant dense<0.000000e+00> : vector<16x32xf32>
    %45 = tpu.matmul %44, %43, %cst_25 {dimension_numbers = #tpu.dot_dimension_numbers<[1], [0], [0], [1], [0, 0, 1, 1], [], []>} : vector<16x32xbf16>, vector<32x32xbf16>, vector<16x32xf32> -> vector<16x32xf32>
    %46 = arith.mulf %38, %41 : vector<16x32xf32>
    %47 = arith.mulf %45, %42 : vector<16x32xf32>
    %48 = arith.addf %46, %47 : vector<16x32xf32>
    %cst_26 = arith.constant 0.353553385 : f32
    %49 = vector.broadcast %cst_26 : f32 to vector<16x32xf32>
    %50 = arith.mulf %48, %49 : vector<16x32xf32>
    %c0_27 = arith.constant 0 : index
    %c0_28 = arith.constant 0 : index
    %51 = vector.load %arg5[%c0_27, %c0_28] : memref<32x32xbf16, #tpu.memory_space<vmem>>, vector<32x32xbf16>
    %52 = arith.truncf %39 : vector<16x32xf32> to vector<16x32xbf16>
    %cst_29 = arith.constant dense<0.000000e+00> : vector<16x32xf32>
    %53 = tpu.matmul %52, %51, %cst_29 {dimension_numbers = #tpu.dot_dimension_numbers<[1], [0], [0], [1], [0, 0, 1, 1], [], []>} : vector<16x32xbf16>, vector<32x32xbf16>, vector<16x32xf32> -> vector<16x32xf32>
    %54 = arith.mulf %39, %41 : vector<16x32xf32>
    %55 = arith.mulf %53, %42 : vector<16x32xf32>
    %56 = arith.addf %54, %55 : vector<16x32xf32>
    %c0_30 = arith.constant 0 : index
    %c0_31 = arith.constant 0 : index
    %c0_32 = arith.constant 0 : index
    %57 = vector.load %arg6[%c0_30, %c0_31, %c0_32] : memref<4x1x32xf32, #tpu.memory_space<vmem>>, vector<4x1x32xf32>
    %58 = vector.shape_cast %50 : vector<16x32xf32> to vector<1x16x32xf32>
    %59 = vector.broadcast %58 : vector<1x16x32xf32> to vector<4x16x32xf32>
    %60 = vector.broadcast %57 : vector<4x1x32xf32> to vector<4x16x32xf32>
    %61 = arith.mulf %59, %60 : vector<4x16x32xf32>
    %62 = arith.truncf %61 : vector<4x16x32xf32> to vector<4x16x32xbf16>
    %63 = arith.truncf %56 : vector<16x32xf32> to vector<16x32xbf16>
    %64 = vector.shape_cast %63 : vector<16x32xbf16> to vector<1x16x32xbf16>
    %65 = vector.broadcast %64 : vector<1x16x32xbf16> to vector<4x16x32xbf16>
    %66 = arith.truncf %40 : vector<16x32xf32> to vector<16x32xbf16>
    %67 = vector.shape_cast %66 : vector<16x32xbf16> to vector<1x16x32xbf16>
    %68 = vector.broadcast %67 : vector<1x16x32xbf16> to vector<4x16x32xbf16>
    "tpu.trace_start"() <{level = 10 : i32, message = "hqd,hkd->hqk"}> : () -> ()
    %cst_33 = arith.constant dense<0.000000e+00> : vector<4x16x16xf32>
    %69 = tpu.matmul %62, %65, %cst_33 {dimension_numbers = #tpu.dot_dimension_numbers<[2], [2], [1], [1], [0, 0, 0, 1, 1, 1], [0], [0]>} : vector<4x16x32xbf16>, vector<4x16x32xbf16>, vector<4x16x16xf32> -> vector<4x16x16xf32>
    "tpu.trace_stop"() : () -> ()
    %c0_34 = arith.constant 0 : index
    %c0_35 = arith.constant 0 : index
    %c0_36 = arith.constant 0 : index
    %70 = vector.load %arg2[%c0_34, %c0_35, %c0_36] : memref<1x16x16xf32, #tpu.memory_space<vmem>>, vector<1x16x16xf32>
    %71 = vector.broadcast %70 : vector<1x16x16xf32> to vector<4x16x16xf32>
    %72 = arith.addf %69, %71 : vector<4x16x16xf32>
    %cst_37 = arith.constant dense<0xFF800000> : vector<4x16xf32>
    %73 = vector.multi_reduction <maximumf>, %72, %cst_37 [2] : vector<4x16x16xf32> to vector<4x16xf32>
    %74 = vector.shape_cast %73 : vector<4x16xf32> to vector<4x16x1xf32>
    %75 = vector.broadcast %74 : vector<4x16x1xf32> to vector<4x16x16xf32>
    %76 = arith.subf %72, %75 : vector<4x16x16xf32>
    %77 = math.exp %76 : vector<4x16x16xf32>
    %cst_38 = arith.constant dense<0.000000e+00> : vector<4x16xf32>
    %78 = vector.multi_reduction <add>, %77, %cst_38 [2] : vector<4x16x16xf32> to vector<4x16xf32>
    %79 = vector.shape_cast %78 : vector<4x16xf32> to vector<4x16x1xf32>
    %80 = tpu.reciprocal %79 {approx = true} : vector<4x16x1xf32> -> vector<4x16x1xf32>
    %81 = vector.broadcast %80 : vector<4x16x1xf32> to vector<4x16x16xf32>
    %82 = arith.mulf %77, %81 : vector<4x16x16xf32>
    %83 = arith.truncf %82 : vector<4x16x16xf32> to vector<4x16x16xbf16>
    "tpu.trace_start"() <{level = 10 : i32, message = "hqk,hkd->hqd"}> : () -> ()
    %cst_39 = arith.constant dense<0.000000e+00> : vector<4x16x32xf32>
    %84 = tpu.matmul %83, %68, %cst_39 {dimension_numbers = #tpu.dot_dimension_numbers<[2], [1], [1], [2], [0, 0, 0, 1, 1, 2], [0], [0]>} : vector<4x16x16xbf16>, vector<4x16x32xbf16>, vector<4x16x32xf32> -> vector<4x16x32xf32>
    "tpu.trace_stop"() : () -> ()
    %85 = vector.broadcast %57 : vector<4x1x32xf32> to vector<4x16x32xf32>
    %86 = arith.mulf %84, %85 : vector<4x16x32xf32>
    %cst_40 = arith.constant dense<0.000000e+00> : vector<16x32xf32>
    %87 = vector.multi_reduction <add>, %86, %cst_40 [0] : vector<4x16x32xf32> to vector<16x32xf32>
    %c0_41 = arith.constant 0 : index
    %c0_42 = arith.constant 0 : index
    %c0_43 = arith.constant 0 : index
    %88 = vector.load %arg11[%c0_41, %c0_42, %c0_43] : memref<1x32x32xbf16, #tpu.memory_space<vmem>>, vector<1x32x32xbf16>
    %89 = vector.shape_cast %88 : vector<1x32x32xbf16> to vector<32x32xbf16>
    %90 = arith.truncf %87 : vector<16x32xf32> to vector<16x32xbf16>
    %cst_44 = arith.constant dense<0.000000e+00> : vector<16x32xf32>
    %91 = tpu.matmul %90, %89, %cst_44 {dimension_numbers = #tpu.dot_dimension_numbers<[1], [0], [0], [1], [0, 0, 1, 1], [], []>} : vector<16x32xbf16>, vector<32x32xbf16>, vector<16x32xf32> -> vector<16x32xf32>
    %92 = arith.addf %3, %91 : vector<16x32xf32>
    %c0_45 = arith.constant 0 : index
    %c0_46 = arith.constant 0 : index
    %c0_47 = arith.constant 0 : index
    %93 = vector.load %arg12[%c0_45, %c0_46, %c0_47] : memref<1x1x32xf32, #tpu.memory_space<vmem>>, vector<1x1x32xf32>
    %94 = vector.shape_cast %93 : vector<1x1x32xf32> to vector<1x32xf32>
    %95 = vector.broadcast %94 : vector<1x32xf32> to vector<16x32xf32>
    %96 = arith.addf %92, %95 : vector<16x32xf32>
    %c0_48 = arith.constant 0 : index
    %c0_49 = arith.constant 0 : index
    %c0_50 = arith.constant 0 : index
    %97 = vector.load %arg13[%c0_48, %c0_49, %c0_50] : memref<1x1x32xf32, #tpu.memory_space<vmem>>, vector<1x1x32xf32>
    %98 = vector.shape_cast %97 : vector<1x1x32xf32> to vector<1x32xf32>
    %c0_51 = arith.constant 0 : index
    %c0_52 = arith.constant 0 : index
    %c0_53 = arith.constant 0 : index
    %99 = vector.load %arg14[%c0_51, %c0_52, %c0_53] : memref<1x1x32xf32, #tpu.memory_space<vmem>>, vector<1x1x32xf32>
    %100 = vector.shape_cast %99 : vector<1x1x32xf32> to vector<1x32xf32>
    %cst_54 = arith.constant dense<0.000000e+00> : vector<16xf32>
    %101 = vector.multi_reduction <add>, %96, %cst_54 [1] : vector<16x32xf32> to vector<16xf32>
    %102 = vector.shape_cast %101 : vector<16xf32> to vector<16x1xf32>
    %cst_55 = arith.constant 3.200000e+01 : f32
    %103 = vector.broadcast %cst_55 : f32 to vector<16x1xf32>
    %104 = arith.divf %102, %103 : vector<16x1xf32>
    %105 = vector.broadcast %104 : vector<16x1xf32> to vector<16x32xf32>
    %106 = arith.subf %96, %105 : vector<16x32xf32>
    %107 = arith.mulf %106, %106 : vector<16x32xf32>
    %cst_56 = arith.constant dense<0.000000e+00> : vector<16xf32>
    %108 = vector.multi_reduction <add>, %107, %cst_56 [1] : vector<16x32xf32> to vector<16xf32>
    %109 = vector.shape_cast %108 : vector<16xf32> to vector<16x1xf32>
    %cst_57 = arith.constant 3.200000e+01 : f32
    %110 = vector.broadcast %cst_57 : f32 to vector<16x1xf32>
    %111 = arith.divf %109, %110 : vector<16x1xf32>
    %112 = vector.broadcast %104 : vector<16x1xf32> to vector<16x32xf32>
    %113 = arith.subf %96, %112 : vector<16x32xf32>
    %cst_58 = arith.constant 9.99999974E-6 : f32
    %114 = vector.broadcast %cst_58 : f32 to vector<16x1xf32>
    %115 = arith.addf %111, %114 : vector<16x1xf32>
    %116 = math.rsqrt %115 : vector<16x1xf32>
    %117 = vector.broadcast %116 : vector<16x1xf32> to vector<16x32xf32>
    %118 = arith.mulf %113, %117 : vector<16x32xf32>
    %119 = vector.broadcast %98 : vector<1x32xf32> to vector<16x32xf32>
    %120 = arith.mulf %118, %119 : vector<16x32xf32>
    %121 = vector.broadcast %100 : vector<1x32xf32> to vector<16x32xf32>
    %122 = arith.addf %120, %121 : vector<16x32xf32>
    %c0_59 = arith.constant 0 : index
    %c0_60 = arith.constant 0 : index
    %c0_61 = arith.constant 0 : index
    %123 = vector.load %arg15[%c0_59, %c0_60, %c0_61] : memref<1x32x128xbf16, #tpu.memory_space<vmem>>, vector<1x32x128xbf16>
    %124 = vector.shape_cast %123 : vector<1x32x128xbf16> to vector<32x128xbf16>
    %125 = arith.truncf %122 : vector<16x32xf32> to vector<16x32xbf16>
    %cst_62 = arith.constant dense<0.000000e+00> : vector<16x128xf32>
    %126 = tpu.matmul %125, %124, %cst_62 {dimension_numbers = #tpu.dot_dimension_numbers<[1], [0], [0], [1], [0, 0, 1, 1], [], []>} : vector<16x32xbf16>, vector<32x128xbf16>, vector<16x128xf32> -> vector<16x128xf32>
    %c0_63 = arith.constant 0 : index
    %c0_64 = arith.constant 0 : index
    %c0_65 = arith.constant 0 : index
    %127 = vector.load %arg16[%c0_63, %c0_64, %c0_65] : memref<1x1x128xf32, #tpu.memory_space<vmem>>, vector<1x1x128xf32>
    %128 = vector.shape_cast %127 : vector<1x1x128xf32> to vector<1x128xf32>
    %129 = vector.broadcast %128 : vector<1x128xf32> to vector<16x128xf32>
    %130 = arith.addf %126, %129 : vector<16x128xf32>
    %131 = vector.extract_strided_slice %130 {offsets = [0, 0], sizes = [16, 64], strides = [1, 1]} : vector<16x128xf32> to vector<16x64xf32>
    %132 = vector.extract_strided_slice %130 {offsets = [0, 64], sizes = [16, 64], strides = [1, 1]} : vector<16x128xf32> to vector<16x64xf32>
    %133 = arith.negf %131 : vector<16x64xf32>
    %134 = math.exp %133 : vector<16x64xf32>
    %cst_66 = arith.constant 1.000000e+00 : f32
    %135 = vector.broadcast %cst_66 : f32 to vector<16x64xf32>
    %136 = arith.addf %135, %134 : vector<16x64xf32>
    %137 = arith.divf %135, %136 : vector<16x64xf32>
    %138 = arith.mulf %131, %137 : vector<16x64xf32>
    %139 = arith.mulf %138, %132 : vector<16x64xf32>
    %c0_67 = arith.constant 0 : index
    %c0_68 = arith.constant 0 : index
    %c0_69 = arith.constant 0 : index
    %140 = vector.load %arg17[%c0_67, %c0_68, %c0_69] : memref<1x64x32xbf16, #tpu.memory_space<vmem>>, vector<1x64x32xbf16>
    %141 = vector.shape_cast %140 : vector<1x64x32xbf16> to vector<64x32xbf16>
    %142 = arith.truncf %139 : vector<16x64xf32> to vector<16x64xbf16>
    %cst_70 = arith.constant dense<0.000000e+00> : vector<16x32xf32>
    %143 = tpu.matmul %142, %141, %cst_70 {dimension_numbers = #tpu.dot_dimension_numbers<[1], [0], [0], [1], [0, 0, 1, 1], [], []>} : vector<16x64xbf16>, vector<64x32xbf16>, vector<16x32xf32> -> vector<16x32xf32>
    %144 = arith.addf %96, %143 : vector<16x32xf32>
    %c0_71 = arith.constant 0 : index
    %c0_72 = arith.constant 0 : index
    %c0_73 = arith.constant 0 : index
    %145 = vector.load %arg18[%c0_71, %c0_72, %c0_73] : memref<1x1x32xf32, #tpu.memory_space<vmem>>, vector<1x1x32xf32>
    %146 = vector.shape_cast %145 : vector<1x1x32xf32> to vector<1x32xf32>
    %147 = vector.broadcast %146 : vector<1x32xf32> to vector<16x32xf32>
    %148 = arith.addf %144, %147 : vector<16x32xf32>
    %c0_74 = arith.constant 0 : index
    %c0_75 = arith.constant 0 : index
    %149 = vector.load %arg29[%c0_74, %c0_75] : memref<16x32xf32, #tpu.memory_space<vmem>>, vector<16x32xf32>
    tpu.vector_store %arg29[%c0_74, %c0_75], %148 {strides = array<i32>} : memref<16x32xf32, #tpu.memory_space<vmem>>, vector<16x32xf32>,
    %c1_i32 = arith.constant 1 : i32
    %150 = arith.cmpi eq, %arg0, %c1_i32 : i32
    %151 = arith.extui %150 : i1 to i32
    %c0_i32_76 = arith.constant 0 : i32
    %152 = arith.cmpi ne, %151, %c0_i32_76 : i32
    scf.if %152 {
      %c0_77 = arith.constant 0 : index
      %c0_78 = arith.constant 0 : index
      %153 = vector.load %arg19[%c0_77, %c0_78] : memref<1x32xf32, #tpu.memory_space<vmem>>, vector<1x32xf32>
      %c0_79 = arith.constant 0 : index
      %c0_80 = arith.constant 0 : index
      %154 = vector.load %arg20[%c0_79, %c0_80] : memref<1x32xf32, #tpu.memory_space<vmem>>, vector<1x32xf32>
      %cst_81 = arith.constant dense<0.000000e+00> : vector<16xf32>
      %155 = vector.multi_reduction <add>, %148, %cst_81 [1] : vector<16x32xf32> to vector<16xf32>
      %156 = vector.shape_cast %155 : vector<16xf32> to vector<16x1xf32>
      %cst_82 = arith.constant 3.200000e+01 : f32
      %157 = vector.broadcast %cst_82 : f32 to vector<16x1xf32>
      %158 = arith.divf %156, %157 : vector<16x1xf32>
      %159 = vector.broadcast %158 : vector<16x1xf32> to vector<16x32xf32>
      %160 = arith.subf %148, %159 : vector<16x32xf32>
      %161 = arith.mulf %160, %160 : vector<16x32xf32>
      %cst_83 = arith.constant dense<0.000000e+00> : vector<16xf32>
      %162 = vector.multi_reduction <add>, %161, %cst_83 [1] : vector<16x32xf32> to vector<16xf32>
      %163 = vector.shape_cast %162 : vector<16xf32> to vector<16x1xf32>
      %cst_84 = arith.constant 3.200000e+01 : f32
      %164 = vector.broadcast %cst_84 : f32 to vector<16x1xf32>
      %165 = arith.divf %163, %164 : vector<16x1xf32>
      %166 = vector.broadcast %158 : vector<16x1xf32> to vector<16x32xf32>
      %167 = arith.subf %148, %166 : vector<16x32xf32>
      %cst_85 = arith.constant 9.99999974E-6 : f32
      %168 = vector.broadcast %cst_85 : f32 to vector<16x1xf32>
      %169 = arith.addf %165, %168 : vector<16x1xf32>
      %170 = math.rsqrt %169 : vector<16x1xf32>
      %171 = vector.broadcast %170 : vector<16x1xf32> to vector<16x32xf32>
      %172 = arith.mulf %167, %171 : vector<16x32xf32>
      %173 = vector.broadcast %153 : vector<1x32xf32> to vector<16x32xf32>
      %174 = arith.mulf %172, %173 : vector<16x32xf32>
      %175 = vector.broadcast %154 : vector<1x32xf32> to vector<16x32xf32>
      %176 = arith.addf %174, %175 : vector<16x32xf32>
      %c0_86 = arith.constant 0 : index
      %c0_87 = arith.constant 0 : index
      %177 = vector.load %arg27[%c0_86, %c0_87] : memref<16x32xf32, #tpu.memory_space<vmem>>, vector<16x32xf32>
      tpu.vector_store %arg27[%c0_86, %c0_87], %176 {strides = array<i32>} : memref<16x32xf32, #tpu.memory_space<vmem>>, vector<16x32xf32>,
      %c0_88 = arith.constant 0 : index
      %c0_89 = arith.constant 0 : index
      %178 = vector.load %arg21[%c0_88, %c0_89] : memref<32x32xbf16, #tpu.memory_space<vmem>>, vector<32x32xbf16>
      %179 = arith.truncf %176 : vector<16x32xf32> to vector<16x32xbf16>
      %cst_90 = arith.constant dense<0.000000e+00> : vector<16x32xf32>
      %180 = tpu.matmul %179, %178, %cst_90 {dimension_numbers = #tpu.dot_dimension_numbers<[1], [0], [0], [1], [0, 0, 1, 1], [], []>} : vector<16x32xbf16>, vector<32x32xbf16>, vector<16x32xf32> -> vector<16x32xf32>
      %c0_91 = arith.constant 0 : index
      %c0_92 = arith.constant 0 : index
      %181 = vector.load %arg22[%c0_91, %c0_92] : memref<1x32xf32, #tpu.memory_space<vmem>>, vector<1x32xf32>
      %182 = vector.broadcast %181 : vector<1x32xf32> to vector<16x32xf32>
      %183 = arith.addf %180, %182 : vector<16x32xf32>
      %184 = arith.mulf %183, %183 : vector<16x32xf32>
      %185 = arith.mulf %183, %184 : vector<16x32xf32>
      %cst_93 = arith.constant 4.471500e-02 : f32
      %186 = vector.broadcast %cst_93 : f32 to vector<16x32xf32>
      %187 = arith.mulf %186, %185 : vector<16x32xf32>
      %188 = arith.addf %183, %187 : vector<16x32xf32>
      %cst_94 = arith.constant 0.797884583 : f32
      %189 = vector.broadcast %cst_94 : f32 to vector<16x32xf32>
      %190 = arith.mulf %189, %188 : vector<16x32xf32>
      %191 = math.tanh %190 : vector<16x32xf32>
      %cst_95 = arith.constant 1.000000e+00 : f32
      %192 = vector.broadcast %cst_95 : f32 to vector<16x32xf32>
      %193 = arith.addf %192, %191 : vector<16x32xf32>
      %cst_96 = arith.constant 5.000000e-01 : f32
      %194 = vector.broadcast %cst_96 : f32 to vector<16x32xf32>
      %195 = arith.mulf %194, %193 : vector<16x32xf32>
      %196 = arith.mulf %183, %195 : vector<16x32xf32>
      %c0_97 = arith.constant 0 : index
      %c0_98 = arith.constant 0 : index
      %197 = vector.load %arg23[%c0_97, %c0_98] : memref<1x32xf32, #tpu.memory_space<vmem>>, vector<1x32xf32>
      %c0_99 = arith.constant 0 : index
      %c0_100 = arith.constant 0 : index
      %198 = vector.load %arg24[%c0_99, %c0_100] : memref<1x32xf32, #tpu.memory_space<vmem>>, vector<1x32xf32>
      %cst_101 = arith.constant dense<0.000000e+00> : vector<16xf32>
      %199 = vector.multi_reduction <add>, %196, %cst_101 [1] : vector<16x32xf32> to vector<16xf32>
      %200 = vector.shape_cast %199 : vector<16xf32> to vector<16x1xf32>
      %cst_102 = arith.constant 3.200000e+01 : f32
      %201 = vector.broadcast %cst_102 : f32 to vector<16x1xf32>
      %202 = arith.divf %200, %201 : vector<16x1xf32>
      %203 = vector.broadcast %202 : vector<16x1xf32> to vector<16x32xf32>
      %204 = arith.subf %196, %203 : vector<16x32xf32>
      %205 = arith.mulf %204, %204 : vector<16x32xf32>
      %cst_103 = arith.constant dense<0.000000e+00> : vector<16xf32>
      %206 = vector.multi_reduction <add>, %205, %cst_103 [1] : vector<16x32xf32> to vector<16xf32>
      %207 = vector.shape_cast %206 : vector<16xf32> to vector<16x1xf32>
      %cst_104 = arith.constant 3.200000e+01 : f32
      %208 = vector.broadcast %cst_104 : f32 to vector<16x1xf32>
      %209 = arith.divf %207, %208 : vector<16x1xf32>
      %210 = vector.broadcast %202 : vector<16x1xf32> to vector<16x32xf32>
      %211 = arith.subf %196, %210 : vector<16x32xf32>
      %cst_105 = arith.constant 9.99999974E-6 : f32
      %212 = vector.broadcast %cst_105 : f32 to vector<16x1xf32>
      %213 = arith.addf %209, %212 : vector<16x1xf32>
      %214 = math.rsqrt %213 : vector<16x1xf32>
      %215 = vector.broadcast %214 : vector<16x1xf32> to vector<16x32xf32>
      %216 = arith.mulf %211, %215 : vector<16x32xf32>
      %217 = vector.broadcast %197 : vector<1x32xf32> to vector<16x32xf32>
      %218 = arith.mulf %216, %217 : vector<16x32xf32>
      %219 = vector.broadcast %198 : vector<1x32xf32> to vector<16x32xf32>
      %220 = arith.addf %218, %219 : vector<16x32xf32>
      %c0_106 = arith.constant 0 : index
      %c0_107 = arith.constant 0 : index
      %221 = vector.load %arg25[%c0_106, %c0_107] : memref<32x128xbf16, #tpu.memory_space<vmem>>, vector<32x128xbf16>
      %222 = arith.truncf %220 : vector<16x32xf32> to vector<16x32xbf16>
      %cst_108 = arith.constant dense<0.000000e+00> : vector<16x128xf32>
      %223 = tpu.matmul %222, %221, %cst_108 {dimension_numbers = #tpu.dot_dimension_numbers<[1], [0], [0], [1], [0, 0, 1, 1], [], []>} : vector<16x32xbf16>, vector<32x128xbf16>, vector<16x128xf32> -> vector<16x128xf32>
      %c0_109 = arith.constant 0 : index
      %c0_110 = arith.constant 0 : index
      %224 = vector.load %arg26[%c0_109, %c0_110] : memref<1x128xf32, #tpu.memory_space<vmem>>, vector<1x128xf32>
      %225 = vector.broadcast %224 : vector<1x128xf32> to vector<16x128xf32>
      %226 = arith.addf %223, %225 : vector<16x128xf32>
      %c0_111 = arith.constant 0 : index
      %c0_112 = arith.constant 0 : index
      %227 = vector.load %arg28[%c0_111, %c0_112] : memref<16x128xf32, #tpu.memory_space<vmem>>, vector<16x128xf32>
      tpu.vector_store %arg28[%c0_111, %c0_112], %226 {strides = array<i32>} : memref<16x128xf32, #tpu.memory_space<vmem>>, vector<16x128xf32>,
    } else {
    }
    return
  }
  func.func @transform_0(%arg0: i32) -> (i32, i32) {
    %c0_i32 = arith.constant 0 : i32
    %c0_i32_0 = arith.constant 0 : i32
    %c0_i32_1 = arith.constant 0 : i32
    return %c0_i32, %c0_i32_0 : i32, i32
  }
  func.func @transform_1(%arg0: i32) -> (i32, i32, i32) {
    %c0_i32 = arith.constant 0 : i32
    %c0_i32_0 = arith.constant 0 : i32
    %c0_i32_1 = arith.constant 0 : i32
    %c0_i32_2 = arith.constant 0 : i32
    return %c0_i32, %c0_i32_0, %c0_i32_1 : i32, i32, i32
  }
  func.func @transform_2(%arg0: i32) -> (i32, i32) {
    %c0_i32 = arith.constant 0 : i32
    %c0_i32_0 = arith.constant 0 : i32
    %c0_i32_1 = arith.constant 0 : i32
    return %c0_i32, %c0_i32_0 : i32, i32
  }
  func.func @transform_3(%arg0: i32) -> (i32, i32) {
    %c0_i32 = arith.constant 0 : i32
    %c0_i32_0 = arith.constant 0 : i32
    %c0_i32_1 = arith.constant 0 : i32
    return %c0_i32, %c0_i32_0 : i32, i32
  }
  func.func @transform_4(%arg0: i32) -> (i32, i32) {
    %c0_i32 = arith.constant 0 : i32
    %c0_i32_0 = arith.constant 0 : i32
    %c0_i32_1 = arith.constant 0 : i32
    return %c0_i32, %c0_i32_0 : i32, i32
  }
  func.func @transform_5(%arg0: i32) -> (i32, i32, i32) {
    %c0_i32 = arith.constant 0 : i32
    %c0_i32_0 = arith.constant 0 : i32
    %c0_i32_1 = arith.constant 0 : i32
    %c0_i32_2 = arith.constant 0 : i32
    return %c0_i32, %c0_i32_0, %c0_i32_1 : i32, i32, i32
  }
  func.func @transform_6(%arg0: i32) -> (i32, i32, i32) {
    %c0_i32 = arith.constant 0 : i32
    %c0_i32_0 = arith.constant 0 : i32
    %c0_i32_1 = arith.constant 0 : i32
    return %arg0, %c0_i32, %c0_i32_0 : i32, i32, i32
  }
  func.func @transform_7(%arg0: i32) -> (i32, i32, i32) {
    %c0_i32 = arith.constant 0 : i32
    %c0_i32_0 = arith.constant 0 : i32
    %c0_i32_1 = arith.constant 0 : i32
    return %arg0, %c0_i32, %c0_i32_0 : i32, i32, i32
  }
  func.func @transform_8(%arg0: i32) -> (i32, i32, i32) {
    %c0_i32 = arith.constant 0 : i32
    %c0_i32_0 = arith.constant 0 : i32
    %c0_i32_1 = arith.constant 0 : i32
    return %arg0, %c0_i32, %c0_i32_0 : i32, i32, i32
  }
  func.func @transform_9(%arg0: i32) -> (i32, i32, i32) {
    %c0_i32 = arith.constant 0 : i32
    %c0_i32_0 = arith.constant 0 : i32
    %c0_i32_1 = arith.constant 0 : i32
    return %arg0, %c0_i32, %c0_i32_0 : i32, i32, i32
  }
  func.func @transform_10(%arg0: i32) -> (i32, i32, i32) {
    %c0_i32 = arith.constant 0 : i32
    %c0_i32_0 = arith.constant 0 : i32
    %c0_i32_1 = arith.constant 0 : i32
    return %arg0, %c0_i32, %c0_i32_0 : i32, i32, i32
  }
  func.func @transform_11(%arg0: i32) -> (i32, i32, i32) {
    %c0_i32 = arith.constant 0 : i32
    %c0_i32_0 = arith.constant 0 : i32
    %c0_i32_1 = arith.constant 0 : i32
    return %arg0, %c0_i32, %c0_i32_0 : i32, i32, i32
  }
  func.func @transform_12(%arg0: i32) -> (i32, i32, i32) {
    %c0_i32 = arith.constant 0 : i32
    %c0_i32_0 = arith.constant 0 : i32
    %c0_i32_1 = arith.constant 0 : i32
    return %arg0, %c0_i32, %c0_i32_0 : i32, i32, i32
  }
  func.func @transform_13(%arg0: i32) -> (i32, i32, i32) {
    %c0_i32 = arith.constant 0 : i32
    %c0_i32_0 = arith.constant 0 : i32
    %c0_i32_1 = arith.constant 0 : i32
    return %arg0, %c0_i32, %c0_i32_0 : i32, i32, i32
  }
  func.func @transform_14(%arg0: i32) -> (i32, i32, i32) {
    %c0_i32 = arith.constant 0 : i32
    %c0_i32_0 = arith.constant 0 : i32
    %c0_i32_1 = arith.constant 0 : i32
    return %arg0, %c0_i32, %c0_i32_0 : i32, i32, i32
  }
  func.func @transform_15(%arg0: i32) -> (i32, i32, i32) {
    %c0_i32 = arith.constant 0 : i32
    %c0_i32_0 = arith.constant 0 : i32
    %c0_i32_1 = arith.constant 0 : i32
    return %arg0, %c0_i32, %c0_i32_0 : i32, i32, i32
  }
  func.func @transform_16(%arg0: i32) -> (i32, i32, i32) {
    %c0_i32 = arith.constant 0 : i32
    %c0_i32_0 = arith.constant 0 : i32
    %c0_i32_1 = arith.constant 0 : i32
    return %arg0, %c0_i32, %c0_i32_0 : i32, i32, i32
  }
  func.func @transform_17(%arg0: i32) -> (i32, i32, i32) {
    %c0_i32 = arith.constant 0 : i32
    %c0_i32_0 = arith.constant 0 : i32
    %c0_i32_1 = arith.constant 0 : i32
    return %arg0, %c0_i32, %c0_i32_0 : i32, i32, i32
  }
  func.func @transform_18(%arg0: i32) -> (i32, i32) {
    %c0_i32 = arith.constant 0 : i32
    %c0_i32_0 = arith.constant 0 : i32
    %c0_i32_1 = arith.constant 0 : i32
    return %c0_i32, %c0_i32_0 : i32, i32
  }
  func.func @transform_19(%arg0: i32) -> (i32, i32) {
    %c0_i32 = arith.constant 0 : i32
    %c0_i32_0 = arith.constant 0 : i32
    %c0_i32_1 = arith.constant 0 : i32
    return %c0_i32, %c0_i32_0 : i32, i32
  }
  func.func @transform_20(%arg0: i32) -> (i32, i32) {
    %c0_i32 = arith.constant 0 : i32
    %c0_i32_0 = arith.constant 0 : i32
    %c0_i32_1 = arith.constant 0 : i32
    return %c0_i32, %c0_i32_0 : i32, i32
  }
  func.func @transform_21(%arg0: i32) -> (i32, i32) {
    %c0_i32 = arith.constant 0 : i32
    %c0_i32_0 = arith.constant 0 : i32
    %c0_i32_1 = arith.constant 0 : i32
    return %c0_i32, %c0_i32_0 : i32, i32
  }
  func.func @transform_22(%arg0: i32) -> (i32, i32) {
    %c0_i32 = arith.constant 0 : i32
    %c0_i32_0 = arith.constant 0 : i32
    %c0_i32_1 = arith.constant 0 : i32
    return %c0_i32, %c0_i32_0 : i32, i32
  }
  func.func @transform_23(%arg0: i32) -> (i32, i32) {
    %c0_i32 = arith.constant 0 : i32
    %c0_i32_0 = arith.constant 0 : i32
    %c0_i32_1 = arith.constant 0 : i32
    return %c0_i32, %c0_i32_0 : i32, i32
  }
  func.func @transform_24(%arg0: i32) -> (i32, i32) {
    %c0_i32 = arith.constant 0 : i32
    %c0_i32_0 = arith.constant 0 : i32
    %c0_i32_1 = arith.constant 0 : i32
    return %c0_i32, %c0_i32_0 : i32, i32
  }
  func.func @transform_25(%arg0: i32) -> (i32, i32) {
    %c0_i32 = arith.constant 0 : i32
    %c0_i32_0 = arith.constant 0 : i32
    %c0_i32_1 = arith.constant 0 : i32
    return %c0_i32, %c0_i32_0 : i32, i32
  }
  func.func @transform_26(%arg0: i32) -> (i32, i32) {
    %c0_i32 = arith.constant 0 : i32
    %c0_i32_0 = arith.constant 0 : i32
    %c0_i32_1 = arith.constant 0 : i32
    return %c0_i32, %c0_i32_0 : i32, i32
  }
  func.func @transform_27(%arg0: i32) -> (i32, i32) {
    %c0_i32 = arith.constant 0 : i32
    %c0_i32_0 = arith.constant 0 : i32
    %c0_i32_1 = arith.constant 0 : i32
    return %c0_i32, %c0_i32_0 : i32, i32
  }
}

</mosaic_0001>

<llo_original>
// kernel: rinalmo_forward.1
$region0: #{rinalmo_forward.1}
  #allocation0 [shape = 'u32[]', space=smem, size = 0x4, offset = 0x4, fixed_abs, tag = 'smem constant byte address 0x4 - core index']
  #allocation1 [shape = 'u32[144,128]{1,0:T(1,128)}', space=vmem, size = 0x12000, scoped, tag = 'internal scratch']
  #allocation2 [shape = 'f32[16,32]{1,0:T(8,128)}', space=vmem, size = 0x2000, scoped, tag = 'scratch operand']
  %s0 = inlined_call_operand.vmem [shape: f32[16,32], index: 0, kind: input, shape index: {}]
  %s1 = inlined_call_operand.vmem [shape: f32[1,16,16], index: 1, kind: input, shape index: {}]
  %s2 = inlined_call_operand.vmem [shape: f32[16,32], index: 2, kind: input, shape index: {}]
  %s3 = inlined_call_operand.vmem [shape: f32[16,32], index: 3, kind: input, shape index: {}]
  %s4 = inlined_call_operand.vmem [shape: bf16[32,32], index: 4, kind: input, shape index: {}]
  %s5 = inlined_call_operand.vmem [shape: f32[4,1,32], index: 5, kind: input, shape index: {}]
  %s6 = inlined_call_operand.vmem [shape: f32[2,1,32], index: 6, kind: input, shape index: {}]
  %s7 = inlined_call_operand.vmem [shape: f32[2,1,32], index: 7, kind: input, shape index: {}]
  %s8 = inlined_call_operand.vmem [shape: bf16[2,32,96], index: 8, kind: input, shape index: {}]
  %s9 = inlined_call_operand.vmem [shape: f32[2,1,96], index: 9, kind: input, shape index: {}]
  %s10 = inlined_call_operand.vmem [shape: bf16[2,32,32], index: 10, kind: input, shape index: {}]
  %s11 = inlined_call_operand.vmem [shape: f32[2,1,32], index: 11, kind: input, shape index: {}]
  %s12 = inlined_call_operand.vmem [shape: f32[2,1,32], index: 12, kind: input, shape index: {}]
  %s13 = inlined_call_operand.vmem [shape: f32[2,1,32], index: 13, kind: input, shape index: {}]
  %s14 = inlined_call_operand.vmem [shape: bf16[2,32,128], index: 14, kind: input, shape index: {}]
  %s15 = inlined_call_operand.vmem [shape: f32[2,1,128], index: 15, kind: input, shape index: {}]
  %s16 = inlined_call_operand.vmem [shape: bf16[2,64,32], index: 16, kind: input, shape index: {}]
  %s17 = inlined_call_operand.vmem [shape: f32[2,1,32], index: 17, kind: input, shape index: {}]
  %s18 = inlined_call_operand.vmem [shape: f32[1,32], index: 18, kind: input, shape index: {}]
  %s19 = inlined_call_operand.vmem [shape: f32[1,32], index: 19, kind: input, shape index: {}]
  %s20 = inlined_call_operand.vmem [shape: bf16[32,32], index: 20, kind: input, shape index: {}]
  %s21 = inlined_call_operand.vmem [shape: f32[1,32], index: 21, kind: input, shape index: {}]
  %s22 = inlined_call_operand.vmem [shape: f32[1,32], index: 22, kind: input, shape index: {}]
  %s23 = inlined_call_operand.vmem [shape: f32[1,32], index: 23, kind: input, shape index: {}]
  %s24 = inlined_call_operand.vmem [shape: bf16[32,128], index: 24, kind: input, shape index: {}]
  %s25 = inlined_call_operand.vmem [shape: f32[1,128], index: 25, kind: input, shape index: {}]
  %s26 = inlined_call_operand.hbm [shape: f32[16,32], index: 26, kind: output, shape index: {0}]
  %s27 = inlined_call_operand.vmem [shape: f32[16,128], index: 27, kind: output, shape index: {1}]
  %28 = xla_tuple %s26, %s27
  %s29 = sld [smem:[#allocation0]]
  $region153: #{rinalmo_forward.1} parent=0
    _
  %s31 = ssub.s32 1, %s29
  %s32 = scalar_select 0, %s31, %s29
  $region1: #{rinalmo_forward.1} parent=0
    #allocation3 [shape = 'u8[8192]{0}', space=vmem, size = 0x2000, scoped, tag = 'output window, operand 0, single buffered']
    #allocation4 [shape = 's32[2]{0}', space=sflag, size = 0x8, scoped, tag = 'scoped memory for rinalmo_forward.1']
    %33 = vsyncpa [#allocation4], 0
    loop: start=0, step=1, limit=4
    $region2: #{rinalmo_forward.1} parent=1 // loop_pre_header
      _
    $region3: #{rinalmo_forward.1} parent=1 // loop_header
      %s35 = sphi 0, %s39
      %p36 = scmp.ge.s32.totalorder %s35, 4
      %s43 = sphi 0, %s43
      %s45 = sphi 0, %s43
      %s46 = sphi 0, %s45
      %s60 = sphi 0, %s46
      %s64 = sphi 0, %s64
      %s66 = sphi 0, %s64
      %s67 = sphi 0, %s66
      %s81 = sphi 0, %s67
      %s85 = sphi 0, %s85
      %s87 = sphi 0, %s85
      %s88 = sphi 0, %s87
      %s102 = sphi 0, %s88
      %s106 = sphi 0, %s106
      %s108 = sphi 0, %s106
      %s109 = sphi 0, %s108
      %s123 = sphi 0, %s109
      %s127 = sphi 0, %s127
      %s129 = sphi 0, %s127
      %s130 = sphi 0, %s129
      %s144 = sphi 0, %s130
      %s148 = sphi 0, %s148
      %s150 = sphi 0, %s148
      %s151 = sphi 0, %s150
      %s165 = sphi 0, %s151
      %s171 = sphi 0, %s173
      %s174 = sphi 0, %s171
      %s175 = sphi 0, %s174
      %s191 = sphi 0, %s175
      %s197 = sphi 0, %s199
      %s200 = sphi 0, %s197
      %s201 = sphi 0, %s200
      %s217 = sphi 0, %s201
      %s223 = sphi 0, %s225
      %s226 = sphi 0, %s223
      %s227 = sphi 0, %s226
      %s243 = sphi 0, %s227
      %s249 = sphi 0, %s251
      %s252 = sphi 0, %s249
      %s253 = sphi 0, %s252
      %s269 = sphi 0, %s253
      %s275 = sphi 0, %s277
      %s278 = sphi 0, %s275
      %s279 = sphi 0, %s278
      %s295 = sphi 0, %s279
      %s301 = sphi 0, %s303
      %s304 = sphi 0, %s301
      %s305 = sphi 0, %s304
      %s321 = sphi 0, %s305
      %s327 = sphi 0, %s329
      %s330 = sphi 0, %s327
      %s331 = sphi 0, %s330
      %s347 = sphi 0, %s331
      %s353 = sphi 0, %s355
      %s356 = sphi 0, %s353
      %s357 = sphi 0, %s356
      %s373 = sphi 0, %s357
      %s379 = sphi 0, %s381
      %s382 = sphi 0, %s379
      %s383 = sphi 0, %s382
      %s399 = sphi 0, %s383
      %s405 = sphi 0, %s407
      %s408 = sphi 0, %s405
      %s409 = sphi 0, %s408
      %s425 = sphi 0, %s409
      %s431 = sphi 0, %s433
      %s434 = sphi 0, %s431
      %s435 = sphi 0, %s434
      %s451 = sphi 0, %s435
      %s457 = sphi 0, %s459
      %s460 = sphi 0, %s457
      %s461 = sphi 0, %s460
      %s477 = sphi 0, %s461
      %s481 = sphi 0, %s481
      %s483 = sphi 0, %s481
      %s484 = sphi 0, %s483
      %s498 = sphi 0, %s484
      %s502 = sphi 0, %s502
      %s504 = sphi 0, %s502
      %s505 = sphi 0, %s504
      %s519 = sphi 0, %s505
      %s523 = sphi 0, %s523
      %s525 = sphi 0, %s523
      %s526 = sphi 0, %s525
      %s540 = sphi 0, %s526
      %s544 = sphi 0, %s544
      %s546 = sphi 0, %s544
      %s547 = sphi 0, %s546
      %s561 = sphi 0, %s547
      %s565 = sphi 0, %s565
      %s567 = sphi 0, %s565
      %s568 = sphi 0, %s567
      %s582 = sphi 0, %s568
      %s586 = sphi 0, %s586
      %s588 = sphi 0, %s586
      %s589 = sphi 0, %s588
      %s603 = sphi 0, %s589
      %s607 = sphi 0, %s607
      %s609 = sphi 0, %s607
      %s610 = sphi 0, %s609
      %s624 = sphi 0, %s610
      %s628 = sphi 0, %s628
      %s630 = sphi 0, %s628
      %s631 = sphi 0, %s630
      %s645 = sphi 0, %s631
      %s649 = sphi 0, %s649
      %s651 = sphi 0, %s649
      %s652 = sphi 0, %s651
      %s666 = sphi 0, %s652
      %s670 = sphi 0, %s670
      %s672 = sphi 0, %s670
      %s673 = sphi 0, %s672
      %s687 = sphi 0, %s673
    $region4: #{rinalmo_forward.1} parent=1 // loop_header_branch
      %38 = sbr.rel (%p36) target = $region8
    $region5: #{rinalmo_forward.1} parent=1 // loop_body
      %s40 = ssub.s32 %s35, 1
      %s41 = ssub.s32 %s35, 2
      %s42 = sadd.s32 %s35, 1
      %s44 = sadd.s32 %s43, 1
      %p47 = scmp.eq.s32.totalorder %s35, 1
      %p48 = scmp.ne.s32.totalorder %s43, %s45
      %p49 = scmp.eq.s32.totalorder %s35, 0
      %p50 = por %p48, %p49
      %p51 = scmp.ne.s32.totalorder %s43, %s45
      %p52 = scmp.eq.s32.totalorder %s40, 1
      %p53 = por %p51, %p52
      %p54 = scmp.ne.s32.totalorder %s45, %s46
      %p55 = scmp.eq.s32.totalorder %s40, 0
      %p56 = por %p54, %p55
      %p57 = scmp.ne.s32.totalorder %s45, %s46
      %p58 = scmp.eq.s32.totalorder %s41, 1
      %p59 = por %p57, %p58
      %p61 = scmp.ne.s32.totalorder %s46, %s60
      %p62 = scmp.eq.s32.totalorder %s41, 0
      %p63 = por %p61, %p62
      %s65 = sadd.s32 %s64, 1
      %p68 = scmp.eq.s32.totalorder %s35, 1
      %p69 = scmp.ne.s32.totalorder %s64, %s66
      %p70 = scmp.eq.s32.totalorder %s35, 0
      %p71 = por %p69, %p70
      %p72 = scmp.ne.s32.totalorder %s64, %s66
      %p73 = scmp.eq.s32.totalorder %s40, 1
      %p74 = por %p72, %p73
      %p75 = scmp.ne.s32.totalorder %s66, %s67
      %p76 = scmp.eq.s32.totalorder %s40, 0
      %p77 = por %p75, %p76
      %p78 = scmp.ne.s32.totalorder %s66, %s67
      %p79 = scmp.eq.s32.totalorder %s41, 1
      %p80 = por %p78, %p79
      %p82 = scmp.ne.s32.totalorder %s67, %s81
      %p83 = scmp.eq.s32.totalorder %s41, 0
      %p84 = por %p82, %p83
      %s86 = sadd.s32 %s85, 1
      %p89 = scmp.eq.s32.totalorder %s35, 1
      %p90 = scmp.ne.s32.totalorder %s85, %s87
      %p91 = scmp.eq.s32.totalorder %s35, 0
      %p92 = por %p90, %p91
      %p93 = scmp.ne.s32.totalorder %s85, %s87
      %p94 = scmp.eq.s32.totalorder %s40, 1
      %p95 = por %p93, %p94
      %p96 = scmp.ne.s32.totalorder %s87, %s88
      %p97 = scmp.eq.s32.totalorder %s40, 0
      %p98 = por %p96, %p97
      %p99 = scmp.ne.s32.totalorder %s87, %s88
      %p100 = scmp.eq.s32.totalorder %s41, 1
      %p101 = por %p99, %p100
      %p103 = scmp.ne.s32.totalorder %s88, %s102
      %p104 = scmp.eq.s32.totalorder %s41, 0
      %p105 = por %p103, %p104
      %s107 = sadd.s32 %s106, 1
      %p110 = scmp.eq.s32.totalorder %s35, 1
      %p111 = scmp.ne.s32.totalorder %s106, %s108
      %p112 = scmp.eq.s32.totalorder %s35, 0
      %p113 = por %p111, %p112
      %p114 = scmp.ne.s32.totalorder %s106, %s108
      %p115 = scmp.eq.s32.totalorder %s40, 1
      %p116 = por %p114, %p115
      %p117 = scmp.ne.s32.totalorder %s108, %s109
      %p118 = scmp.eq.s32.totalorder %s40, 0
      %p119 = por %p117, %p118
      %p120 = scmp.ne.s32.totalorder %s108, %s109
      %p121 = scmp.eq.s32.totalorder %s41, 1
      %p122 = por %p120, %p121
      %p124 = scmp.ne.s32.totalorder %s109, %s123
      %p125 = scmp.eq.s32.totalorder %s41, 0
      %p126 = por %p124, %p125
      %s128 = sadd.s32 %s127, 1
      %p131 = scmp.eq.s32.totalorder %s35, 1
      %p132 = scmp.ne.s32.totalorder %s127, %s129
      %p133 = scmp.eq.s32.totalorder %s35, 0
      %p134 = por %p132, %p133
      %p135 = scmp.ne.s32.totalorder %s127, %s129
      %p136 = scmp.eq.s32.totalorder %s40, 1
      %p137 = por %p135, %p136
      %p138 = scmp.ne.s32.totalorder %s129, %s130
      %p139 = scmp.eq.s32.totalorder %s40, 0
      %p140 = por %p138, %p139
      %p141 = scmp.ne.s32.totalorder %s129, %s130
      %p142 = scmp.eq.s32.totalorder %s41, 1
      %p143 = por %p141, %p142
      %p145 = scmp.ne.s32.totalorder %s130, %s144
      %p146 = scmp.eq.s32.totalorder %s41, 0
      %p147 = por %p145, %p146
      %s149 = sadd.s32 %s148, 1
      %p152 = scmp.eq.s32.totalorder %s35, 1
      %p153 = scmp.ne.s32.totalorder %s148, %s150
      %p154 = scmp.eq.s32.totalorder %s35, 0
      %p155 = por %p153, %p154
      %p156 = scmp.ne.s32.totalorder %s148, %s150
      %p157 = scmp.eq.s32.totalorder %s40, 1
      %p158 = por %p156, %p157
      %p159 = scmp.ne.s32.totalorder %s150, %s151
      %p160 = scmp.eq.s32.totalorder %s40, 0
      %p161 = por %p159, %p160
      %p162 = scmp.ne.s32.totalorder %s150, %s151
      %p163 = scmp.eq.s32.totalorder %s41, 1
      %p164 = por %p162, %p163
      %p166 = scmp.ne.s32.totalorder %s151, %s165
      %p167 = scmp.eq.s32.totalorder %s41, 0
      %p168 = por %p166, %p167
      %s169 = ssub.s32 %s35, %s42
      %p170 = scmp.eq.s32.totalorder %s169, 0
      %s172 = sadd.s32 %s171, 1
      %s173 = scalar_select %p170, %s171, %s172
      %p176 = pneg %p170
      %p177 = scmp.eq.s32.totalorder %s35, 1
      %p178 = por %p176, %p177
      %p179 = scmp.ne.s32.totalorder %s171, %s174
      %p180 = scmp.eq.s32.totalorder %s35, 0
      %p181 = por %p179, %p180
      %p182 = scmp.ne.s32.totalorder %s171, %s174
      %p183 = scmp.eq.s32.totalorder %s40, 1
      %p184 = por %p182, %p183
      %p185 = scmp.ne.s32.totalorder %s174, %s175
      %p186 = scmp.eq.s32.totalorder %s40, 0
      %p187 = por %p185, %p186
      %p188 = scmp.ne.s32.totalorder %s174, %s175
      %p189 = scmp.eq.s32.totalorder %s41, 1
      %p190 = por %p188, %p189
      %p192 = scmp.ne.s32.totalorder %s175, %s191
      %p193 = scmp.eq.s32.totalorder %s41, 0
      %p194 = por %p192, %p193
      %s195 = ssub.s32 %s35, %s42
      %p196 = scmp.eq.s32.totalorder %s195, 0
      %s198 = sadd.s32 %s197, 1
      %s199 = scalar_select %p196, %s197, %s198
      %p202 = pneg %p196
      %p203 = scmp.eq.s32.totalorder %s35, 1
      %p204 = por %p202, %p203
      %p205 = scmp.ne.s32.totalorder %s197, %s200
      %p206 = scmp.eq.s32.totalorder %s35, 0
      %p207 = por %p205, %p206
      %p208 = scmp.ne.s32.totalorder %s197, %s200
      %p209 = scmp.eq.s32.totalorder %s40, 1
      %p210 = por %p208, %p209
      %p211 = scmp.ne.s32.totalorder %s200, %s201
      %p212 = scmp.eq.s32.totalorder %s40, 0
      %p213 = por %p211, %p212
      %p214 = scmp.ne.s32.totalorder %s200, %s201
      %p215 = scmp.eq.s32.totalorder %s41, 1
      %p216 = por %p214, %p215
      %p218 = scmp.ne.s32.totalorder %s201, %s217
      %p219 = scmp.eq.s32.totalorder %s41, 0
      %p220 = por %p218, %p219
      %s221 = ssub.s32 %s35, %s42
      %p222 = scmp.eq.s32.totalorder %s221, 0
      %s224 = sadd.s32 %s223, 1
      %s225 = scalar_select %p222, %s223, %s224
      %p228 = pneg %p222
      %p229 = scmp.eq.s32.totalorder %s35, 1
      %p230 = por %p228, %p229
      %p231 = scmp.ne.s32.totalorder %s223, %s226
      %p232 = scmp.eq.s32.totalorder %s35, 0
      %p233 = por %p231, %p232
      %p234 = scmp.ne.s32.totalorder %s223, %s226
      %p235 = scmp.eq.s32.totalorder %s40, 1
      %p236 = por %p234, %p235
      %p237 = scmp.ne.s32.totalorder %s226, %s227
      %p238 = scmp.eq.s32.totalorder %s40, 0
      %p239 = por %p237, %p238
      %p240 = scmp.ne.s32.totalorder %s226, %s227
      %p241 = scmp.eq.s32.totalorder %s41, 1
      %p242 = por %p240, %p241
      %p244 = scmp.ne.s32.totalorder %s227, %s243
      %p245 = scmp.eq.s32.totalorder %s41, 0
      %p246 = por %p244, %p245
      %s247 = ssub.s32 %s35, %s42
      %p248 = scmp.eq.s32.totalorder %s247, 0
      %s250 = sadd.s32 %s249, 1
      %s251 = scalar_select %p248, %s249, %s250
      %p254 = pneg %p248
      %p255 = scmp.eq.s32.totalorder %s35, 1
      %p256 = por %p254, %p255
      %p257 = scmp.ne.s32.totalorder %s249, %s252
      %p258 = scmp.eq.s32.totalorder %s35, 0
      %p259 = por %p257, %p258
      %p260 = scmp.ne.s32.totalorder %s249, %s252
      %p261 = scmp.eq.s32.totalorder %s40, 1
      %p262 = por %p260, %p261
      %p263 = scmp.ne.s32.totalorder %s252, %s253
      %p264 = scmp.eq.s32.totalorder %s40, 0
      %p265 = por %p263, %p264
      %p266 = scmp.ne.s32.totalorder %s252, %s253
      %p267 = scmp.eq.s32.totalorder %s41, 1
      %p268 = por %p266, %p267
      %p270 = scmp.ne.s32.totalorder %s253, %s269
      %p271 = scmp.eq.s32.totalorder %s41, 0
      %p272 = por %p270, %p271
      %s273 = ssub.s32 %s35, %s42
      %p274 = scmp.eq.s32.totalorder %s273, 0
      %s276 = sadd.s32 %s275, 1
      %s277 = scalar_select %p274, %s275, %s276
      %p280 = pneg %p274
      %p281 = scmp.eq.s32.totalorder %s35, 1
      %p282 = por %p280, %p281
      %p283 = scmp.ne.s32.totalorder %s275, %s278
      %p284 = scmp.eq.s32.totalorder %s35, 0
      %p285 = por %p283, %p284
      %p286 = scmp.ne.s32.totalorder %s275, %s278
      %p287 = scmp.eq.s32.totalorder %s40, 1
      %p288 = por %p286, %p287
      %p289 = scmp.ne.s32.totalorder %s278, %s279
      %p290 = scmp.eq.s32.totalorder %s40, 0
      %p291 = por %p289, %p290
      %p292 = scmp.ne.s32.totalorder %s278, %s279
      %p293 = scmp.eq.s32.totalorder %s41, 1
      %p294 = por %p292, %p293
      %p296 = scmp.ne.s32.totalorder %s279, %s295
      %p297 = scmp.eq.s32.totalorder %s41, 0
      %p298 = por %p296, %p297
      %s299 = ssub.s32 %s35, %s42
      %p300 = scmp.eq.s32.totalorder %s299, 0
      %s302 = sadd.s32 %s301, 1
      %s303 = scalar_select %p300, %s301, %s302
      %p306 = pneg %p300
      %p307 = scmp.eq.s32.totalorder %s35, 1
      %p308 = por %p306, %p307
      %p309 = scmp.ne.s32.totalorder %s301, %s304
      %p310 = scmp.eq.s32.totalorder %s35, 0
      %p311 = por %p309, %p310
      %p312 = scmp.ne.s32.totalorder %s301, %s304
      %p313 = scmp.eq.s32.totalorder %s40, 1
      %p314 = por %p312, %p313
      %p315 = scmp.ne.s32.totalorder %s304, %s305
      %p316 = scmp.eq.s32.totalorder %s40, 0
      %p317 = por %p315, %p316
      %p318 = scmp.ne.s32.totalorder %s304, %s305
      %p319 = scmp.eq.s32.totalorder %s41, 1
      %p320 = por %p318, %p319
      %p322 = scmp.ne.s32.totalorder %s305, %s321
      %p323 = scmp.eq.s32.totalorder %s41, 0
      %p324 = por %p322, %p323
      %s325 = ssub.s32 %s35, %s42
      %p326 = scmp.eq.s32.totalorder %s325, 0
      %s328 = sadd.s32 %s327, 1
      %s329 = scalar_select %p326, %s327, %s328
      %p332 = pneg %p326
      %p333 = scmp.eq.s32.totalorder %s35, 1
      %p334 = por %p332, %p333
      %p335 = scmp.ne.s32.totalorder %s327, %s330
      %p336 = scmp.eq.s32.totalorder %s35, 0
      %p337 = por %p335, %p336
      %p338 = scmp.ne.s32.totalorder %s327, %s330
      %p339 = scmp.eq.s32.totalorder %s40, 1
      %p340 = por %p338, %p339
      %p341 = scmp.ne.s32.totalorder %s330, %s331
      %p342 = scmp.eq.s32.totalorder %s40, 0
      %p343 = por %p341, %p342
      %p344 = scmp.ne.s32.totalorder %s330, %s331
      %p345 = scmp.eq.s32.totalorder %s41, 1
      %p346 = por %p344, %p345
      %p348 = scmp.ne.s32.totalorder %s331, %s347
      %p349 = scmp.eq.s32.totalorder %s41, 0
      %p350 = por %p348, %p349
      %s351 = ssub.s32 %s35, %s42
      %p352 = scmp.eq.s32.totalorder %s351, 0
      %s354 = sadd.s32 %s353, 1
      %s355 = scalar_select %p352, %s353, %s354
      %p358 = pneg %p352
      %p359 = scmp.eq.s32.totalorder %s35, 1
      %p360 = por %p358, %p359
      %p361 = scmp.ne.s32.totalorder %s353, %s356
      %p362 = scmp.eq.s32.totalorder %s35, 0
      %p363 = por %p361, %p362
      %p364 = scmp.ne.s32.totalorder %s353, %s356
      %p365 = scmp.eq.s32.totalorder %s40, 1
      %p366 = por %p364, %p365
      %p367 = scmp.ne.s32.totalorder %s356, %s357
      %p368 = scmp.eq.s32.totalorder %s40, 0
      %p369 = por %p367, %p368
      %p370 = scmp.ne.s32.totalorder %s356, %s357
      %p371 = scmp.eq.s32.totalorder %s41, 1
      %p372 = por %p370, %p371
      %p374 = scmp.ne.s32.totalorder %s357, %s373
      %p375 = scmp.eq.s32.totalorder %s41, 0
      %p376 = por %p374, %p375
      %s377 = ssub.s32 %s35, %s42
      %p378 = scmp.eq.s32.totalorder %s377, 0
      %s380 = sadd.s32 %s379, 1
      %s381 = scalar_select %p378, %s379, %s380
      %p384 = pneg %p378
      %p385 = scmp.eq.s32.totalorder %s35, 1
      %p386 = por %p384, %p385
      %p387 = scmp.ne.s32.totalorder %s379, %s382
      %p388 = scmp.eq.s32.totalorder %s35, 0
      %p389 = por %p387, %p388
      %p390 = scmp.ne.s32.totalorder %s379, %s382
      %p391 = scmp.eq.s32.totalorder %s40, 1
      %p392 = por %p390, %p391
      %p393 = scmp.ne.s32.totalorder %s382, %s383
      %p394 = scmp.eq.s32.totalorder %s40, 0
      %p395 = por %p393, %p394
      %p396 = scmp.ne.s32.totalorder %s382, %s383
      %p397 = scmp.eq.s32.totalorder %s41, 1
      %p398 = por %p396, %p397
      %p400 = scmp.ne.s32.totalorder %s383, %s399
      %p401 = scmp.eq.s32.totalorder %s41, 0
      %p402 = por %p400, %p401
      %s403 = ssub.s32 %s35, %s42
      %p404 = scmp.eq.s32.totalorder %s403, 0
      %s406 = sadd.s32 %s405, 1
      %s407 = scalar_select %p404, %s405, %s406
      %p410 = pneg %p404
      %p411 = scmp.eq.s32.totalorder %s35, 1
      %p412 = por %p410, %p411
      %p413 = scmp.ne.s32.totalorder %s405, %s408
      %p414 = scmp.eq.s32.totalorder %s35, 0
      %p415 = por %p413, %p414
      %p416 = scmp.ne.s32.totalorder %s405, %s408
      %p417 = scmp.eq.s32.totalorder %s40, 1
      %p418 = por %p416, %p417
      %p419 = scmp.ne.s32.totalorder %s408, %s409
      %p420 = scmp.eq.s32.totalorder %s40, 0
      %p421 = por %p419, %p420
      %p422 = scmp.ne.s32.totalorder %s408, %s409
      %p423 = scmp.eq.s32.totalorder %s41, 1
      %p424 = por %p422, %p423
      %p426 = scmp.ne.s32.totalorder %s409, %s425
      %p427 = scmp.eq.s32.totalorder %s41, 0
      %p428 = por %p426, %p427
      %s429 = ssub.s32 %s35, %s42
      %p430 = scmp.eq.s32.totalorder %s429, 0
      %s432 = sadd.s32 %s431, 1
      %s433 = scalar_select %p430, %s431, %s432
      %p436 = pneg %p430
      %p437 = scmp.eq.s32.totalorder %s35, 1
      %p438 = por %p436, %p437
      %p439 = scmp.ne.s32.totalorder %s431, %s434
      %p440 = scmp.eq.s32.totalorder %s35, 0
      %p441 = por %p439, %p440
      %p442 = scmp.ne.s32.totalorder %s431, %s434
      %p443 = scmp.eq.s32.totalorder %s40, 1
      %p444 = por %p442, %p443
      %p445 = scmp.ne.s32.totalorder %s434, %s435
      %p446 = scmp.eq.s32.totalorder %s40, 0
      %p447 = por %p445, %p446
      %p448 = scmp.ne.s32.totalorder %s434, %s435
      %p449 = scmp.eq.s32.totalorder %s41, 1
      %p450 = por %p448, %p449
      %p452 = scmp.ne.s32.totalorder %s435, %s451
      %p453 = scmp.eq.s32.totalorder %s41, 0
      %p454 = por %p452, %p453
      %s455 = ssub.s32 %s35, %s42
      %p456 = scmp.eq.s32.totalorder %s455, 0
      %s458 = sadd.s32 %s457, 1
      %s459 = scalar_select %p456, %s457, %s458
      %p462 = pneg %p456
      %p463 = scmp.eq.s32.totalorder %s35, 1
      %p464 = por %p462, %p463
      %p465 = scmp.ne.s32.totalorder %s457, %s460
      %p466 = scmp.eq.s32.totalorder %s35, 0
      %p467 = por %p465, %p466
      %p468 = scmp.ne.s32.totalorder %s457, %s460
      %p469 = scmp.eq.s32.totalorder %s40, 1
      %p470 = por %p468, %p469
      %p471 = scmp.ne.s32.totalorder %s460, %s461
      %p472 = scmp.eq.s32.totalorder %s40, 0
      %p473 = por %p471, %p472
      %p474 = scmp.ne.s32.totalorder %s460, %s461
      %p475 = scmp.eq.s32.totalorder %s41, 1
      %p476 = por %p474, %p475
      %p478 = scmp.ne.s32.totalorder %s461, %s477
      %p479 = scmp.eq.s32.totalorder %s41, 0
      %p480 = por %p478, %p479
      %s482 = sadd.s32 %s481, 1
      %p485 = scmp.eq.s32.totalorder %s35, 1
      %p486 = scmp.ne.s32.totalorder %s481, %s483
      %p487 = scmp.eq.s32.totalorder %s35, 0
      %p488 = por %p486, %p487
      %p489 = scmp.ne.s32.totalorder %s481, %s483
      %p490 = scmp.eq.s32.totalorder %s40, 1
      %p491 = por %p489, %p490
      %p492 = scmp.ne.s32.totalorder %s483, %s484
      %p493 = scmp.eq.s32.totalorder %s40, 0
      %p494 = por %p492, %p493
      %p495 = scmp.ne.s32.totalorder %s483, %s484
      %p496 = scmp.eq.s32.totalorder %s41, 1
      %p497 = por %p495, %p496
      %p499 = scmp.ne.s32.totalorder %s484, %s498
      %p500 = scmp.eq.s32.totalorder %s41, 0
      %p501 = por %p499, %p500
      %s503 = sadd.s32 %s502, 1
      %p506 = scmp.eq.s32.totalorder %s35, 1
      %p507 = scmp.ne.s32.totalorder %s502, %s504
      %p508 = scmp.eq.s32.totalorder %s35, 0
      %p509 = por %p507, %p508
      %p510 = scmp.ne.s32.totalorder %s502, %s504
      %p511 = scmp.eq.s32.totalorder %s40, 1
      %p512 = por %p510, %p511
      %p513 = scmp.ne.s32.totalorder %s504, %s505
      %p514 = scmp.eq.s32.totalorder %s40, 0
      %p515 = por %p513, %p514
      %p516 = scmp.ne.s32.totalorder %s504, %s505
      %p517 = scmp.eq.s32.totalorder %s41, 1
      %p518 = por %p516, %p517
      %p520 = scmp.ne.s32.totalorder %s505, %s519
      %p521 = scmp.eq.s32.totalorder %s41, 0
      %p522 = por %p520, %p521
      %s524 = sadd.s32 %s523, 1
      %p527 = scmp.eq.s32.totalorder %s35, 1
      %p528 = scmp.ne.s32.totalorder %s523, %s525
      %p529 = scmp.eq.s32.totalorder %s35, 0
      %p530 = por %p528, %p529
      %p531 = scmp.ne.s32.totalorder %s523, %s525
      %p532 = scmp.eq.s32.totalorder %s40, 1
      %p533 = por %p531, %p532
      %p534 = scmp.ne.s32.totalorder %s525, %s526
      %p535 = scmp.eq.s32.totalorder %s40, 0
      %p536 = por %p534, %p535
      %p537 = scmp.ne.s32.totalorder %s525, %s526
      %p538 = scmp.eq.s32.totalorder %s41, 1
      %p539 = por %p537, %p538
      %p541 = scmp.ne.s32.totalorder %s526, %s540
      %p542 = scmp.eq.s32.totalorder %s41, 0
      %p543 = por %p541, %p542
      %s545 = sadd.s32 %s544, 1
      %p548 = scmp.eq.s32.totalorder %s35, 1
      %p549 = scmp.ne.s32.totalorder %s544, %s546
      %p550 = scmp.eq.s32.totalorder %s35, 0
      %p551 = por %p549, %p550
      %p552 = scmp.ne.s32.totalorder %s544, %s546
      %p553 = scmp.eq.s32.totalorder %s40, 1
      %p554 = por %p552, %p553
      %p555 = scmp.ne.s32.totalorder %s546, %s547
      %p556 = scmp.eq.s32.totalorder %s40, 0
      %p557 = por %p555, %p556
      %p558 = scmp.ne.s32.totalorder %s546, %s547
      %p559 = scmp.eq.s32.totalorder %s41, 1
      %p560 = por %p558, %p559
      %p562 = scmp.ne.s32.totalorder %s547, %s561
      %p563 = scmp.eq.s32.totalorder %s41, 0
      %p564 = por %p562, %p563
      %s566 = sadd.s32 %s565, 1
      %p569 = scmp.eq.s32.totalorder %s35, 1
      %p570 = scmp.ne.s32.totalorder %s565, %s567
      %p571 = scmp.eq.s32.totalorder %s35, 0
      %p572 = por %p570, %p571
      %p573 = scmp.ne.s32.totalorder %s565, %s567
      %p574 = scmp.eq.s32.totalorder %s40, 1
      %p575 = por %p573, %p574
      %p576 = scmp.ne.s32.totalorder %s567, %s568
      %p577 = scmp.eq.s32.totalorder %s40, 0
      %p578 = por %p576, %p577
      %p579 = scmp.ne.s32.totalorder %s567, %s568
      %p580 = scmp.eq.s32.totalorder %s41, 1
      %p581 = por %p579, %p580
      %p583 = scmp.ne.s32.totalorder %s568, %s582
      %p584 = scmp.eq.s32.totalorder %s41, 0
      %p585 = por %p583, %p584
      %s587 = sadd.s32 %s586, 1
      %p590 = scmp.eq.s32.totalorder %s35, 1
      %p591 = scmp.ne.s32.totalorder %s586, %s588
      %p592 = scmp.eq.s32.totalorder %s35, 0
      %p593 = por %p591, %p592
      %p594 = scmp.ne.s32.totalorder %s586, %s588
      %p595 = scmp.eq.s32.totalorder %s40, 1
      %p596 = por %p594, %p595
      %p597 = scmp.ne.s32.totalorder %s588, %s589
      %p598 = scmp.eq.s32.totalorder %s40, 0
      %p599 = por %p597, %p598
      %p600 = scmp.ne.s32.totalorder %s588, %s589
      %p601 = scmp.eq.s32.totalorder %s41, 1
      %p602 = por %p600, %p601
      %p604 = scmp.ne.s32.totalorder %s589, %s603
      %p605 = scmp.eq.s32.totalorder %s41, 0
      %p606 = por %p604, %p605
      %s608 = sadd.s32 %s607, 1
      %p611 = scmp.eq.s32.totalorder %s35, 1
      %p612 = scmp.ne.s32.totalorder %s607, %s609
      %p613 = scmp.eq.s32.totalorder %s35, 0
      %p614 = por %p612, %p613
      %p615 = scmp.ne.s32.totalorder %s607, %s609
      %p616 = scmp.eq.s32.totalorder %s40, 1
      %p617 = por %p615, %p616
      %p618 = scmp.ne.s32.totalorder %s609, %s610
      %p619 = scmp.eq.s32.totalorder %s40, 0
      %p620 = por %p618, %p619
      %p621 = scmp.ne.s32.totalorder %s609, %s610
      %p622 = scmp.eq.s32.totalorder %s41, 1
      %p623 = por %p621, %p622
      %p625 = scmp.ne.s32.totalorder %s610, %s624
      %p626 = scmp.eq.s32.totalorder %s41, 0
      %p627 = por %p625, %p626
      %s629 = sadd.s32 %s628, 1
      %p632 = scmp.eq.s32.totalorder %s35, 1
      %p633 = scmp.ne.s32.totalorder %s628, %s630
      %p634 = scmp.eq.s32.totalorder %s35, 0
      %p635 = por %p633, %p634
      %p636 = scmp.ne.s32.totalorder %s628, %s630
      %p637 = scmp.eq.s32.totalorder %s40, 1
      %p638 = por %p636, %p637
      %p639 = scmp.ne.s32.totalorder %s630, %s631
      %p640 = scmp.eq.s32.totalorder %s40, 0
      %p641 = por %p639, %p640
      %p642 = scmp.ne.s32.totalorder %s630, %s631
      %p643 = scmp.eq.s32.totalorder %s41, 1
      %p644 = por %p642, %p643
      %p646 = scmp.ne.s32.totalorder %s631, %s645
      %p647 = scmp.eq.s32.totalorder %s41, 0
      %p648 = por %p646, %p647
      %s650 = sadd.s32 %s649, 1
      %p653 = scmp.eq.s32.totalorder %s35, 1
      %p654 = scmp.ne.s32.totalorder %s649, %s651
      %p655 = scmp.eq.s32.totalorder %s35, 0
      %p656 = por %p654, %p655
      %p657 = scmp.ne.s32.totalorder %s649, %s651
      %p658 = scmp.eq.s32.totalorder %s40, 1
      %p659 = por %p657, %p658
      %p660 = scmp.ne.s32.totalorder %s651, %s652
      %p661 = scmp.eq.s32.totalorder %s40, 0
      %p662 = por %p660, %p661
      %p663 = scmp.ne.s32.totalorder %s651, %s652
      %p664 = scmp.eq.s32.totalorder %s41, 1
      %p665 = por %p663, %p664
      %p667 = scmp.ne.s32.totalorder %s652, %s666
      %p668 = scmp.eq.s32.totalorder %s41, 0
      %p669 = por %p667, %p668
      %s671 = sadd.s32 %s670, 1
      %p674 = scmp.eq.s32.totalorder %s35, 1
      %p675 = scmp.ne.s32.totalorder %s670, %s672
      %p676 = scmp.eq.s32.totalorder %s35, 0
      %p677 = por %p675, %p676
      %p678 = scmp.ne.s32.totalorder %s670, %s672
      %p679 = scmp.eq.s32.totalorder %s40, 1
      %p680 = por %p678, %p679
      %p681 = scmp.ne.s32.totalorder %s672, %s673
      %p682 = scmp.eq.s32.totalorder %s40, 0
      %p683 = por %p681, %p682
      %p684 = scmp.ne.s32.totalorder %s672, %s673
      %p685 = scmp.eq.s32.totalorder %s41, 1
      %p686 = por %p684, %p685
      %p688 = scmp.ne.s32.totalorder %s673, %s687
      %p689 = scmp.eq.s32.totalorder %s41, 0
      %p690 = por %p688, %p689
      %p691 = scmp.le.s32.totalorder 1, %s35
      %p692 = scmp.lt.s32.totalorder %s35, 3
      %p693 = pnand %p691, %p692
      %p694 = pneg %p693
      // Predicated region
      $region9: #{rinalmo_forward.1} parent=5 // pred_check
        _
      $region10: #{rinalmo_forward.1} parent=5 // pred_check_branch
        %696 = sbr.rel (%p693) target = $region12
      $region11: #{rinalmo_forward.1} parent=5 // pred_region
        %s697 = ssub.s32 %s35, 1
        // Predicated region
        $region13: #{rinalmo_forward.1} parent=11 // pred_check
          %p698 = pneg %p56
        $region14: #{rinalmo_forward.1} parent=11 // pred_check_branch
          %700 = sbr.rel (%p698) target = $region16
        $region15: #{rinalmo_forward.1} parent=11 // pred_region
          _
        $region16: #{rinalmo_forward.1} parent=11 // pred_fallthru
          _
        // Predicated region
        $region17: #{rinalmo_forward.1} parent=11 // pred_check
          %p701 = pneg %p77
        $region18: #{rinalmo_forward.1} parent=11 // pred_check_branch
          %703 = sbr.rel (%p701) target = $region20
        $region19: #{rinalmo_forward.1} parent=11 // pred_region
          _
        $region20: #{rinalmo_forward.1} parent=11 // pred_fallthru
          _
        // Predicated region
        $region21: #{rinalmo_forward.1} parent=11 // pred_check
          %p704 = pneg %p98
        $region22: #{rinalmo_forward.1} parent=11 // pred_check_branch
          %706 = sbr.rel (%p704) target = $region24
        $region23: #{rinalmo_forward.1} parent=11 // pred_region
          _
        $region24: #{rinalmo_forward.1} parent=11 // pred_fallthru
          _
        // Predicated region
        $region25: #{rinalmo_forward.1} parent=11 // pred_check
          %p707 = pneg %p119
        $region26: #{rinalmo_forward.1} parent=11 // pred_check_branch
          %709 = sbr.rel (%p707) target = $region28
        $region27: #{rinalmo_forward.1} parent=11 // pred_region
          _
        $region28: #{rinalmo_forward.1} parent=11 // pred_fallthru
          _
        // Predicated region
        $region29: #{rinalmo_forward.1} parent=11 // pred_check
          %p710 = pneg %p140
        $region30: #{rinalmo_forward.1} parent=11 // pred_check_branch
          %712 = sbr.rel (%p710) target = $region32
        $region31: #{rinalmo_forward.1} parent=11 // pred_region
          _
        $region32: #{rinalmo_forward.1} parent=11 // pred_fallthru
          _
        // Predicated region
        $region33: #{rinalmo_forward.1} parent=11 // pred_check
          %p713 = pneg %p161
        $region34: #{rinalmo_forward.1} parent=11 // pred_check_branch
          %715 = sbr.rel (%p713) target = $region36
        $region35: #{rinalmo_forward.1} parent=11 // pred_region
          _
        $region36: #{rinalmo_forward.1} parent=11 // pred_fallthru
          _
        // Predicated region
        $region37: #{rinalmo_forward.1} parent=11 // pred_check
          %p716 = pneg %p494
        $region38: #{rinalmo_forward.1} parent=11 // pred_check_branch
          %718 = sbr.rel (%p716) target = $region40
        $region39: #{rinalmo_forward.1} parent=11 // pred_region
          _
        $region40: #{rinalmo_forward.1} parent=11 // pred_fallthru
          _
        // Predicated region
        $region41: #{rinalmo_forward.1} parent=11 // pred_check
          %p719 = pneg %p515
        $region42: #{rinalmo_forward.1} parent=11 // pred_check_branch
          %721 = sbr.rel (%p719) target = $region44
        $region43: #{rinalmo_forward.1} parent=11 // pred_region
          _
        $region44: #{rinalmo_forward.1} parent=11 // pred_fallthru
          _
        // Predicated region
        $region45: #{rinalmo_forward.1} parent=11 // pred_check
          %p722 = pneg %p536
        $region46: #{rinalmo_forward.1} parent=11 // pred_check_branch
          %724 = sbr.rel (%p722) target = $region48
        $region47: #{rinalmo_forward.1} parent=11 // pred_region
          _
        $region48: #{rinalmo_forward.1} parent=11 // pred_fallthru
          _
        // Predicated region
        $region49: #{rinalmo_forward.1} parent=11 // pred_check
          %p725 = pneg %p557
        $region50: #{rinalmo_forward.1} parent=11 // pred_check_branch
          %727 = sbr.rel (%p725) target = $region52
        $region51: #{rinalmo_forward.1} parent=11 // pred_region
          _
        $region52: #{rinalmo_forward.1} parent=11 // pred_fallthru
          _
        // Predicated region
        $region53: #{rinalmo_forward.1} parent=11 // pred_check
          %p728 = pneg %p578
        $region54: #{rinalmo_forward.1} parent=11 // pred_check_branch
          %730 = sbr.rel (%p728) target = $region56
        $region55: #{rinalmo_forward.1} parent=11 // pred_region
          _
        $region56: #{rinalmo_forward.1} parent=11 // pred_fallthru
          _
        // Predicated region
        $region57: #{rinalmo_forward.1} parent=11 // pred_check
          %p731 = pneg %p599
        $region58: #{rinalmo_forward.1} parent=11 // pred_check_branch
          %733 = sbr.rel (%p731) target = $region60
        $region59: #{rinalmo_forward.1} parent=11 // pred_region
          _
        $region60: #{rinalmo_forward.1} parent=11 // pred_fallthru
          _
        // Predicated region
        $region61: #{rinalmo_forward.1} parent=11 // pred_check
          %p734 = pneg %p620
        $region62: #{rinalmo_forward.1} parent=11 // pred_check_branch
          %736 = sbr.rel (%p734) target = $region64
        $region63: #{rinalmo_forward.1} parent=11 // pred_region
          _
        $region64: #{rinalmo_forward.1} parent=11 // pred_fallthru
          _
        // Predicated region
        $region65: #{rinalmo_forward.1} parent=11 // pred_check
          %p737 = pneg %p641
        $region66: #{rinalmo_forward.1} parent=11 // pred_check_branch
          %739 = sbr.rel (%p737) target = $region68
        $region67: #{rinalmo_forward.1} parent=11 // pred_region
          _
        $region68: #{rinalmo_forward.1} parent=11 // pred_fallthru
          _
      $region12: #{rinalmo_forward.1} parent=5 // pred_fallthru
        _
      %p740 = scmp.lt.s32.totalorder %s35, 2
      // Predicated region
      $region69: #{rinalmo_forward.1} parent=5 // pred_check
        %p741 = pneg %p740
      $region70: #{rinalmo_forward.1} parent=5 // pred_check_branch
        %743 = sbr.rel (%p741) target = $region72
      $region71: #{rinalmo_forward.1} parent=5 // pred_region
        // Predicated region
        $region73: #{rinalmo_forward.1} parent=71 // pred_check
          %p744 = pneg %p181
        $region74: #{rinalmo_forward.1} parent=71 // pred_check_branch
          %746 = sbr.rel (%p744) target = $region76
        $region75: #{rinalmo_forward.1} parent=71 // pred_region
          %p747 = scmp.lt.s32.totalorder %s35, 1
          %s748 = scalar_select %p747, %s35, 1
          %s749 = scalar_lea.vmem %s6, %s748
        $region76: #{rinalmo_forward.1} parent=71 // pred_fallthru
          _
        // Predicated region
        $region77: #{rinalmo_forward.1} parent=71 // pred_check
          %p750 = pneg %p207
        $region78: #{rinalmo_forward.1} parent=71 // pred_check_branch
          %752 = sbr.rel (%p750) target = $region80
        $region79: #{rinalmo_forward.1} parent=71 // pred_region
          %p753 = scmp.lt.s32.totalorder %s35, 1
          %s754 = scalar_select %p753, %s35, 1
          %s755 = scalar_lea.vmem %s7, %s754
        $region80: #{rinalmo_forward.1} parent=71 // pred_fallthru
          _
        // Predicated region
        $region81: #{rinalmo_forward.1} parent=71 // pred_check
          %p756 = pneg %p233
        $region82: #{rinalmo_forward.1} parent=71 // pred_check_branch
          %758 = sbr.rel (%p756) target = $region84
        $region83: #{rinalmo_forward.1} parent=71 // pred_region
          %p759 = scmp.lt.s32.totalorder %s35, 1
          %s760 = scalar_select %p759, %s35, 1
          %s761 = smul.addr %s760, 4
          %s762 = smul.addr %s761, 4
          %s763 = scalar_lea.vmem %s8, %s762
        $region84: #{rinalmo_forward.1} parent=71 // pred_fallthru
          _
        // Predicated region
        $region85: #{rinalmo_forward.1} parent=71 // pred_check
          %p764 = pneg %p259
        $region86: #{rinalmo_forward.1} parent=71 // pred_check_branch
          %766 = sbr.rel (%p764) target = $region88
        $region87: #{rinalmo_forward.1} parent=71 // pred_region
          %p767 = scmp.lt.s32.totalorder %s35, 1
          %s768 = scalar_select %p767, %s35, 1
          %s769 = scalar_lea.vmem %s9, %s768
        $region88: #{rinalmo_forward.1} parent=71 // pred_fallthru
          _
        // Predicated region
        $region89: #{rinalmo_forward.1} parent=71 // pred_check
          %p770 = pneg %p285
        $region90: #{rinalmo_forward.1} parent=71 // pred_check_branch
          %772 = sbr.rel (%p770) target = $region92
        $region91: #{rinalmo_forward.1} parent=71 // pred_region
          %p773 = scmp.lt.s32.totalorder %s35, 1
          %s774 = scalar_select %p773, %s35, 1
          %s775 = smul.addr %s774, 4
          %s776 = smul.addr %s775, 4
          %s777 = scalar_lea.vmem %s10, %s776
        $region92: #{rinalmo_forward.1} parent=71 // pred_fallthru
          _
        // Predicated region
        $region93: #{rinalmo_forward.1} parent=71 // pred_check
          %p778 = pneg %p311
        $region94: #{rinalmo_forward.1} parent=71 // pred_check_branch
          %780 = sbr.rel (%p778) target = $region96
        $region95: #{rinalmo_forward.1} parent=71 // pred_region
          %p781 = scmp.lt.s32.totalorder %s35, 1
          %s782 = scalar_select %p781, %s35, 1
          %s783 = scalar_lea.vmem %s11, %s782
        $region96: #{rinalmo_forward.1} parent=71 // pred_fallthru
          _
        // Predicated region
        $region97: #{rinalmo_forward.1} parent=71 // pred_check
          %p784 = pneg %p337
        $region98: #{rinalmo_forward.1} parent=71 // pred_check_branch
          %786 = sbr.rel (%p784) target = $region100
        $region99: #{rinalmo_forward.1} parent=71 // pred_region
          %p787 = scmp.lt.s32.totalorder %s35, 1
          %s788 = scalar_select %p787, %s35, 1
          %s789 = scalar_lea.vmem %s12, %s788
        $region100: #{rinalmo_forward.1} parent=71 // pred_fallthru
          _
        // Predicated region
        $region101: #{rinalmo_forward.1} parent=71 // pred_check
          %p790 = pneg %p363
        $region102: #{rinalmo_forward.1} parent=71 // pred_check_branch
          %792 = sbr.rel (%p790) target = $region104
        $region103: #{rinalmo_forward.1} parent=71 // pred_region
          %p793 = scmp.lt.s32.totalorder %s35, 1
          %s794 = scalar_select %p793, %s35, 1
          %s795 = scalar_lea.vmem %s13, %s794
        $region104: #{rinalmo_forward.1} parent=71 // pred_fallthru
          _
        // Predicated region
        $region105: #{rinalmo_forward.1} parent=71 // pred_check
          %p796 = pneg %p389
        $region106: #{rinalmo_forward.1} parent=71 // pred_check_branch
          %798 = sbr.rel (%p796) target = $region108
        $region107: #{rinalmo_forward.1} parent=71 // pred_region
          %p799 = scmp.lt.s32.totalorder %s35, 1
          %s800 = scalar_select %p799, %s35, 1
          %s801 = smul.addr %s800, 4
          %s802 = smul.addr %s801, 4
          %s803 = scalar_lea.vmem %s14, %s802
        $region108: #{rinalmo_forward.1} parent=71 // pred_fallthru
          _
        // Predicated region
        $region109: #{rinalmo_forward.1} parent=71 // pred_check
          %p804 = pneg %p415
        $region110: #{rinalmo_forward.1} parent=71 // pred_check_branch
          %806 = sbr.rel (%p804) target = $region112
        $region111: #{rinalmo_forward.1} parent=71 // pred_region
          %p807 = scmp.lt.s32.totalorder %s35, 1
          %s808 = scalar_select %p807, %s35, 1
          %s809 = scalar_lea.vmem %s15, %s808
        $region112: #{rinalmo_forward.1} parent=71 // pred_fallthru
          _
        // Predicated region
        $region113: #{rinalmo_forward.1} parent=71 // pred_check
          %p810 = pneg %p441
        $region114: #{rinalmo_forward.1} parent=71 // pred_check_branch
          %812 = sbr.rel (%p810) target = $region116
        $region115: #{rinalmo_forward.1} parent=71 // pred_region
          %p813 = scmp.lt.s32.totalorder %s35, 1
          %s814 = scalar_select %p813, %s35, 1
          %s815 = smul.addr %s814, 8
          %s816 = smul.addr %s815, 4
          %s817 = scalar_lea.vmem %s16, %s816
        $region116: #{rinalmo_forward.1} parent=71 // pred_fallthru
          _
        // Predicated region
        $region117: #{rinalmo_forward.1} parent=71 // pred_check
          %p818 = pneg %p467
        $region118: #{rinalmo_forward.1} parent=71 // pred_check_branch
          %820 = sbr.rel (%p818) target = $region120
        $region119: #{rinalmo_forward.1} parent=71 // pred_region
          %p821 = scmp.lt.s32.totalorder %s35, 1
          %s822 = scalar_select %p821, %s35, 1
          %s823 = scalar_lea.vmem %s17, %s822
        $region120: #{rinalmo_forward.1} parent=71 // pred_fallthru
          _
      $region72: #{rinalmo_forward.1} parent=5 // pred_fallthru
        _
      %p824 = scmp.le.s32.totalorder 1, %s35
      %p825 = scmp.lt.s32.totalorder %s35, 3
      %p826 = pnand %p824, %p825
      %p827 = pneg %p826
      // Predicated region
      $region121: #{rinalmo_forward.1} parent=5 // pred_check
        _
      $region122: #{rinalmo_forward.1} parent=5 // pred_check_branch
        %829 = sbr.rel (%p826) target = $region124
      $region123: #{rinalmo_forward.1} parent=5 // pred_region
        %s830 = ssub.s32 %s35, 1
        %p831 = pneg %p56
        %p832 = pneg %p53
        %p833 = pneg %p77
        %p834 = pneg %p74
        %p835 = pneg %p98
        %p836 = pneg %p95
        %p837 = pneg %p119
        %p838 = pneg %p116
        %p839 = pneg %p140
        %p840 = pneg %p137
        %p841 = pneg %p161
        %p842 = pneg %p158
        %p843 = scmp.lt.s32.totalorder %s40, 1
        %s844 = scalar_select %p843, %s40, 1
        %s845 = scalar_lea.vmem %s6, %s844
        %p846 = pneg %p187
        %p847 = pneg %p184
        %p848 = scmp.lt.s32.totalorder %s40, 1
        %s849 = scalar_select %p848, %s40, 1
        %s850 = scalar_lea.vmem %s7, %s849
        %p851 = pneg %p213
        %p852 = pneg %p210
        %p853 = scmp.lt.s32.totalorder %s40, 1
        %s854 = scalar_select %p853, %s40, 1
        %s855 = smul.addr %s854, 4
        %s856 = smul.addr %s855, 4
        %s857 = scalar_lea.vmem %s8, %s856
        %p858 = pneg %p239
        %p859 = pneg %p236
        %p860 = scmp.lt.s32.totalorder %s40, 1
        %s861 = scalar_select %p860, %s40, 1
        %s862 = scalar_lea.vmem %s9, %s861
        %p863 = pneg %p265
        %p864 = pneg %p262
        %p865 = scmp.lt.s32.totalorder %s40, 1
        %s866 = scalar_select %p865, %s40, 1
        %s867 = smul.addr %s866, 4
        %s868 = smul.addr %s867, 4
        %s869 = scalar_lea.vmem %s10, %s868
        %p870 = pneg %p291
        %p871 = pneg %p288
        %p872 = scmp.lt.s32.totalorder %s40, 1
        %s873 = scalar_select %p872, %s40, 1
        %s874 = scalar_lea.vmem %s11, %s873
        %p875 = pneg %p317
        %p876 = pneg %p314
        %p877 = scmp.lt.s32.totalorder %s40, 1
        %s878 = scalar_select %p877, %s40, 1
        %s879 = scalar_lea.vmem %s12, %s878
        %p880 = pneg %p343
        %p881 = pneg %p340
        %p882 = scmp.lt.s32.totalorder %s40, 1
        %s883 = scalar_select %p882, %s40, 1
        %s884 = scalar_lea.vmem %s13, %s883
        %p885 = pneg %p369
        %p886 = pneg %p366
        %p887 = scmp.lt.s32.totalorder %s40, 1
        %s888 = scalar_select %p887, %s40, 1
        %s889 = smul.addr %s888, 4
        %s890 = smul.addr %s889, 4
        %s891 = scalar_lea.vmem %s14, %s890
        %p892 = pneg %p395
        %p893 = pneg %p392
        %p894 = scmp.lt.s32.totalorder %s40, 1
        %s895 = scalar_select %p894, %s40, 1
        %s896 = scalar_lea.vmem %s15, %s895
        %p897 = pneg %p421
        %p898 = pneg %p418
        %p899 = scmp.lt.s32.totalorder %s40, 1
        %s900 = scalar_select %p899, %s40, 1
        %s901 = smul.addr %s900, 8
        %s902 = smul.addr %s901, 4
        %s903 = scalar_lea.vmem %s16, %s902
        %p904 = pneg %p447
        %p905 = pneg %p444
        %p906 = scmp.lt.s32.totalorder %s40, 1
        %s907 = scalar_select %p906, %s40, 1
        %s908 = scalar_lea.vmem %s17, %s907
        %p909 = pneg %p473
        %p910 = pneg %p470
        %p911 = pneg %p494
        %p912 = pneg %p491
        %p913 = pneg %p515
        %p914 = pneg %p512
        %p915 = pneg %p536
        %p916 = pneg %p533
        %p917 = pneg %p557
        %p918 = pneg %p554
        %p919 = pneg %p578
        %p920 = pneg %p575
        %p921 = pneg %p599
        %p922 = pneg %p596
        %p923 = pneg %p620
        %p924 = pneg %p617
        %p925 = pneg %p641
        %p926 = pneg %p638
        %p927 = pneg %p662
        %p928 = pneg %p659
        %p929 = pneg %p683
        %p930 = pneg %p680
        %p931 = scmp.lt.s32.totalorder %s40, 1
        %s932 = scalar_select %p931, %s40, 1
        %s933 = scalar_lea.vmem %s6, %s932
        %p934 = scmp.lt.s32.totalorder %s40, 1
        %s935 = scalar_select %p934, %s40, 1
        %s936 = scalar_lea.vmem %s7, %s935
        %p937 = scmp.lt.s32.totalorder %s40, 1
        %s938 = scalar_select %p937, %s40, 1
        %s939 = smul.addr %s938, 4
        %s940 = smul.addr %s939, 4
        %s941 = scalar_lea.vmem %s8, %s940
        %p942 = scmp.lt.s32.totalorder %s40, 1
        %s943 = scalar_select %p942, %s40, 1
        %s944 = scalar_lea.vmem %s9, %s943
        %p945 = scmp.lt.s32.totalorder %s40, 1
        %s946 = scalar_select %p945, %s40, 1
        %s947 = smul.addr %s946, 4
        %s948 = smul.addr %s947, 4
        %s949 = scalar_lea.vmem %s10, %s948
        %p950 = scmp.lt.s32.totalorder %s40, 1
        %s951 = scalar_select %p950, %s40, 1
        %s952 = scalar_lea.vmem %s11, %s951
        %p953 = scmp.lt.s32.totalorder %s40, 1
        %s954 = scalar_select %p953, %s40, 1
        %s955 = scalar_lea.vmem %s12, %s954
        %p956 = scmp.lt.s32.totalorder %s40, 1
        %s957 = scalar_select %p956, %s40, 1
        %s958 = scalar_lea.vmem %s13, %s957
        %p959 = scmp.lt.s32.totalorder %s40, 1
        %s960 = scalar_select %p959, %s40, 1
        %s961 = smul.addr %s960, 4
        %s962 = smul.addr %s961, 4
        %s963 = scalar_lea.vmem %s14, %s962
        %p964 = scmp.lt.s32.totalorder %s40, 1
        %s965 = scalar_select %p964, %s40, 1
        %s966 = scalar_lea.vmem %s15, %s965
        %p967 = scmp.lt.s32.totalorder %s40, 1
        %s968 = scalar_select %p967, %s40, 1
        %s969 = smul.addr %s968, 8
        %s970 = smul.addr %s969, 4
        %s971 = scalar_lea.vmem %s16, %s970
        %p972 = scmp.lt.s32.totalorder %s40, 1
        %s973 = scalar_select %p972, %s40, 1
        %s974 = scalar_lea.vmem %s17, %s973
        %p976 = scmp.eq.s32.totalorder %s40, 0
        // Predicated region
        $region125: #{rinalmo_forward.1} parent=123 // pred_check
          %p977 = pneg %p976
        $region126: #{rinalmo_forward.1} parent=123 // pred_check_branch
          %979 = sbr.rel (%p977) target = $region128
        $region127: #{rinalmo_forward.1} parent=123 // pred_region
          %v980 = vld [vmem:[%s0] sm:$0xff]
          %v981 = vld [vmem:[%s0 + $0x8] sm:$0xff]
          %vm982 = vcmask 261120
          %983 = vst.msk [vmem:[#allocation2] sm:$0xff] %vm982, %v980
          %984 = vst.msk [vmem:[#allocation2 + $0x8] sm:$0xff] %vm982, %v981
        $region128: #{rinalmo_forward.1} parent=123 // pred_fallthru
          _
        %v985 = vld [vmem:[#allocation2] sm:$0xff]
        %v986 = vld [vmem:[#allocation2 + $0x8] sm:$0xff]
        %v987 = vld [vmem:[%s933] sm:$0x1]
        %v988 = vld [vmem:[%s936] sm:$0x1]
        %vm989 = vcmask 261120
        %v990 = vsel %vm989, %v985, 0.0
        %991 = vadd.xlane.f32.xlu0 %v990
        %v992 = vpop.xlane.xlu0 %991
        %v993 = vsel %vm989, %v986, 0.0
        %994 = vadd.xlane.f32.xlu0 %v993
        %v995 = vpop.xlane.xlu0 %994
        %v996 = vrcp.pop 32.0
        %v997 = vmul.f32 %v992, %v996
        %v998 = vmul.f32 %v995, %v996
        %v999 = vsub.f32 %v985, %v997
        %v1000 = vsub.f32 %v986, %v998
        %v1001 = vmul.f32 %v999, %v999
        %v1002 = vmul.f32 %v1000, %v1000
        %v1003 = vsel %vm989, %v1001, 0.0
        %1004 = vadd.xlane.f32.xlu0 %v1003
        %v1005 = vpop.xlane.xlu0 %1004
        %v1006 = vsel %vm989, %v1002, 0.0
        %1007 = vadd.xlane.f32.xlu0 %v1006
        %v1008 = vpop.xlane.xlu0 %1007
        %v1009 = vmul.f32 %v1005, %v996
        %v1010 = vmul.f32 %v1008, %v996
        %v1011 = vadd.f32 %v1009, 1e-05
        %v1012 = vadd.f32 %v1010, 1e-05
        %v1013 = vrsqrt.pop %v1011
        %v1014 = vrsqrt.pop %v1012
        %v1015 = vmul.f32 %v999, %v1013
        %v1016 = vmul.f32 %v1000, %v1014
        %v1018 = vlaneseq
        %v1019 = vshrl.u32 %v1018, 7
        %v1020 = vsub.s32 0, %v1019
        %v1021 = vrot.slane %v987, %v1020
        %v1023 = vmul.f32 %v1015, %v1021
        %v1024 = vmul.f32 %v1016, %v1021
        %v1026 = vlaneseq
        %v1027 = vshrl.u32 %v1026, 7
        %v1028 = vsub.s32 0, %v1027
        %v1029 = vrot.slane %v988, %v1028
        %v1031 = vadd.f32 %v1023, %v1029
        %v1032 = vadd.f32 %v1024, %v1029
        %v1033 = vld [vmem:[%s941] sm:$0xf]
        %v1034 = vld [vmem:[%s941 + $0x4] sm:$0xf]
        %v1035 = vld [vmem:[%s941 + $0x8] sm:$0xf]
        %v1036 = vld [vmem:[%s941 + $0xc] sm:$0xf]
        %v1037 = vpack.c.bf16 %v1032, %v1031
        %v1038 = vld [vmem:[%s944] sm:$0x1]
        %v1040 = vlaneseq
        %v1041 = vshrl.u32 %v1040, 7
        %v1042 = vsub.s32 0, %v1041
        %v1043 = vrot.slane %v1038, %v1042
        %v1049 = vunpack.c.l.b16 %v1033
        %v1050 = vunpack.c.l.b16 %v1034
        %v1051 = vunpack.c.l.b16 %v1035
        %v1052 = vunpack.c.l.b16 %v1036
        %v1053 = vpack.c.b16 %v1050, %v1049
        %v1054 = vpack.c.b16 %v1052, %v1051
        %v1058 = vsel %vm989, %v1037, 0
        %1060 = vmatprep.subr.bf16.mxu0 0
        %1061 = vmatpush1.bf16.msra.mxu0 %v1053
        %1062 = vmatprep.subr.bf16.mxu0 0
        %1063 = vmatpush1.bf16.msra.mxu0 %v1054
        %1064 = vmatprep.subr.bf16.mxu0 0
        %1065 = vmatpush1.bf16.msra.mxu0 0
        %1066 = vmatprep.subr.bf16.mxu0 0
        %1067 = vmatpush1.bf16.msra.mxu0 0
        %1068 = vmatprep.subr.bf16.mxu0 0
        %1069 = vmatpush1.bf16.msra.mxu0 0
        %1070 = vmatprep.subr.bf16.mxu0 0
        %1071 = vmatpush1.bf16.msra.mxu0 0
        %1072 = vmatprep.subr.bf16.mxu0 0
        %1073 = vmatpush1.bf16.msra.mxu0 0
        %1074 = vmatprep.subr.bf16.mxu0 0
        %1075 = vmatpush1.bf16.msra.mxu0 0
        %1076 = vmatprep.subr.bf16.mxu0 0
        %1077 = vmatpush1.bf16.msra.mxu0 0
        %1078 = vmatprep.subr.bf16.mxu0 0
        %1079 = vmatpush1.bf16.msra.mxu0 0
        %1080 = vmatprep.subr.bf16.mxu0 0
        %1081 = vmatpush1.bf16.msra.mxu0 0
        %1082 = vmatprep.subr.bf16.mxu0 0
        %1083 = vmatpush1.bf16.msra.mxu0 0
        %1084 = vmatprep.subr.bf16.mxu0 0
        %1085 = vmatpush1.bf16.msra.mxu0 0
        %1086 = vmatprep.subr.bf16.mxu0 0
        %1087 = vmatpush1.bf16.msra.mxu0 0
        %1088 = vmatprep.subr.bf16.mxu0 0
        %1089 = vmatpush1.bf16.msra.mxu0 0
        %1090 = vmatprep.subr.bf16.mxu0 0
        %1091 = vmatpush1.bf16.msra.mxu0 0
        %1092 = vmatprep.mubr.bf16.mxu0 0
        %1093 = vmatmul.mubr.bf16.gmra.mrb[0].mxu0 %v1058
        %v1094 = vpop.f32.mrb[0].mxu0
        %v1095 = vadd.f32 %v1043, %v1094
        %v1096 = vpop.f32.mrb[0].mxu0
        %v1097 = vpop.f32.mrb[0].mxu0
        %v1098 = vadd.f32 %v1043, %v1097
        %v1099 = vpop.f32.mrb[0].mxu0
        %1100 = vdwg.mxu0
        %v1101 = vld [vmem:[%s2] sm:$0xff]
        %v1102 = vld [vmem:[%s2 + $0x8] sm:$0xff]
        %v1103 = vld [vmem:[%s3] sm:$0xff]
        %v1104 = vld [vmem:[%s3 + $0x8] sm:$0xff]
        %v1105 = vld [vmem:[%s4] sm:$0xf]
        %v1106 = vld [vmem:[%s4 + $0x4] sm:$0xf]
        %v1107 = vld [vmem:[%s4 + $0x8] sm:$0xf]
        %v1108 = vld [vmem:[%s4 + $0xc] sm:$0xf]
        %v1109 = vpack.c.bf16 %v1098, %v1095
        %v1114 = vunpack.c.l.b16 %v1105
        %v1115 = vunpack.c.l.b16 %v1106
        %v1116 = vunpack.c.l.b16 %v1107
        %v1117 = vunpack.c.l.b16 %v1108
        %v1118 = vpack.c.b16 %v1115, %v1114
        %v1119 = vpack.c.b16 %v1117, %v1116
        %v1123 = vsel %vm989, %v1109, 0
        %1125 = vmatprep.subr.bf16.mxu0 0
        %1126 = vmatpush1.bf16.msra.mxu0 %v1118
        %1127 = vmatprep.subr.bf16.mxu0 0
        %1128 = vmatpush1.bf16.msra.mxu0 %v1119
        %1129 = vmatprep.subr.bf16.mxu0 0
        %1130 = vmatpush1.bf16.msra.mxu0 0
        %1131 = vmatprep.subr.bf16.mxu0 0
        %1132 = vmatpush1.bf16.msra.mxu0 0
        %1133 = vmatprep.subr.bf16.mxu0 0
        %1134 = vmatpush1.bf16.msra.mxu0 0
        %1135 = vmatprep.subr.bf16.mxu0 0
        %1136 = vmatpush1.bf16.msra.mxu0 0
        %1137 = vmatprep.subr.bf16.mxu0 0
        %1138 = vmatpush1.bf16.msra.mxu0 0
        %1139 = vmatprep.subr.bf16.mxu0 0
        %1140 = vmatpush1.bf16.msra.mxu0 0
        %1141 = vmatprep.subr.bf16.mxu0 0
        %1142 = vmatpush1.bf16.msra.mxu0 0
        %1143 = vmatprep.subr.bf16.mxu0 0
        %1144 = vmatpush1.bf16.msra.mxu0 0
        %1145 = vmatprep.subr.bf16.mxu0 0
        %1146 = vmatpush1.bf16.msra.mxu0 0
        %1147 = vmatprep.subr.bf16.mxu0 0
        %1148 = vmatpush1.bf16.msra.mxu0 0
        %1149 = vmatprep.subr.bf16.mxu0 0
        %1150 = vmatpush1.bf16.msra.mxu0 0
        %1151 = vmatprep.subr.bf16.mxu0 0
        %1152 = vmatpush1.bf16.msra.mxu0 0
        %1153 = vmatprep.subr.bf16.mxu0 0
        %1154 = vmatpush1.bf16.msra.mxu0 0
        %1155 = vmatprep.subr.bf16.mxu0 0
        %1156 = vmatpush1.bf16.msra.mxu0 0
        %1157 = vmatprep.mubr.bf16.mxu0 0
        %1158 = vmatmul.mubr.bf16.gmra.mrb[0].mxu0 %v1123
        %v1159 = vpop.f32.mrb[0].mxu0
        %v1160 = vadd.f32 0.0, %v1159
        %v1161 = vpop.f32.mrb[0].mxu0
        %v1162 = vpop.f32.mrb[0].mxu0
        %v1163 = vadd.f32 0.0, %v1162
        %v1164 = vpop.f32.mrb[0].mxu0
        %1165 = vdwg.mxu0
        %v1166 = vmul.f32 %v1095, %v1101
        %v1167 = vmul.f32 %v1098, %v1102
        %v1168 = vmul.f32 %v1160, %v1103
        %v1169 = vmul.f32 %v1163, %v1104
        %v1170 = vadd.f32 %v1166, %v1168
        %v1171 = vadd.f32 %v1167, %v1169
        %v1172 = vmul.f32 %v1170, 0.35355338
        %v1173 = vmul.f32 %v1171, 0.35355338
        %1175 = vrot.lane.b32.xlu0 %v1109, 96
        %v1176 = vpop.permute.xlu0 %1175
        %v1178 = vsel %vm989, %v1176, 0
        %1180 = vmatprep.subr.bf16.mxu0 0
        %1181 = vmatpush1.bf16.msra.mxu0 %v1118
        %1182 = vmatprep.subr.bf16.mxu0 0
        %1183 = vmatpush1.bf16.msra.mxu0 %v1119
        %1184 = vmatprep.subr.bf16.mxu0 0
        %1185 = vmatpush1.bf16.msra.mxu0 0
        %1186 = vmatprep.subr.bf16.mxu0 0
        %1187 = vmatpush1.bf16.msra.mxu0 0
        %1188 = vmatprep.subr.bf16.mxu0 0
        %1189 = vmatpush1.bf16.msra.mxu0 0
        %1190 = vmatprep.subr.bf16.mxu0 0
        %1191 = vmatpush1.bf16.msra.mxu0 0
        %1192 = vmatprep.subr.bf16.mxu0 0
        %1193 = vmatpush1.bf16.msra.mxu0 0
        %1194 = vmatprep.subr.bf16.mxu0 0
        %1195 = vmatpush1.bf16.msra.mxu0 0
        %1196 = vmatprep.subr.bf16.mxu0 0
        %1197 = vmatpush1.bf16.msra.mxu0 0
        %1198 = vmatprep.subr.bf16.mxu0 0
        %1199 = vmatpush1.bf16.msra.mxu0 0
        %1200 = vmatprep.subr.bf16.mxu0 0
        %1201 = vmatpush1.bf16.msra.mxu0 0
        %1202 = vmatprep.subr.bf16.mxu0 0
        %1203 = vmatpush1.bf16.msra.mxu0 0
        %1204 = vmatprep.subr.bf16.mxu0 0
        %1205 = vmatpush1.bf16.msra.mxu0 0
        %1206 = vmatprep.subr.bf16.mxu0 0
        %1207 = vmatpush1.bf16.msra.mxu0 0
        %1208 = vmatprep.subr.bf16.mxu0 0
        %1209 = vmatpush1.bf16.msra.mxu0 0
        %1210 = vmatprep.subr.bf16.mxu0 0
        %1211 = vmatpush1.bf16.msra.mxu0 0
        %1212 = vmatprep.mubr.bf16.mxu0 0
        %1213 = vmatmul.mubr.bf16.gmra.mrb[0].mxu0 %v1178
        %v1214 = vpop.f32.mrb[0].mxu0
        %v1215 = vadd.f32 0.0, %v1214
        %v1216 = vpop.f32.mrb[0].mxu0
        %v1217 = vpop.f32.mrb[0].mxu0
        %v1218 = vadd.f32 0.0, %v1217
        %v1219 = vpop.f32.mrb[0].mxu0
        %1220 = vdwg.mxu0
        %1223 = vrot.lane.b32.xlu0 %v1101, 32
        %v1224 = vpop.permute.xlu0 %1223
        %1225 = vrot.lane.b32.xlu0 %v1102, 32
        %v1226 = vpop.permute.xlu0 %1225
        %v1229 = vmul.f32 %v1095, %v1224
        %v1230 = vmul.f32 %v1098, %v1226
        %v1231 = vmul.f32 %v1215, %v1103
        %v1232 = vmul.f32 %v1218, %v1104
        %1235 = vrot.lane.b32.xlu0 %v1231, 32
        %v1236 = vpop.permute.xlu0 %1235
        %1237 = vrot.lane.b32.xlu0 %v1232, 32
        %v1238 = vpop.permute.xlu0 %1237
        %v1241 = vadd.f32 %v1229, %v1236
        %v1242 = vadd.f32 %v1230, %v1238
        %v1243 = vld [vmem:[%s5] sm:$0x1]
        %v1244 = vld [vmem:[%s5 + $0x1] sm:$0x1]
        %v1245 = vld [vmem:[%s5 + $0x2] sm:$0x1]
        %v1246 = vld [vmem:[%s5 + $0x3] sm:$0x1]
        %v1251 = vlaneseq
        %v1252 = vshrl.u32 %v1251, 7
        %v1253 = vsub.s32 0, %v1252
        %v1254 = vrot.slane %v1243, %v1253
        %v1255 = vlaneseq
        %v1256 = vshrl.u32 %v1255, 7
        %v1257 = vsub.s32 0, %v1256
        %v1258 = vrot.slane %v1244, %v1257
        %v1259 = vlaneseq
        %v1260 = vshrl.u32 %v1259, 7
        %v1261 = vsub.s32 0, %v1260
        %v1262 = vrot.slane %v1245, %v1261
        %v1263 = vlaneseq
        %v1264 = vshrl.u32 %v1263, 7
        %v1265 = vsub.s32 0, %v1264
        %v1266 = vrot.slane %v1246, %v1265
        %v1271 = vmul.f32 %v1172, %v1254
        %v1272 = vmul.f32 %v1173, %v1254
        %v1273 = vmul.f32 %v1172, %v1258
        %v1274 = vmul.f32 %v1173, %v1258
        %v1275 = vmul.f32 %v1172, %v1262
        %v1276 = vmul.f32 %v1173, %v1262
        %v1277 = vmul.f32 %v1172, %v1266
        %v1278 = vmul.f32 %v1173, %v1266
        %v1279 = vpack.c.bf16 %v1272, %v1271
        %v1280 = vpack.c.bf16 %v1274, %v1273
        %v1281 = vpack.c.bf16 %v1276, %v1275
        %v1282 = vpack.c.bf16 %v1278, %v1277
        %v1283 = vpack.c.bf16 %v1242, %v1241
        %v1284 = vld [vmem:[%s1] sm:$0xff]
        %v1285 = vld [vmem:[%s1 + $0x8] sm:$0xff]
        %1287 = vrot.lane.b32.xlu0 %v1283, 96
        %v1288 = vpop.permute.xlu0 %1287
        %v1290 = vsel %vm989, %v1279, 0
        %v1293 = vsel %vm989, %v1288, 0
        %1295 = vmatprep.subr.bf16.mxu0 0
        %1296 = vmatpush1.bf16.xpose.msra.mxu0 %v1293
        %1297 = vmatprep.subr.bf16.mxu0 0
        %1298 = vmatpush1.bf16.xpose.msra.mxu0 0
        %1299 = vmatprep.subr.bf16.mxu0 0
        %1300 = vmatpush1.bf16.xpose.msra.mxu0 0
        %1301 = vmatprep.subr.bf16.mxu0 0
        %1302 = vmatpush1.bf16.xpose.msra.mxu0 0
        %1303 = vmatprep.subr.bf16.mxu0 0
        %1304 = vmatpush1.bf16.xpose.msra.mxu0 0
        %1305 = vmatprep.subr.bf16.mxu0 0
        %1306 = vmatpush1.bf16.xpose.msra.mxu0 0
        %1307 = vmatprep.subr.bf16.mxu0 0
        %1308 = vmatpush1.bf16.xpose.msra.mxu0 0
        %1309 = vmatprep.subr.bf16.mxu0 0
        %1310 = vmatpush1.bf16.xpose.msra.mxu0 0
        %1311 = vmatprep.subr.bf16.mxu0 0
        %1312 = vmatpush1.bf16.xpose.msra.mxu0 0
        %1313 = vmatprep.subr.bf16.mxu0 0
        %1314 = vmatpush1.bf16.xpose.msra.mxu0 0
        %1315 = vmatprep.subr.bf16.mxu0 0
        %1316 = vmatpush1.bf16.xpose.msra.mxu0 0
        %1317 = vmatprep.subr.bf16.mxu0 0
        %1318 = vmatpush1.bf16.xpose.msra.mxu0 0
        %1319 = vmatprep.subr.bf16.mxu0 0
        %1320 = vmatpush1.bf16.xpose.msra.mxu0 0
        %1321 = vmatprep.subr.bf16.mxu0 0
        %1322 = vmatpush1.bf16.xpose.msra.mxu0 0
        %1323 = vmatprep.subr.bf16.mxu0 0
        %1324 = vmatpush1.bf16.xpose.msra.mxu0 0
        %1325 = vmatprep.subr.bf16.mxu0 0
        %1326 = vmatpush1.bf16.xpose.msra.mxu0 0
        %1327 = vmatprep.mubr.bf16.mxu0 0
        %1328 = vmatmul.mubr.bf16.gmra.mrb[0].mxu0 %v1290
        %v1329 = vpop.f32.mrb[0].mxu0
        %v1330 = vadd.f32 %v1284, %v1329
        %v1331 = vpop.f32.mrb[0].mxu0
        %v1332 = vpop.f32.mrb[0].mxu0
        %v1333 = vadd.f32 %v1285, %v1332
        %v1334 = vpop.f32.mrb[0].mxu0
        %1335 = vdwg.mxu0
        %v1337 = vsel %vm989, %v1280, 0
        %1339 = vmatprep.subr.bf16.mxu0 0
        %1340 = vmatpush1.bf16.xpose.msra.mxu0 %v1293
        %1341 = vmatprep.subr.bf16.mxu0 0
        %1342 = vmatpush1.bf16.xpose.msra.mxu0 0
        %1343 = vmatprep.subr.bf16.mxu0 0
        %1344 = vmatpush1.bf16.xpose.msra.mxu0 0
        %1345 = vmatprep.subr.bf16.mxu0 0
        %1346 = vmatpush1.bf16.xpose.msra.mxu0 0
        %1347 = vmatprep.subr.bf16.mxu0 0
        %1348 = vmatpush1.bf16.xpose.msra.mxu0 0
        %1349 = vmatprep.subr.bf16.mxu0 0
        %1350 = vmatpush1.bf16.xpose.msra.mxu0 0
        %1351 = vmatprep.subr.bf16.mxu0 0
        %1352 = vmatpush1.bf16.xpose.msra.mxu0 0
        %1353 = vmatprep.subr.bf16.mxu0 0
        %1354 = vmatpush1.bf16.xpose.msra.mxu0 0
        %1355 = vmatprep.subr.bf16.mxu0 0
        %1356 = vmatpush1.bf16.xpose.msra.mxu0 0
        %1357 = vmatprep.subr.bf16.mxu0 0
        %1358 = vmatpush1.bf16.xpose.msra.mxu0 0
        %1359 = vmatprep.subr.bf16.mxu0 0
        %1360 = vmatpush1.bf16.xpose.msra.mxu0 0
        %1361 = vmatprep.subr.bf16.mxu0 0
        %1362 = vmatpush1.bf16.xpose.msra.mxu0 0
        %1363 = vmatprep.subr.bf16.mxu0 0
        %1364 = vmatpush1.bf16.xpose.msra.mxu0 0
        %1365 = vmatprep.subr.bf16.mxu0 0
        %1366 = vmatpush1.bf16.xpose.msra.mxu0 0
        %1367 = vmatprep.subr.bf16.mxu0 0
        %1368 = vmatpush1.bf16.xpose.msra.mxu0 0
        %1369 = vmatprep.subr.bf16.mxu0 0
        %1370 = vmatpush1.bf16.xpose.msra.mxu0 0
        %1371 = vmatprep.mubr.bf16.mxu0 0
        %1372 = vmatmul.mubr.bf16.gmra.mrb[0].mxu0 %v1337
        %v1373 = vpop.f32.mrb[0].mxu0
        %v1374 = vadd.f32 %v1284, %v1373
        %v1375 = vpop.f32.mrb[0].mxu0
        %v1376 = vpop.f32.mrb[0].mxu0
        %v1377 = vadd.f32 %v1285, %v1376
        %v1378 = vpop.f32.mrb[0].mxu0
        %1379 = vdwg.mxu0
        %v1381 = vsel %vm989, %v1281, 0
        %1383 = vmatprep.subr.bf16.mxu0 0
        %1384 = vmatpush1.bf16.xpose.msra.mxu0 %v1293
        %1385 = vmatprep.subr.bf16.mxu0 0
        %1386 = vmatpush1.bf16.xpose.msra.mxu0 0
        %1387 = vmatprep.subr.bf16.mxu0 0
        %1388 = vmatpush1.bf16.xpose.msra.mxu0 0
        %1389 = vmatprep.subr.bf16.mxu0 0
        %1390 = vmatpush1.bf16.xpose.msra.mxu0 0
        %1391 = vmatprep.subr.bf16.mxu0 0
        %1392 = vmatpush1.bf16.xpose.msra.mxu0 0
        %1393 = vmatprep.subr.bf16.mxu0 0
        %1394 = vmatpush1.bf16.xpose.msra.mxu0 0
        %1395 = vmatprep.subr.bf16.mxu0 0
        %1396 = vmatpush1.bf16.xpose.msra.mxu0 0
        %1397 = vmatprep.subr.bf16.mxu0 0
        %1398 = vmatpush1.bf16.xpose.msra.mxu0 0
        %1399 = vmatprep.subr.bf16.mxu0 0
        %1400 = vmatpush1.bf16.xpose.msra.mxu0 0
        %1401 = vmatprep.subr.bf16.mxu0 0
        %1402 = vmatpush1.bf16.xpose.msra.mxu0 0
        %1403 = vmatprep.subr.bf16.mxu0 0
        %1404 = vmatpush1.bf16.xpose.msra.mxu0 0
        %1405 = vmatprep.subr.bf16.mxu0 0
        %1406 = vmatpush1.bf16.xpose.msra.mxu0 0
        %1407 = vmatprep.subr.bf16.mxu0 0
        %1408 = vmatpush1.bf16.xpose.msra.mxu0 0
        %1409 = vmatprep.subr.bf16.mxu0 0
        %1410 = vmatpush1.bf16.xpose.msra.mxu0 0
        %1411 = vmatprep.subr.bf16.mxu0 0
        %1412 = vmatpush1.bf16.xpose.msra.mxu0 0
        %1413 = vmatprep.subr.bf16.mxu0 0
        %1414 = vmatpush1.bf16.xpose.msra.mxu0 0
        %1415 = vmatprep.mubr.bf16.mxu0 0
        %1416 = vmatmul.mubr.bf16.gmra.mrb[0].mxu0 %v1381
        %v1417 = vpop.f32.mrb[0].mxu0
        %v1418 = vadd.f32 %v1284, %v1417
        %v1419 = vpop.f32.mrb[0].mxu0
        %v1420 = vpop.f32.mrb[0].mxu0
        %v1421 = vadd.f32 %v1285, %v1420
        %v1422 = vpop.f32.mrb[0].mxu0
        %1423 = vdwg.mxu0
        %v1425 = vsel %vm989, %v1282, 0
        %1427 = vmatprep.subr.bf16.mxu0 0
        %1428 = vmatpush1.bf16.xpose.msra.mxu0 %v1293
        %1429 = vmatprep.subr.bf16.mxu0 0
        %1430 = vmatpush1.bf16.xpose.msra.mxu0 0
        %1431 = vmatprep.subr.bf16.mxu0 0
        %1432 = vmatpush1.bf16.xpose.msra.mxu0 0
        %1433 = vmatprep.subr.bf16.mxu0 0
        %1434 = vmatpush1.bf16.xpose.msra.mxu0 0
        %1435 = vmatprep.subr.bf16.mxu0 0
        %1436 = vmatpush1.bf16.xpose.msra.mxu0 0
        %1437 = vmatprep.subr.bf16.mxu0 0
        %1438 = vmatpush1.bf16.xpose.msra.mxu0 0
        %1439 = vmatprep.subr.bf16.mxu0 0
        %1440 = vmatpush1.bf16.xpose.msra.mxu0 0
        %1441 = vmatprep.subr.bf16.mxu0 0
        %1442 = vmatpush1.bf16.xpose.msra.mxu0 0
        %1443 = vmatprep.subr.bf16.mxu0 0
        %1444 = vmatpush1.bf16.xpose.msra.mxu0 0
        %1445 = vmatprep.subr.bf16.mxu0 0
        %1446 = vmatpush1.bf16.xpose.msra.mxu0 0
        %1447 = vmatprep.subr.bf16.mxu0 0
        %1448 = vmatpush1.bf16.xpose.msra.mxu0 0
        %1449 = vmatprep.subr.bf16.mxu0 0
        %1450 = vmatpush1.bf16.xpose.msra.mxu0 0
        %1451 = vmatprep.subr.bf16.mxu0 0
        %1452 = vmatpush1.bf16.xpose.msra.mxu0 0
        %1453 = vmatprep.subr.bf16.mxu0 0
        %1454 = vmatpush1.bf16.xpose.msra.mxu0 0
        %1455 = vmatprep.subr.bf16.mxu0 0
        %1456 = vmatpush1.bf16.xpose.msra.mxu0 0
        %1457 = vmatprep.subr.bf16.mxu0 0
        %1458 = vmatpush1.bf16.xpose.msra.mxu0 0
        %1459 = vmatprep.mubr.bf16.mxu0 0
        %1460 = vmatmul.mubr.bf16.gmra.mrb[0].mxu0 %v1425
        %v1461 = vpop.f32.mrb[0].mxu0
        %v1462 = vadd.f32 %v1284, %v1461
        %v1463 = vpop.f32.mrb[0].mxu0
        %v1464 = vpop.f32.mrb[0].mxu0
        %v1465 = vadd.f32 %v1285, %v1464
        %v1466 = vpop.f32.mrb[0].mxu0
        %1467 = vdwg.mxu0
        %vm1468 = vcmask 130048
        %v1469 = vsel %vm1468, %v1330, -inf
        %1470 = vmax.xlane.f32.xlu0 %v1469
        %v1471 = vpop.xlane.xlu0 %1470
        %v1472 = vsel %vm1468, %v1333, -inf
        %1473 = vmax.xlane.f32.xlu0 %v1472
        %v1474 = vpop.xlane.xlu0 %1473
        %v1475 = vsel %vm1468, %v1374, -inf
        %1476 = vmax.xlane.f32.xlu0 %v1475
        %v1477 = vpop.xlane.xlu0 %1476
        %v1478 = vsel %vm1468, %v1377, -inf
        %1479 = vmax.xlane.f32.xlu0 %v1478
        %v1480 = vpop.xlane.xlu0 %1479
        %v1481 = vsel %vm1468, %v1418, -inf
        %1482 = vmax.xlane.f32.xlu0 %v1481
        %v1483 = vpop.xlane.xlu0 %1482
        %v1484 = vsel %vm1468, %v1421, -inf
        %1485 = vmax.xlane.f32.xlu0 %v1484
        %v1486 = vpop.xlane.xlu0 %1485
        %v1487 = vsel %vm1468, %v1462, -inf
        %1488 = vmax.xlane.f32.xlu0 %v1487
        %v1489 = vpop.xlane.xlu0 %1488
        %v1490 = vsel %vm1468, %v1465, -inf
        %1491 = vmax.xlane.f32.xlu0 %v1490
        %v1492 = vpop.xlane.xlu0 %1491
        %v1493 = vsub.f32 %v1330, %v1471
        %v1494 = vsub.f32 %v1333, %v1474
        %v1495 = vsub.f32 %v1374, %v1477
        %v1496 = vsub.f32 %v1377, %v1480
        %v1497 = vsub.f32 %v1418, %v1483
        %v1498 = vsub.f32 %v1421, %v1486
        %v1499 = vsub.f32 %v1462, %v1489
        %v1500 = vsub.f32 %v1465, %v1492
        %v1501 = vmul.f32 %v1493, 1.442695
        %v1502 = vpow.pop %v1501
        %v1503 = vmul.f32 %v1494, 1.442695
        %v1504 = vpow.pop %v1503
        %v1505 = vmul.f32 %v1495, 1.442695
        %v1506 = vpow.pop %v1505
        %v1507 = vmul.f32 %v1496, 1.442695
        %v1508 = vpow.pop %v1507
        %v1509 = vmul.f32 %v1497, 1.442695
        %v1510 = vpow.pop %v1509
        %v1511 = vmul.f32 %v1498, 1.442695
        %v1512 = vpow.pop %v1511
        %v1513 = vmul.f32 %v1499, 1.442695
        %v1514 = vpow.pop %v1513
        %v1515 = vmul.f32 %v1500, 1.442695
        %v1516 = vpow.pop %v1515
        %v1517 = vsel %vm1468, %v1502, 0.0
        %1518 = vadd.xlane.f32.xlu0 %v1517
        %v1519 = vpop.xlane.xlu0 %1518
        %v1520 = vsel %vm1468, %v1504, 0.0
        %1521 = vadd.xlane.f32.xlu0 %v1520
        %v1522 = vpop.xlane.xlu0 %1521
        %v1523 = vsel %vm1468, %v1506, 0.0
        %1524 = vadd.xlane.f32.xlu0 %v1523
        %v1525 = vpop.xlane.xlu0 %1524
        %v1526 = vsel %vm1468, %v1508, 0.0
        %1527 = vadd.xlane.f32.xlu0 %v1526
        %v1528 = vpop.xlane.xlu0 %1527
        %v1529 = vsel %vm1468, %v1510, 0.0
        %1530 = vadd.xlane.f32.xlu0 %v1529
        %v1531 = vpop.xlane.xlu0 %1530
        %v1532 = vsel %vm1468, %v1512, 0.0
        %1533 = vadd.xlane.f32.xlu0 %v1532
        %v1534 = vpop.xlane.xlu0 %1533
        %v1535 = vsel %vm1468, %v1514, 0.0
        %1536 = vadd.xlane.f32.xlu0 %v1535
        %v1537 = vpop.xlane.xlu0 %1536
        %v1538 = vsel %vm1468, %v1516, 0.0
        %1539 = vadd.xlane.f32.xlu0 %v1538
        %v1540 = vpop.xlane.xlu0 %1539
        %v1541 = vrcp.pop %v1519
        %v1542 = vrcp.pop %v1522
        %v1543 = vrcp.pop %v1525
        %v1544 = vrcp.pop %v1528
        %v1545 = vrcp.pop %v1531
        %v1546 = vrcp.pop %v1534
        %v1547 = vrcp.pop %v1537
        %v1548 = vrcp.pop %v1540
        %v1549 = vmul.f32 %v1502, %v1541
        %v1550 = vmul.f32 %v1504, %v1542
        %v1551 = vmul.f32 %v1506, %v1543
        %v1552 = vmul.f32 %v1508, %v1544
        %v1553 = vmul.f32 %v1510, %v1545
        %v1554 = vmul.f32 %v1512, %v1546
        %v1555 = vmul.f32 %v1514, %v1547
        %v1556 = vmul.f32 %v1516, %v1548
        %v1557 = vpack.c.bf16 %v1550, %v1549
        %v1558 = vpack.c.bf16 %v1552, %v1551
        %v1559 = vpack.c.bf16 %v1554, %v1553
        %v1560 = vpack.c.bf16 %v1556, %v1555
        %1561 = vrot.lane.b32.xlu0 %v1109, 64
        %v1562 = vpop.permute.xlu0 %1561
        %v1565 = vsel %vm1468, %v1557, 0
        %1567 = vmatprep.subr.bf16.mxu0 0
        %1568 = vmatpush1.bf16.msra.mxu0 %v1562
        %1569 = vmatprep.subr.bf16.mxu0 0
        %1570 = vmatpush1.bf16.msra.mxu0 0
        %1571 = vmatprep.subr.bf16.mxu0 0
        %1572 = vmatpush1.bf16.msra.mxu0 0
        %1573 = vmatprep.subr.bf16.mxu0 0
        %1574 = vmatpush1.bf16.msra.mxu0 0
        %1575 = vmatprep.subr.bf16.mxu0 0
        %1576 = vmatpush1.bf16.msra.mxu0 0
        %1577 = vmatprep.subr.bf16.mxu0 0
        %1578 = vmatpush1.bf16.msra.mxu0 0
        %1579 = vmatprep.subr.bf16.mxu0 0
        %1580 = vmatpush1.bf16.msra.mxu0 0
        %1581 = vmatprep.subr.bf16.mxu0 0
        %1582 = vmatpush1.bf16.msra.mxu0 0
        %1583 = vmatprep.subr.bf16.mxu0 0
        %1584 = vmatpush1.bf16.msra.mxu0 0
        %1585 = vmatprep.subr.bf16.mxu0 0
        %1586 = vmatpush1.bf16.msra.mxu0 0
        %1587 = vmatprep.subr.bf16.mxu0 0
        %1588 = vmatpush1.bf16.msra.mxu0 0
        %1589 = vmatprep.subr.bf16.mxu0 0
        %1590 = vmatpush1.bf16.msra.mxu0 0
        %1591 = vmatprep.subr.bf16.mxu0 0
        %1592 = vmatpush1.bf16.msra.mxu0 0
        %1593 = vmatprep.subr.bf16.mxu0 0
        %1594 = vmatpush1.bf16.msra.mxu0 0
        %1595 = vmatprep.subr.bf16.mxu0 0
        %1596 = vmatpush1.bf16.msra.mxu0 0
        %1597 = vmatprep.subr.bf16.mxu0 0
        %1598 = vmatpush1.bf16.msra.mxu0 0
        %1599 = vmatprep.mubr.bf16.mxu0 0
        %1600 = vmatmul.mubr.bf16.gmra.mrb[0].mxu0 %v1565
        %v1601 = vpop.f32.mrb[0].mxu0
        %v1602 = vadd.f32 0.0, %v1601
        %v1603 = vpop.f32.mrb[0].mxu0
        %v1604 = vpop.f32.mrb[0].mxu0
        %v1605 = vadd.f32 0.0, %v1604
        %v1606 = vpop.f32.mrb[0].mxu0
        %1607 = vdwg.mxu0
        %v1609 = vsel %vm1468, %v1558, 0
        %1611 = vmatprep.subr.bf16.mxu0 0
        %1612 = vmatpush1.bf16.msra.mxu0 %v1562
        %1613 = vmatprep.subr.bf16.mxu0 0
        %1614 = vmatpush1.bf16.msra.mxu0 0
        %1615 = vmatprep.subr.bf16.mxu0 0
        %1616 = vmatpush1.bf16.msra.mxu0 0
        %1617 = vmatprep.subr.bf16.mxu0 0
        %1618 = vmatpush1.bf16.msra.mxu0 0
        %1619 = vmatprep.subr.bf16.mxu0 0
        %1620 = vmatpush1.bf16.msra.mxu0 0
        %1621 = vmatprep.subr.bf16.mxu0 0
        %1622 = vmatpush1.bf16.msra.mxu0 0
        %1623 = vmatprep.subr.bf16.mxu0 0
        %1624 = vmatpush1.bf16.msra.mxu0 0
        %1625 = vmatprep.subr.bf16.mxu0 0
        %1626 = vmatpush1.bf16.msra.mxu0 0
        %1627 = vmatprep.subr.bf16.mxu0 0
        %1628 = vmatpush1.bf16.msra.mxu0 0
        %1629 = vmatprep.subr.bf16.mxu0 0
        %1630 = vmatpush1.bf16.msra.mxu0 0
        %1631 = vmatprep.subr.bf16.mxu0 0
        %1632 = vmatpush1.bf16.msra.mxu0 0
        %1633 = vmatprep.subr.bf16.mxu0 0
        %1634 = vmatpush1.bf16.msra.mxu0 0
        %1635 = vmatprep.subr.bf16.mxu0 0
        %1636 = vmatpush1.bf16.msra.mxu0 0
        %1637 = vmatprep.subr.bf16.mxu0 0
        %1638 = vmatpush1.bf16.msra.mxu0 0
        %1639 = vmatprep.subr.bf16.mxu0 0
        %1640 = vmatpush1.bf16.msra.mxu0 0
        %1641 = vmatprep.subr.bf16.mxu0 0
        %1642 = vmatpush1.bf16.msra.mxu0 0
        %1643 = vmatprep.mubr.bf16.mxu0 0
        %1644 = vmatmul.mubr.bf16.gmra.mrb[0].mxu0 %v1609
        %v1645 = vpop.f32.mrb[0].mxu0
        %v1646 = vadd.f32 0.0, %v1645
        %v1647 = vpop.f32.mrb[0].mxu0
        %v1648 = vpop.f32.mrb[0].mxu0
        %v1649 = vadd.f32 0.0, %v1648
        %v1650 = vpop.f32.mrb[0].mxu0
        %1651 = vdwg.mxu0
        %v1653 = vsel %vm1468, %v1559, 0
        %1655 = vmatprep.subr.bf16.mxu0 0
        %1656 = vmatpush1.bf16.msra.mxu0 %v1562
        %1657 = vmatprep.subr.bf16.mxu0 0
        %1658 = vmatpush1.bf16.msra.mxu0 0
        %1659 = vmatprep.subr.bf16.mxu0 0
        %1660 = vmatpush1.bf16.msra.mxu0 0
        %1661 = vmatprep.subr.bf16.mxu0 0
        %1662 = vmatpush1.bf16.msra.mxu0 0
        %1663 = vmatprep.subr.bf16.mxu0 0
        %1664 = vmatpush1.bf16.msra.mxu0 0
        %1665 = vmatprep.subr.bf16.mxu0 0
        %1666 = vmatpush1.bf16.msra.mxu0 0
        %1667 = vmatprep.subr.bf16.mxu0 0
        %1668 = vmatpush1.bf16.msra.mxu0 0
        %1669 = vmatprep.subr.bf16.mxu0 0
        %1670 = vmatpush1.bf16.msra.mxu0 0
        %1671 = vmatprep.subr.bf16.mxu0 0
        %1672 = vmatpush1.bf16.msra.mxu0 0
        %1673 = vmatprep.subr.bf16.mxu0 0
        %1674 = vmatpush1.bf16.msra.mxu0 0
        %1675 = vmatprep.subr.bf16.mxu0 0
        %1676 = vmatpush1.bf16.msra.mxu0 0
        %1677 = vmatprep.subr.bf16.mxu0 0
        %1678 = vmatpush1.bf16.msra.mxu0 0
        %1679 = vmatprep.subr.bf16.mxu0 0
        %1680 = vmatpush1.bf16.msra.mxu0 0
        %1681 = vmatprep.subr.bf16.mxu0 0
        %1682 = vmatpush1.bf16.msra.mxu0 0
        %1683 = vmatprep.subr.bf16.mxu0 0
        %1684 = vmatpush1.bf16.msra.mxu0 0
        %1685 = vmatprep.subr.bf16.mxu0 0
        %1686 = vmatpush1.bf16.msra.mxu0 0
        %1687 = vmatprep.mubr.bf16.mxu0 0
        %1688 = vmatmul.mubr.bf16.gmra.mrb[0].mxu0 %v1653
        %v1689 = vpop.f32.mrb[0].mxu0
        %v1690 = vadd.f32 0.0, %v1689
        %v1691 = vpop.f32.mrb[0].mxu0
        %v1692 = vpop.f32.mrb[0].mxu0
        %v1693 = vadd.f32 0.0, %v1692
        %v1694 = vpop.f32.mrb[0].mxu0
        %1695 = vdwg.mxu0
        %v1697 = vsel %vm1468, %v1560, 0
        %1699 = vmatprep.subr.bf16.mxu0 0
        %1700 = vmatpush1.bf16.msra.mxu0 %v1562
        %1701 = vmatprep.subr.bf16.mxu0 0
        %1702 = vmatpush1.bf16.msra.mxu0 0
        %1703 = vmatprep.subr.bf16.mxu0 0
        %1704 = vmatpush1.bf16.msra.mxu0 0
        %1705 = vmatprep.subr.bf16.mxu0 0
        %1706 = vmatpush1.bf16.msra.mxu0 0
        %1707 = vmatprep.subr.bf16.mxu0 0
        %1708 = vmatpush1.bf16.msra.mxu0 0
        %1709 = vmatprep.subr.bf16.mxu0 0
        %1710 = vmatpush1.bf16.msra.mxu0 0
        %1711 = vmatprep.subr.bf16.mxu0 0
        %1712 = vmatpush1.bf16.msra.mxu0 0
        %1713 = vmatprep.subr.bf16.mxu0 0
        %1714 = vmatpush1.bf16.msra.mxu0 0
        %1715 = vmatprep.subr.bf16.mxu0 0
        %1716 = vmatpush1.bf16.msra.mxu0 0
        %1717 = vmatprep.subr.bf16.mxu0 0
        %1718 = vmatpush1.bf16.msra.mxu0 0
        %1719 = vmatprep.subr.bf16.mxu0 0
        %1720 = vmatpush1.bf16.msra.mxu0 0
        %1721 = vmatprep.subr.bf16.mxu0 0
        %1722 = vmatpush1.bf16.msra.mxu0 0
        %1723 = vmatprep.subr.bf16.mxu0 0
        %1724 = vmatpush1.bf16.msra.mxu0 0
        %1725 = vmatprep.subr.bf16.mxu0 0
        %1726 = vmatpush1.bf16.msra.mxu0 0
        %1727 = vmatprep.subr.bf16.mxu0 0
        %1728 = vmatpush1.bf16.msra.mxu0 0
        %1729 = vmatprep.subr.bf16.mxu0 0
        %1730 = vmatpush1.bf16.msra.mxu0 0
        %1731 = vmatprep.mubr.bf16.mxu0 0
        %1732 = vmatmul.mubr.bf16.gmra.mrb[0].mxu0 %v1697
        %v1733 = vpop.f32.mrb[0].mxu0
        %v1734 = vadd.f32 0.0, %v1733
        %v1735 = vpop.f32.mrb[0].mxu0
        %v1736 = vpop.f32.mrb[0].mxu0
        %v1737 = vadd.f32 0.0, %v1736
        %v1738 = vpop.f32.mrb[0].mxu0
        %1739 = vdwg.mxu0
        %v1740 = vmul.f32 %v1602, %v1254
        %v1741 = vmul.f32 %v1605, %v1254
        %v1742 = vmul.f32 %v1646, %v1258
        %v1743 = vmul.f32 %v1649, %v1258
        %v1744 = vmul.f32 %v1690, %v1262
        %v1745 = vmul.f32 %v1693, %v1262
        %v1746 = vmul.f32 %v1734, %v1266
        %v1747 = vmul.f32 %v1737, %v1266
        %v1748 = vsel %vm989, %v1740, 0.0
        %v1749 = vsel %vm989, %v1742, 0.0
        %v1750 = vadd.f32 %v1748, %v1749
        %v1751 = vsel %vm989, %v1744, 0.0
        %v1752 = vadd.f32 %v1750, %v1751
        %v1753 = vsel %vm989, %v1746, 0.0
        %v1754 = vadd.f32 %v1752, %v1753
        %v1755 = vsel %vm989, %v1741, 0.0
        %v1756 = vsel %vm989, %v1743, 0.0
        %v1757 = vadd.f32 %v1755, %v1756
        %v1758 = vsel %vm989, %v1745, 0.0
        %v1759 = vadd.f32 %v1757, %v1758
        %v1760 = vsel %vm989, %v1747, 0.0
        %v1761 = vadd.f32 %v1759, %v1760
        %v1762 = vld [vmem:[%s949] sm:$0xf]
        %v1763 = vld [vmem:[%s949 + $0x4] sm:$0xf]
        %v1764 = vld [vmem:[%s949 + $0x8] sm:$0xf]
        %v1765 = vld [vmem:[%s949 + $0xc] sm:$0xf]
        %v1766 = vpack.c.bf16 %v1761, %v1754
        %v1771 = vunpack.c.l.b16 %v1762
        %v1772 = vunpack.c.l.b16 %v1763
        %v1773 = vunpack.c.l.b16 %v1764
        %v1774 = vunpack.c.l.b16 %v1765
        %v1775 = vpack.c.b16 %v1772, %v1771
        %v1776 = vpack.c.b16 %v1774, %v1773
        %v1780 = vsel %vm989, %v1766, 0
        %1782 = vmatprep.subr.bf16.mxu0 0
        %1783 = vmatpush1.bf16.msra.mxu0 %v1775
        %1784 = vmatprep.subr.bf16.mxu0 0
        %1785 = vmatpush1.bf16.msra.mxu0 %v1776
        %1786 = vmatprep.subr.bf16.mxu0 0
        %1787 = vmatpush1.bf16.msra.mxu0 0
        %1788 = vmatprep.subr.bf16.mxu0 0
        %1789 = vmatpush1.bf16.msra.mxu0 0
        %1790 = vmatprep.subr.bf16.mxu0 0
        %1791 = vmatpush1.bf16.msra.mxu0 0
        %1792 = vmatprep.subr.bf16.mxu0 0
        %1793 = vmatpush1.bf16.msra.mxu0 0
        %1794 = vmatprep.subr.bf16.mxu0 0
        %1795 = vmatpush1.bf16.msra.mxu0 0
        %1796 = vmatprep.subr.bf16.mxu0 0
        %1797 = vmatpush1.bf16.msra.mxu0 0
        %1798 = vmatprep.subr.bf16.mxu0 0
        %1799 = vmatpush1.bf16.msra.mxu0 0
        %1800 = vmatprep.subr.bf16.mxu0 0
        %1801 = vmatpush1.bf16.msra.mxu0 0
        %1802 = vmatprep.subr.bf16.mxu0 0
        %1803 = vmatpush1.bf16.msra.mxu0 0
        %1804 = vmatprep.subr.bf16.mxu0 0
        %1805 = vmatpush1.bf16.msra.mxu0 0
        %1806 = vmatprep.subr.bf16.mxu0 0
        %1807 = vmatpush1.bf16.msra.mxu0 0
        %1808 = vmatprep.subr.bf16.mxu0 0
        %1809 = vmatpush1.bf16.msra.mxu0 0
        %1810 = vmatprep.subr.bf16.mxu0 0
        %1811 = vmatpush1.bf16.msra.mxu0 0
        %1812 = vmatprep.subr.bf16.mxu0 0
        %1813 = vmatpush1.bf16.msra.mxu0 0
        %1814 = vmatprep.mubr.bf16.mxu0 0
        %1815 = vmatmul.mubr.bf16.gmra.mrb[0].mxu0 %v1780
        %v1816 = vpop.f32.mrb[0].mxu0
        %v1817 = vadd.f32 0.0, %v1816
        %v1818 = vpop.f32.mrb[0].mxu0
        %v1819 = vpop.f32.mrb[0].mxu0
        %v1820 = vadd.f32 0.0, %v1819
        %v1821 = vpop.f32.mrb[0].mxu0
        %1822 = vdwg.mxu0
        %v1823 = vadd.f32 %v985, %v1817
        %v1824 = vadd.f32 %v986, %v1820
        %v1825 = vld [vmem:[%s952] sm:$0x1]
        %v1827 = vlaneseq
        %v1828 = vshrl.u32 %v1827, 7
        %v1829 = vsub.s32 0, %v1828
        %v1830 = vrot.slane %v1825, %v1829
        %v1832 = vadd.f32 %v1823, %v1830
        %v1833 = vadd.f32 %v1824, %v1830
        %v1834 = vld [vmem:[%s955] sm:$0x1]
        %v1835 = vld [vmem:[%s958] sm:$0x1]
        %v1836 = vsel %vm989, %v1832, 0.0
        %1837 = vadd.xlane.f32.xlu0 %v1836
        %v1838 = vpop.xlane.xlu0 %1837
        %v1839 = vsel %vm989, %v1833, 0.0
        %1840 = vadd.xlane.f32.xlu0 %v1839
        %v1841 = vpop.xlane.xlu0 %1840
        %v1842 = vmul.f32 %v1838, %v996
        %v1843 = vmul.f32 %v1841, %v996
        %v1844 = vsub.f32 %v1832, %v1842
        %v1845 = vsub.f32 %v1833, %v1843
        %v1846 = vmul.f32 %v1844, %v1844
        %v1847 = vmul.f32 %v1845, %v1845
        %v1848 = vsel %vm989, %v1846, 0.0
        %1849 = vadd.xlane.f32.xlu0 %v1848
        %v1850 = vpop.xlane.xlu0 %1849
        %v1851 = vsel %vm989, %v1847, 0.0
        %1852 = vadd.xlane.f32.xlu0 %v1851
        %v1853 = vpop.xlane.xlu0 %1852
        %v1854 = vmul.f32 %v1850, %v996
        %v1855 = vmul.f32 %v1853, %v996
        %v1856 = vadd.f32 %v1854, 1e-05
        %v1857 = vadd.f32 %v1855, 1e-05
        %v1858 = vrsqrt.pop %v1856
        %v1859 = vrsqrt.pop %v1857
        %v1860 = vmul.f32 %v1844, %v1858
        %v1861 = vmul.f32 %v1845, %v1859
        %v1863 = vlaneseq
        %v1864 = vshrl.u32 %v1863, 7
        %v1865 = vsub.s32 0, %v1864
        %v1866 = vrot.slane %v1834, %v1865
        %v1868 = vmul.f32 %v1860, %v1866
        %v1869 = vmul.f32 %v1861, %v1866
        %v1871 = vlaneseq
        %v1872 = vshrl.u32 %v1871, 7
        %v1873 = vsub.s32 0, %v1872
        %v1874 = vrot.slane %v1835, %v1873
        %v1876 = vadd.f32 %v1868, %v1874
        %v1877 = vadd.f32 %v1869, %v1874
        %v1878 = vld [vmem:[%s963] sm:$0xf]
        %v1879 = vld [vmem:[%s963 + $0x4] sm:$0xf]
        %v1880 = vld [vmem:[%s963 + $0x8] sm:$0xf]
        %v1881 = vld [vmem:[%s963 + $0xc] sm:$0xf]
        %v1882 = vpack.c.bf16 %v1877, %v1876
        %v1883 = vld [vmem:[%s966] sm:$0x1]
        %v1885 = vlaneseq
        %v1886 = vshrl.u32 %v1885, 7
        %v1887 = vsub.s32 0, %v1886
        %v1888 = vrot.slane %v1883, %v1887
        %v1894 = vunpack.c.l.b16 %v1878
        %v1895 = vunpack.c.l.b16 %v1879
        %v1896 = vunpack.c.l.b16 %v1880
        %v1897 = vunpack.c.l.b16 %v1881
        %v1898 = vpack.c.b16 %v1895, %v1894
        %v1899 = vpack.c.b16 %v1897, %v1896
        %v1903 = vsel %vm989, %v1882, 0
        %1905 = vmatprep.subr.bf16.mxu0 0
        %1906 = vmatpush1.bf16.msra.mxu0 %v1898
        %1907 = vmatprep.subr.bf16.mxu0 0
        %1908 = vmatpush1.bf16.msra.mxu0 %v1899
        %1909 = vmatprep.subr.bf16.mxu0 0
        %1910 = vmatpush1.bf16.msra.mxu0 0
        %1911 = vmatprep.subr.bf16.mxu0 0
        %1912 = vmatpush1.bf16.msra.mxu0 0
        %1913 = vmatprep.subr.bf16.mxu0 0
        %1914 = vmatpush1.bf16.msra.mxu0 0
        %1915 = vmatprep.subr.bf16.mxu0 0
        %1916 = vmatpush1.bf16.msra.mxu0 0
        %1917 = vmatprep.subr.bf16.mxu0 0
        %1918 = vmatpush1.bf16.msra.mxu0 0
        %1919 = vmatprep.subr.bf16.mxu0 0
        %1920 = vmatpush1.bf16.msra.mxu0 0
        %1921 = vmatprep.subr.bf16.mxu0 0
        %1922 = vmatpush1.bf16.msra.mxu0 0
        %1923 = vmatprep.subr.bf16.mxu0 0
        %1924 = vmatpush1.bf16.msra.mxu0 0
        %1925 = vmatprep.subr.bf16.mxu0 0
        %1926 = vmatpush1.bf16.msra.mxu0 0
        %1927 = vmatprep.subr.bf16.mxu0 0
        %1928 = vmatpush1.bf16.msra.mxu0 0
        %1929 = vmatprep.subr.bf16.mxu0 0
        %1930 = vmatpush1.bf16.msra.mxu0 0
        %1931 = vmatprep.subr.bf16.mxu0 0
        %1932 = vmatpush1.bf16.msra.mxu0 0
        %1933 = vmatprep.subr.bf16.mxu0 0
        %1934 = vmatpush1.bf16.msra.mxu0 0
        %1935 = vmatprep.subr.bf16.mxu0 0
        %1936 = vmatpush1.bf16.msra.mxu0 0
        %1937 = vmatprep.mubr.bf16.mxu0 0
        %1938 = vmatmul.mubr.bf16.gmra.mrb[0].mxu0 %v1903
        %v1939 = vpop.f32.mrb[0].mxu0
        %v1940 = vadd.f32 %v1888, %v1939
        %v1941 = vpop.f32.mrb[0].mxu0
        %v1942 = vpop.f32.mrb[0].mxu0
        %v1943 = vadd.f32 %v1888, %v1942
        %v1944 = vpop.f32.mrb[0].mxu0
        %1945 = vdwg.mxu0
        %v1946 = vxor.u32 %v1940, 2147483648
        %v1947 = vxor.u32 %v1943, 2147483648
        %v1948 = vmul.f32 %v1946, 1.442695
        %v1949 = vpow.pop %v1948
        %v1950 = vmul.f32 %v1947, 1.442695
        %v1951 = vpow.pop %v1950
        %v1952 = vadd.f32 %v1949, 1.0
        %v1953 = vadd.f32 %v1951, 1.0
        %v1954 = vrcp.pop %v1952
        %v1955 = vmul.f32 1.0, %v1954
        %v1956 = vrcp.pop %v1953
        %v1957 = vmul.f32 1.0, %v1956
        %v1958 = vmul.f32 %v1940, %v1955
        %v1959 = vmul.f32 %v1943, %v1957
        %1962 = vrot.lane.b32.xlu0 %v1940, 64
        %v1963 = vpop.permute.xlu0 %1962
        %1964 = vrot.lane.b32.xlu0 %v1943, 64
        %v1965 = vpop.permute.xlu0 %1964
        %v1968 = vmul.f32 %v1958, %v1963
        %v1969 = vmul.f32 %v1959, %v1965
        %v1970 = vld [vmem:[%s971] sm:$0xf]
        %v1971 = vld [vmem:[%s971 + $0x4] sm:$0xf]
        %v1972 = vld [vmem:[%s971 + $0x8] sm:$0xf]
        %v1973 = vld [vmem:[%s971 + $0xc] sm:$0xf]
        %v1974 = vld [vmem:[%s971 + $0x10] sm:$0xf]
        %v1975 = vld [vmem:[%s971 + $0x14] sm:$0xf]
        %v1976 = vld [vmem:[%s971 + $0x18] sm:$0xf]
        %v1977 = vld [vmem:[%s971 + $0x1c] sm:$0xf]
        %v1978 = vpack.c.bf16 %v1969, %v1968
        %v1987 = vunpack.c.l.b16 %v1970
        %v1988 = vunpack.c.l.b16 %v1971
        %v1989 = vunpack.c.l.b16 %v1972
        %v1990 = vunpack.c.l.b16 %v1973
        %v1991 = vunpack.c.l.b16 %v1974
        %v1992 = vunpack.c.l.b16 %v1975
        %v1993 = vunpack.c.l.b16 %v1976
        %v1994 = vunpack.c.l.b16 %v1977
        %v1995 = vpack.c.b16 %v1988, %v1987
        %v1996 = vpack.c.b16 %v1990, %v1989
        %v1997 = vpack.c.b16 %v1992, %v1991
        %v1998 = vpack.c.b16 %v1994, %v1993
        %vm2003 = vcmask 523264
        %v2005 = vsel %vm2003, %v1978, 0
        %2007 = vmatprep.subr.bf16.mxu0 0
        %2008 = vmatpush1.bf16.msra.mxu0 %v1995
        %2009 = vmatprep.subr.bf16.mxu0 0
        %2010 = vmatpush1.bf16.msra.mxu0 %v1996
        %2011 = vmatprep.subr.bf16.mxu0 0
        %2012 = vmatpush1.bf16.msra.mxu0 %v1997
        %2013 = vmatprep.subr.bf16.mxu0 0
        %2014 = vmatpush1.bf16.msra.mxu0 %v1998
        %2015 = vmatprep.subr.bf16.mxu0 0
        %2016 = vmatpush1.bf16.msra.mxu0 0
        %2017 = vmatprep.subr.bf16.mxu0 0
        %2018 = vmatpush1.bf16.msra.mxu0 0
        %2019 = vmatprep.subr.bf16.mxu0 0
        %2020 = vmatpush1.bf16.msra.mxu0 0
        %2021 = vmatprep.subr.bf16.mxu0 0
        %2022 = vmatpush1.bf16.msra.mxu0 0
        %2023 = vmatprep.subr.bf16.mxu0 0
        %2024 = vmatpush1.bf16.msra.mxu0 0
        %2025 = vmatprep.subr.bf16.mxu0 0
        %2026 = vmatpush1.bf16.msra.mxu0 0
        %2027 = vmatprep.subr.bf16.mxu0 0
        %2028 = vmatpush1.bf16.msra.mxu0 0
        %2029 = vmatprep.subr.bf16.mxu0 0
        %2030 = vmatpush1.bf16.msra.mxu0 0
        %2031 = vmatprep.subr.bf16.mxu0 0
        %2032 = vmatpush1.bf16.msra.mxu0 0
        %2033 = vmatprep.subr.bf16.mxu0 0
        %2034 = vmatpush1.bf16.msra.mxu0 0
        %2035 = vmatprep.subr.bf16.mxu0 0
        %2036 = vmatpush1.bf16.msra.mxu0 0
        %2037 = vmatprep.subr.bf16.mxu0 0
        %2038 = vmatpush1.bf16.msra.mxu0 0
        %2039 = vmatprep.mubr.bf16.mxu0 0
        %2040 = vmatmul.mubr.bf16.gmra.mrb[0].mxu0 %v2005
        %v2041 = vpop.f32.mrb[0].mxu0
        %v2042 = vadd.f32 0.0, %v2041
        %v2043 = vpop.f32.mrb[0].mxu0
        %v2044 = vpop.f32.mrb[0].mxu0
        %v2045 = vadd.f32 0.0, %v2044
        %v2046 = vpop.f32.mrb[0].mxu0
        %2047 = vdwg.mxu0
        %v2048 = vadd.f32 %v1832, %v2042
        %v2049 = vadd.f32 %v1833, %v2045
        %v2050 = vld [vmem:[%s974] sm:$0x1]
        %v2052 = vlaneseq
        %v2053 = vshrl.u32 %v2052, 7
        %v2054 = vsub.s32 0, %v2053
        %v2055 = vrot.slane %v2050, %v2054
        %v2057 = vadd.f32 %v2048, %v2055
        %v2058 = vadd.f32 %v2049, %v2055
        %2059 = vst.msk [vmem:[#allocation2] sm:$0xff] %vm989, %v2057
        %2060 = vst.msk [vmem:[#allocation2 + $0x8] sm:$0xff] %vm989, %v2058
        %p2061 = scmp.eq.s32.totalorder %s40, 1
        // Predicated region
        $region129: #{rinalmo_forward.1} parent=123 // pred_check
          %p2062 = pneg %p2061
        $region130: #{rinalmo_forward.1} parent=123 // pred_check_branch
          %2064 = sbr.rel (%p2062) target = $region132
        $region131: #{rinalmo_forward.1} parent=123 // pred_region
          %v2065 = vld [vmem:[%s18] sm:$0x1]
          %v2066 = vld [vmem:[%s19] sm:$0x1]
          %v2067 = vsel %vm989, %v2057, 0.0
          %2068 = vadd.xlane.f32.xlu0 %v2067
          %v2069 = vpop.xlane.xlu0 %2068
          %v2070 = vsel %vm989, %v2058, 0.0
          %2071 = vadd.xlane.f32.xlu0 %v2070
          %v2072 = vpop.xlane.xlu0 %2071
          %v2073 = vmul.f32 %v2069, %v996
          %v2074 = vmul.f32 %v2072, %v996
          %v2075 = vsub.f32 %v2057, %v2073
          %v2076 = vsub.f32 %v2058, %v2074
          %v2077 = vmul.f32 %v2075, %v2075
          %v2078 = vmul.f32 %v2076, %v2076
          %v2079 = vsel %vm989, %v2077, 0.0
          %2080 = vadd.xlane.f32.xlu0 %v2079
          %v2081 = vpop.xlane.xlu0 %2080
          %v2082 = vsel %vm989, %v2078, 0.0
          %2083 = vadd.xlane.f32.xlu0 %v2082
          %v2084 = vpop.xlane.xlu0 %2083
          %v2085 = vmul.f32 %v2081, %v996
          %v2086 = vmul.f32 %v2084, %v996
          %v2087 = vadd.f32 %v2085, 1e-05
          %v2088 = vadd.f32 %v2086, 1e-05
          %v2089 = vrsqrt.pop %v2087
          %v2090 = vrsqrt.pop %v2088
          %v2091 = vmul.f32 %v2075, %v2089
          %v2092 = vmul.f32 %v2076, %v2090
          %v2094 = vlaneseq
          %v2095 = vshrl.u32 %v2094, 7
          %v2096 = vsub.s32 0, %v2095
          %v2097 = vrot.slane %v2065, %v2096
          %v2099 = vmul.f32 %v2091, %v2097
          %v2100 = vmul.f32 %v2092, %v2097
          %v2102 = vlaneseq
          %v2103 = vshrl.u32 %v2102, 7
          %v2104 = vsub.s32 0, %v2103
          %v2105 = vrot.slane %v2066, %v2104
          %v2107 = vadd.f32 %v2099, %v2105
          %v2108 = vadd.f32 %v2100, %v2105
          %2109 = vst.msk [vmem:[#allocation3] sm:$0xff] %vm989, %v2107
          %2110 = vst.msk [vmem:[#allocation3 + $0x8] sm:$0xff] %vm989, %v2108
          %v2111 = vld [vmem:[%s20] sm:$0xf]
          %v2112 = vld [vmem:[%s20 + $0x4] sm:$0xf]
          %v2113 = vld [vmem:[%s20 + $0x8] sm:$0xf]
          %v2114 = vld [vmem:[%s20 + $0xc] sm:$0xf]
          %v2115 = vpack.c.bf16 %v2108, %v2107
          %v2116 = vld [vmem:[%s21] sm:$0x1]
          %v2118 = vlaneseq
          %v2119 = vshrl.u32 %v2118, 7
          %v2120 = vsub.s32 0, %v2119
          %v2121 = vrot.slane %v2116, %v2120
          %v2127 = vunpack.c.l.b16 %v2111
          %v2128 = vunpack.c.l.b16 %v2112
          %v2129 = vunpack.c.l.b16 %v2113
          %v2130 = vunpack.c.l.b16 %v2114
          %v2131 = vpack.c.b16 %v2128, %v2127
          %v2132 = vpack.c.b16 %v2130, %v2129
          %v2136 = vsel %vm989, %v2115, 0
          %2138 = vmatprep.subr.bf16.mxu0 0
          %2139 = vmatpush1.bf16.msra.mxu0 %v2131
          %2140 = vmatprep.subr.bf16.mxu0 0
          %2141 = vmatpush1.bf16.msra.mxu0 %v2132
          %2142 = vmatprep.subr.bf16.mxu0 0
          %2143 = vmatpush1.bf16.msra.mxu0 0
          %2144 = vmatprep.subr.bf16.mxu0 0
          %2145 = vmatpush1.bf16.msra.mxu0 0
          %2146 = vmatprep.subr.bf16.mxu0 0
          %2147 = vmatpush1.bf16.msra.mxu0 0
          %2148 = vmatprep.subr.bf16.mxu0 0
          %2149 = vmatpush1.bf16.msra.mxu0 0
          %2150 = vmatprep.subr.bf16.mxu0 0
          %2151 = vmatpush1.bf16.msra.mxu0 0
          %2152 = vmatprep.subr.bf16.mxu0 0
          %2153 = vmatpush1.bf16.msra.mxu0 0
          %2154 = vmatprep.subr.bf16.mxu0 0
          %2155 = vmatpush1.bf16.msra.mxu0 0
          %2156 = vmatprep.subr.bf16.mxu0 0
          %2157 = vmatpush1.bf16.msra.mxu0 0
          %2158 = vmatprep.subr.bf16.mxu0 0
          %2159 = vmatpush1.bf16.msra.mxu0 0
          %2160 = vmatprep.subr.bf16.mxu0 0
          %2161 = vmatpush1.bf16.msra.mxu0 0
          %2162 = vmatprep.subr.bf16.mxu0 0
          %2163 = vmatpush1.bf16.msra.mxu0 0
          %2164 = vmatprep.subr.bf16.mxu0 0
          %2165 = vmatpush1.bf16.msra.mxu0 0
          %2166 = vmatprep.subr.bf16.mxu0 0
          %2167 = vmatpush1.bf16.msra.mxu0 0
          %2168 = vmatprep.subr.bf16.mxu0 0
          %2169 = vmatpush1.bf16.msra.mxu0 0
          %2170 = vmatprep.mubr.bf16.mxu0 0
          %2171 = vmatmul.mubr.bf16.gmra.mrb[0].mxu0 %v2136
          %v2172 = vpop.f32.mrb[0].mxu0
          %v2173 = vadd.f32 %v2121, %v2172
          %v2174 = vpop.f32.mrb[0].mxu0
          %v2175 = vpop.f32.mrb[0].mxu0
          %v2176 = vadd.f32 %v2121, %v2175
          %v2177 = vpop.f32.mrb[0].mxu0
          %2178 = vdwg.mxu0
          %v2179 = vmul.f32 %v2173, %v2173
          %v2180 = vmul.f32 %v2176, %v2176
          %v2181 = vmul.f32 %v2173, %v2179
          %v2182 = vmul.f32 %v2176, %v2180
          %v2183 = vmul.f32 %v2181, 0.044715
          %v2184 = vmul.f32 %v2182, 0.044715
          %v2185 = vadd.f32 %v2173, %v2183
          %v2186 = vadd.f32 %v2176, %v2184
          %v2187 = vmul.f32 %v2185, 0.7978846
          %v2188 = vmul.f32 %v2186, 0.7978846
          %v2189 = vtanh.pop %v2187
          %v2190 = vtanh.pop %v2188
          %v2191 = vadd.f32 %v2189, 1.0
          %v2192 = vadd.f32 %v2190, 1.0
          %v2193 = vmul.f32 %v2191, 0.5
          %v2194 = vmul.f32 %v2192, 0.5
          %v2195 = vmul.f32 %v2173, %v2193
          %v2196 = vmul.f32 %v2176, %v2194
          %v2197 = vld [vmem:[%s22] sm:$0x1]
          %v2198 = vld [vmem:[%s23] sm:$0x1]
          %v2199 = vsel %vm989, %v2195, 0.0
          %2200 = vadd.xlane.f32.xlu0 %v2199
          %v2201 = vpop.xlane.xlu0 %2200
          %v2202 = vsel %vm989, %v2196, 0.0
          %2203 = vadd.xlane.f32.xlu0 %v2202
          %v2204 = vpop.xlane.xlu0 %2203
          %v2205 = vmul.f32 %v2201, %v996
          %v2206 = vmul.f32 %v2204, %v996
          %v2207 = vsub.f32 %v2195, %v2205
          %v2208 = vsub.f32 %v2196, %v2206
          %v2209 = vmul.f32 %v2207, %v2207
          %v2210 = vmul.f32 %v2208, %v2208
          %v2211 = vsel %vm989, %v2209, 0.0
          %2212 = vadd.xlane.f32.xlu0 %v2211
          %v2213 = vpop.xlane.xlu0 %2212
          %v2214 = vsel %vm989, %v2210, 0.0
          %2215 = vadd.xlane.f32.xlu0 %v2214
          %v2216 = vpop.xlane.xlu0 %2215
          %v2217 = vmul.f32 %v2213, %v996
          %v2218 = vmul.f32 %v2216, %v996
          %v2219 = vadd.f32 %v2217, 1e-05
          %v2220 = vadd.f32 %v2218, 1e-05
          %v2221 = vrsqrt.pop %v2219
          %v2222 = vrsqrt.pop %v2220
          %v2223 = vmul.f32 %v2207, %v2221
          %v2224 = vmul.f32 %v2208, %v2222
          %v2226 = vlaneseq
          %v2227 = vshrl.u32 %v2226, 7
          %v2228 = vsub.s32 0, %v2227
          %v2229 = vrot.slane %v2197, %v2228
          %v2231 = vmul.f32 %v2223, %v2229
          %v2232 = vmul.f32 %v2224, %v2229
          %v2234 = vlaneseq
          %v2235 = vshrl.u32 %v2234, 7
          %v2236 = vsub.s32 0, %v2235
          %v2237 = vrot.slane %v2198, %v2236
          %v2239 = vadd.f32 %v2231, %v2237
          %v2240 = vadd.f32 %v2232, %v2237
          %v2241 = vld [vmem:[%s24] sm:$0xf]
          %v2242 = vld [vmem:[%s24 + $0x4] sm:$0xf]
          %v2243 = vld [vmem:[%s24 + $0x8] sm:$0xf]
          %v2244 = vld [vmem:[%s24 + $0xc] sm:$0xf]
          %v2245 = vpack.c.bf16 %v2240, %v2239
          %v2246 = vld [vmem:[%s25] sm:$0x1]
          %v2248 = vlaneseq
          %v2249 = vshrl.u32 %v2248, 7
          %v2250 = vsub.s32 0, %v2249
          %v2251 = vrot.slane %v2246, %v2250
          %v2257 = vunpack.c.l.b16 %v2241
          %v2258 = vunpack.c.l.b16 %v2242
          %v2259 = vunpack.c.l.b16 %v2243
          %v2260 = vunpack.c.l.b16 %v2244
          %v2261 = vpack.c.b16 %v2258, %v2257
          %v2262 = vpack.c.b16 %v2260, %v2259
          %v2266 = vsel %vm989, %v2245, 0
          %2268 = vmatprep.subr.bf16.mxu0 0
          %2269 = vmatpush1.bf16.msra.mxu0 %v2261
          %2270 = vmatprep.subr.bf16.mxu0 0
          %2271 = vmatpush1.bf16.msra.mxu0 %v2262
          %2272 = vmatprep.subr.bf16.mxu0 0
          %2273 = vmatpush1.bf16.msra.mxu0 0
          %2274 = vmatprep.subr.bf16.mxu0 0
          %2275 = vmatpush1.bf16.msra.mxu0 0
          %2276 = vmatprep.subr.bf16.mxu0 0
          %2277 = vmatpush1.bf16.msra.mxu0 0
          %2278 = vmatprep.subr.bf16.mxu0 0
          %2279 = vmatpush1.bf16.msra.mxu0 0
          %2280 = vmatprep.subr.bf16.mxu0 0
          %2281 = vmatpush1.bf16.msra.mxu0 0
          %2282 = vmatprep.subr.bf16.mxu0 0
          %2283 = vmatpush1.bf16.msra.mxu0 0
          %2284 = vmatprep.subr.bf16.mxu0 0
          %2285 = vmatpush1.bf16.msra.mxu0 0
          %2286 = vmatprep.subr.bf16.mxu0 0
          %2287 = vmatpush1.bf16.msra.mxu0 0
          %2288 = vmatprep.subr.bf16.mxu0 0
          %2289 = vmatpush1.bf16.msra.mxu0 0
          %2290 = vmatprep.subr.bf16.mxu0 0
          %2291 = vmatpush1.bf16.msra.mxu0 0
          %2292 = vmatprep.subr.bf16.mxu0 0
          %2293 = vmatpush1.bf16.msra.mxu0 0
          %2294 = vmatprep.subr.bf16.mxu0 0
          %2295 = vmatpush1.bf16.msra.mxu0 0
          %2296 = vmatprep.subr.bf16.mxu0 0
          %2297 = vmatpush1.bf16.msra.mxu0 0
          %2298 = vmatprep.subr.bf16.mxu0 0
          %2299 = vmatpush1.bf16.msra.mxu0 0
          %2300 = vmatprep.mubr.bf16.mxu0 0
          %2301 = vmatmul.mubr.bf16.gmra.mrb[0].mxu0 %v2266
          %v2302 = vpop.f32.mrb[0].mxu0
          %v2303 = vadd.f32 %v2251, %v2302
          %v2304 = vpop.f32.mrb[0].mxu0
          %v2305 = vpop.f32.mrb[0].mxu0
          %v2306 = vadd.f32 %v2251, %v2305
          %v2307 = vpop.f32.mrb[0].mxu0
          %2308 = vdwg.mxu0
          %2309 = vst [vmem:[%s27] sm:$0xff] %v2303
          %2310 = vst [vmem:[%s27 + $0x8] sm:$0xff] %v2306
        $region132: #{rinalmo_forward.1} parent=123 // pred_fallthru
          _
        // Predicated region
        $region133: #{rinalmo_forward.1} parent=123 // pred_check
          %p2311 = pneg %p659
        $region134: #{rinalmo_forward.1} parent=123 // pred_check_branch
          %2313 = sbr.rel (%p2311) target = $region136
        $region135: #{rinalmo_forward.1} parent=123 // pred_region
          %s2315 = ssub.s32 256, 256
          %2316 = vsyncadd [#allocation4], %s2315
          %s2317 = sshll.u32 [#allocation3], 4
          %s2318 = int_to_ptr.vmem [resolvable:$true] %s2317
          %2323 = dma.vmem_to_hbm [thread:$0]  %s2318, 256, %s26, [#allocation4], 128, 128, 8
        $region136: #{rinalmo_forward.1} parent=123 // pred_fallthru
          _
        // Predicated region
        $region137: #{rinalmo_forward.1} parent=123 // pred_check
          %p2324 = pneg %p680
        $region138: #{rinalmo_forward.1} parent=123 // pred_check_branch
          %2326 = sbr.rel (%p2324) target = $region140
        $region139: #{rinalmo_forward.1} parent=123 // pred_region
          _
        $region140: #{rinalmo_forward.1} parent=123 // pred_fallthru
          _
        // Predicated region
        $region141: #{rinalmo_forward.1} parent=123 // pred_check
          %p2327 = pneg %p659
        $region142: #{rinalmo_forward.1} parent=123 // pred_check_branch
          %2329 = sbr.rel (%p2327) target = $region144
        $region143: #{rinalmo_forward.1} parent=123 // pred_region
          %2330 = dma.done [#allocation4], 256
        $region144: #{rinalmo_forward.1} parent=123 // pred_fallthru
          _
        // Predicated region
        $region145: #{rinalmo_forward.1} parent=123 // pred_check
          %p2331 = pneg %p680
        $region146: #{rinalmo_forward.1} parent=123 // pred_check_branch
          %2333 = sbr.rel (%p2331) target = $region148
        $region147: #{rinalmo_forward.1} parent=123 // pred_region
          _
        $region148: #{rinalmo_forward.1} parent=123 // pred_fallthru
          _
      $region124: #{rinalmo_forward.1} parent=5 // pred_fallthru
        _
      %p2334 = scmp.le.s32.totalorder 2, %s35
      // Predicated region
      $region149: #{rinalmo_forward.1} parent=5 // pred_check
        %p2335 = pneg %p2334
      $region150: #{rinalmo_forward.1} parent=5 // pred_check_branch
        %2337 = sbr.rel (%p2335) target = $region152
      $region151: #{rinalmo_forward.1} parent=5 // pred_region
        %s2338 = ssub.s32 %s35, 2
      $region152: #{rinalmo_forward.1} parent=5 // pred_fallthru
        _
    $region6: #{rinalmo_forward.1} parent=1 // loop_footer
      %s39 = sadd.s32 1, %s35
    $region7: #{rinalmo_forward.1} parent=1 // loop_footer_branch
      %34 = sbr.rel target = $region3
    $region8: #{rinalmo_forward.1} parent=1 // loop_exit
      _
    %2339 = vsyncpa [#allocation4], 1
    %s2340 = scalar_lea.sflag [#allocation4], 1
    %2341 = vsyncpa %s2340, 1

</llo_original>
